<compile_context>
chip_gen: v5e
topology: v5e:2x2
jax: 0.10.0
libtpu: 0.0.40
codegen_flags: <defaults>
</compile_context>

<pallas_src>
import jax
import jax.numpy as jnp
from jax.experimental import pallas as pl
from jax.experimental.pallas import tpu as pltpu


# ----------------------------------------------------------------------------
# Kernels
# ----------------------------------------------------------------------------

def ff_kernel_resident(x_ref, w1_ref, b1_ref, w2_ref, b2_ref, o_ref):
    """Weights fully resident in VMEM; grid = (B // tm,), no reduction axis."""
    h = jnp.dot(x_ref[...], w1_ref[...], preferred_element_type=jnp.float32)
    h = jnp.maximum(h + b1_ref[...], 0.0)
    y = jnp.dot(h.astype(w2_ref.dtype), w2_ref[...],
                preferred_element_type=jnp.float32)
    o_ref[...] = (y + b2_ref[...]).astype(o_ref.dtype)


def ff_kernel_tiled_f32out(x_ref, w1_ref, b1_ref, w2_ref, b2_ref, o_ref):
    """H-tiled reduction, f32 output: accumulate directly into o_ref (no scratch)."""
    k = pl.program_id(1)

    @pl.when(k == 0)
    def _init():
        o_ref[...] = jnp.broadcast_to(b2_ref[...], o_ref.shape).astype(o_ref.dtype)

    h = jnp.dot(x_ref[...], w1_ref[...], preferred_element_type=jnp.float32)
    h = jnp.maximum(h + b1_ref[...], 0.0)
    o_ref[...] += jnp.dot(h.astype(w2_ref.dtype), w2_ref[...],
                          preferred_element_type=jnp.float32)


def ff_kernel_tiled_acc(x_ref, w1_ref, b1_ref, w2_ref, b2_ref, o_ref, acc_ref):
    """H-tiled reduction with an f32 VMEM accumulator (non-f32 output dtypes)."""
    k = pl.program_id(1)

    @pl.when(k == 0)
    def _init():
        # Fold b2 into the accumulator init (no extra broadcast/add at finalize).
        acc_ref[...] = jnp.broadcast_to(b2_ref[...], acc_ref.shape).astype(jnp.float32)

    h = jnp.dot(x_ref[...], w1_ref[...], preferred_element_type=jnp.float32)
    h = jnp.maximum(h + b1_ref[...], 0.0)
    acc_ref[...] += jnp.dot(h.astype(w2_ref.dtype), w2_ref[...],
                            preferred_element_type=jnp.float32)

    @pl.when(k == pl.num_programs(1) - 1)
    def _finalize():
        o_ref[...] = acc_ref[...].astype(o_ref.dtype)


# ----------------------------------------------------------------------------
# Wrapper: tiling / path selection
# ----------------------------------------------------------------------------

_TM_CANDS = (512, 256, 128, 64, 32, 16, 8)   # big first: weight-streaming intensity
_TH_CANDS = (1024, 512, 256, 128)


def _vmem_capacity_bytes():
    """Physical VMEM per TensorCore; conservative 64 MiB (v7x) if unknown."""
    try:
        info = pltpu.get_tpu_info()
        cap = getattr(info, "vmem_capacity_bytes", None)
        if cap:
            return int(cap)
    except Exception:
        pass
    return 64 * 1024 * 1024


def feed_forward(x, w1, b1, w2, b2, *, tm=None, th=None, out_dtype=None,
                 vmem_limit_bytes=None):
    """x: (B, IN); w1: (IN, H); b1: (H,) or (1, H); w2: (H, OUT); b2: (OUT,) or (1, OUT)."""
    B, IN = x.shape
    IN2, H = w1.shape
    H2, OUT = w2.shape
    assert IN == IN2 and H == H2, "weight shapes inconsistent with input"
    b1 = jnp.asarray(b1).reshape(1, H)
    b2 = jnp.asarray(b2).reshape(1, OUT)

    if out_dtype is None:
        out_dtype = x.dtype                      # default: activation dtype (bf16 demo)
    out_dtype = jnp.dtype(out_dtype)

    # Lane-dense feature dims keep MXU passes full and the output vst unmasked.
    assert IN % 128 == 0 and H % 128 == 0 and OUT % 128 == 0, (
        "IN/H/OUT must be multiples of 128 (pad at the caller for ragged dims)")

    cap = _vmem_capacity_bytes()
    budget = cap * 3 // 4                        # leave headroom for compiler scratch

    xb, wb, ob = x.dtype.itemsize, w1.dtype.itemsize, out_dtype.itemsize
    bb = max(b1.dtype.itemsize, b2.dtype.itemsize)
    f32_out = (out_dtype == jnp.dtype(jnp.float32))

    def footprint(tm_, th_, resident_):
        f = (2 * tm_ * IN * xb            # x tile, double-buffered
             + 2 * IN * th_ * wb          # W1 slab
             + 2 * th_ * bb               # b1 slab
             + 2 * th_ * OUT * wb         # W2 slab
             + 2 * OUT * bb               # b2
             + 2 * tm_ * OUT * ob         # output tile, double-buffered
             + tm_ * th_ * 4)             # f32 hidden activations
        if (not resident_) and (not f32_out):
            f += tm_ * OUT * 4            # f32 accumulator scratch
        return f

    # Batch-tile candidates: large first, but insist on >= 2 grid steps along the
    # "parallel" axis so v7x megacore can shard both TensorCores.
    if tm is not None:
        tm_cands = [tm]
    else:
        tm_cands = [t for t in _TM_CANDS if B % t == 0 and B // t >= 2]
        if not tm_cands:
            tm_cands = [t for t in _TM_CANDS if B % t == 0] or [B]

    # Hidden-tile candidates: th == H means the weights-resident fast path.
    if th is not None:
        th_cands = [H] if th >= H else [th]
    else:
        th_cands = [H] + [t for t in _TH_CANDS if t < H and H % t == 0]

    chosen = None
    for tm_ in tm_cands:
        for th_ in th_cands:
            resident_ = (th_ == H)
            fp_ = footprint(tm_, th_, resident_)
            if fp_ <= budget:
                chosen = (tm_, th_, resident_, fp_)
                break
        if chosen is not None:
            break
    if chosen is None:
        # Nothing fits our budget estimate: take the smallest candidates and let
        # the explicit (physically-capped) vmem limit do its best.
        tm_, th_ = tm_cands[-1], th_cands[-1]
        resident_ = (th_ == H)
        chosen = (tm_, th_, resident_, footprint(tm_, th_, resident_))
    tm, th, resident, fp = chosen

    assert B % tm == 0, "B must be a multiple of tm (pad the batch at the caller)"
    assert tm % 8 == 0, "tm must be sublane-aligned (multiple of 8)"
    assert H % th == 0 and th % 128 == 0, "th must divide H and be a multiple of 128"

    if vmem_limit_bytes is None:
        # Footprint + headroom, capped below physical VMEM for this generation.
        vmem_limit_bytes = min(max(int(fp * 3 // 2), 32 << 20), int(cap * 7 // 8))

    n_bt = B // tm
    flops = 2 * B * IN * H + 2 * B * H * OUT
    weight_bytes = (int(w1.size) * wb + int(w2.size) * wb
                    + int(b1.size) * b1.dtype.itemsize
                    + int(b2.size) * b2.dtype.itemsize)
    bytes_accessed = (int(x.size) * xb
                      + (1 if resident else n_bt) * weight_bytes   # re-streaming counted
                      + B * OUT * ob)
    cost = pl.CostEstimate(flops=int(flops), transcendentals=0,
                           bytes_accessed=int(bytes_accessed))

    if resident:
        # Grid over batch only; weights/biases have grid-invariant index_maps so
        # Pallas DMAs them exactly once and keeps them resident across all tiles.
        grid = (n_bt,)
        in_specs = [
            pl.BlockSpec((tm, IN), lambda i: (i, 0)),    # x batch tile
            pl.BlockSpec((IN, H), lambda i: (0, 0)),     # W1 (resident)
            pl.BlockSpec((1, H), lambda i: (0, 0)),      # b1 (resident)
            pl.BlockSpec((H, OUT), lambda i: (0, 0)),    # W2 (resident)
            pl.BlockSpec((1, OUT), lambda i: (0, 0)),    # b2 (resident)
        ]
        out_specs = pl.BlockSpec((tm, OUT), lambda i: (i, 0))
        scratch = []
        kernel = ff_kernel_resident
        dims = ("parallel",)
    else:
        # Streamed weights: H-tiled reduction axis last ("arbitrary").
        grid = (n_bt, H // th)
        in_specs = [
            pl.BlockSpec((tm, IN), lambda i, k: (i, 0)),   # x batch tile
            pl.BlockSpec((IN, th), lambda i, k: (0, k)),   # W1 hidden slab
            pl.BlockSpec((1, th), lambda i, k: (0, k)),    # b1 hidden slab
            pl.BlockSpec((th, OUT), lambda i, k: (k, 0)),  # W2 hidden slab
            pl.BlockSpec((1, OUT), lambda i, k: (0, 0)),   # b2 (tiny, invariant)
        ]
        out_specs = pl.BlockSpec((tm, OUT), lambda i, k: (i, 0))
        if f32_out:
            scratch = []                                   # accumulate into o_ref
            kernel = ff_kernel_tiled_f32out
        else:
            scratch = [pltpu.VMEM((tm, OUT), jnp.float32)]
            kernel = ff_kernel_tiled_acc
        dims = ("parallel", "arbitrary")

    return pl.pallas_call(
        kernel,
        out_shape=jax.ShapeDtypeStruct((B, OUT), out_dtype),
        grid_spec=pltpu.PrefetchScalarGridSpec(
            num_scalar_prefetch=0,
            grid=grid,
            in_specs=in_specs,
            out_specs=out_specs,
            scratch_shapes=scratch,
        ),
        compiler_params=pltpu.CompilerParams(
            dimension_semantics=dims,
            vmem_limit_bytes=int(vmem_limit_bytes),
        ),
        cost_estimate=cost,
    )(x, w1, b1, w2, b2)


# TODO(synk): forward_activations (returning the hidden relu features as a second
# output) is not exposed; only the module's forward() prediction path is fused here.


if __name__ == "__main__":
    # Module defaults are 512-wide layers; small-but-lane-dense problem that
    # exercises batch tiling (>=2 parallel tiles) and, when forced, the H-tiled
    # reduction path.
    B, IN, H, OUT = 256, 512, 512, 512

    key = jax.random.PRNGKey(0)
    kx, kw1, kb1, kw2, kb2 = jax.random.split(key, 5)

    # bf16 activations/weights for the MXU; f32 biases added on the f32 accumulator.
    x = jax.random.normal(kx, (B, IN), dtype=jnp.float32).astype(jnp.bfloat16)
    w1 = (jax.random.normal(kw1, (IN, H), dtype=jnp.float32)
          * (1.0 / jnp.sqrt(IN))).astype(jnp.bfloat16)
    b1 = jax.random.normal(kb1, (H,), dtype=jnp.float32) * 0.1
    w2 = (jax.random.normal(kw2, (H, OUT), dtype=jnp.float32)
          * (1.0 / jnp.sqrt(H))).astype(jnp.bfloat16)
    b2 = jax.random.normal(kb2, (OUT,), dtype=jnp.float32) * 0.1

    # Pure-JAX reference of the same math (bf16 matmul inputs, f32 accumulation,
    # activation cast to bf16 before the second matmul — matches the kernel).
    h_ref = jnp.maximum(
        jnp.dot(x, w1, preferred_element_type=jnp.float32) + b1[None, :], 0.0)
    ref = jnp.dot(h_ref.astype(jnp.bfloat16), w2,
                  preferred_element_type=jnp.float32) + b2[None, :]

    # 1) Default config: weights-resident fast path, bf16 (activation-dtype) output.
    out_fast = feed_forward(x, w1, b1, w2, b2)
    jax.block_until_ready(out_fast)
    assert out_fast.shape == (B, OUT) and out_fast.dtype == jnp.bfloat16
    assert jnp.allclose(out_fast.astype(jnp.float32), ref, atol=3e-2, rtol=3e-2)

    # 2) Forced H-tiled streaming path, f32 output (accumulates directly into o_ref).
    out_tiled_f32 = feed_forward(x, w1, b1, w2, b2, tm=128, th=256,
                                 out_dtype=jnp.float32)
    jax.block_until_ready(out_tiled_f32)
    assert out_tiled_f32.shape == (B, OUT) and out_tiled_f32.dtype == jnp.float32
    assert jnp.allclose(out_tiled_f32, ref, atol=2e-2, rtol=2e-2)

    # 3) Forced H-tiled streaming path, bf16 output (f32 scratch accumulator).
    out_tiled_bf16 = feed_forward(x, w1, b1, w2, b2, tm=128, th=256,
                                  out_dtype=jnp.bfloat16)
    jax.block_until_ready(out_tiled_bf16)
    assert out_tiled_bf16.shape == (B, OUT) and out_tiled_bf16.dtype == jnp.bfloat16
    assert jnp.allclose(out_tiled_bf16.astype(jnp.float32), ref, atol=3e-2, rtol=3e-2)

    print("KERNEL_OK")
</pallas_src>

<mosaic_0001>
module attributes {stable_mosaic.version = 11 : i64} {
  func.func @ff_kernel_resident(%arg0: i32, %arg1: memref<128x512xbf16, #tpu.memory_space<vmem>>, %arg2: memref<512x512xbf16, #tpu.memory_space<vmem>>, %arg3: memref<1x512xf32, #tpu.memory_space<vmem>>, %arg4: memref<512x512xbf16, #tpu.memory_space<vmem>>, %arg5: memref<1x512xf32, #tpu.memory_space<vmem>>, %arg6: memref<128x512xbf16, #tpu.memory_space<vmem>>) attributes {dimension_semantics = [#tpu.dimension_semantics<parallel>], iteration_bounds = array<i64: 2>, scalar_prefetch = 0 : i64, scratch_operands = 0 : i64, tpu.core_type = #tpu.core_type<tc>, window_params = [{transform_indices = @transform_0, window_bounds = array<i64: 128, 512>}, {pipeline_mode = #tpu.pipeline_mode<synchronous>, transform_indices = @transform_1, window_bounds = array<i64: 512, 512>}, {pipeline_mode = #tpu.pipeline_mode<synchronous>, transform_indices = @transform_2, window_bounds = array<i64: 1, 512>}, {pipeline_mode = #tpu.pipeline_mode<synchronous>, transform_indices = @transform_3, window_bounds = array<i64: 512, 512>}, {pipeline_mode = #tpu.pipeline_mode<synchronous>, transform_indices = @transform_4, window_bounds = array<i64: 1, 512>}, {transform_indices = @transform_5, window_bounds = array<i64: 128, 512>}]} {
    %c0 = arith.constant 0 : index
    %c0_0 = arith.constant 0 : index
    %0 = vector.load %arg1[%c0, %c0_0] : memref<128x512xbf16, #tpu.memory_space<vmem>>, vector<128x512xbf16>
    %c0_1 = arith.constant 0 : index
    %c0_2 = arith.constant 0 : index
    %1 = vector.load %arg2[%c0_1, %c0_2] : memref<512x512xbf16, #tpu.memory_space<vmem>>, vector<512x512xbf16>
    %cst = arith.constant dense<0.000000e+00> : vector<128x512xf32>
    %2 = tpu.matmul %0, %1, %cst {dimension_numbers = #tpu.dot_dimension_numbers<[1], [0], [0], [1], [0, 0, 1, 1], [], []>} : vector<128x512xbf16>, vector<512x512xbf16>, vector<128x512xf32> -> vector<128x512xf32>
    %c0_3 = arith.constant 0 : index
    %c0_4 = arith.constant 0 : index
    %3 = vector.load %arg3[%c0_3, %c0_4] : memref<1x512xf32, #tpu.memory_space<vmem>>, vector<1x512xf32>
    %4 = vector.broadcast %3 : vector<1x512xf32> to vector<128x512xf32>
    %5 = arith.addf %2, %4 : vector<128x512xf32>
    %cst_5 = arith.constant 0.000000e+00 : f32
    %6 = vector.broadcast %cst_5 : f32 to vector<128x512xf32>
    %7 = arith.maximumf %5, %6 : vector<128x512xf32>
    %8 = arith.truncf %7 : vector<128x512xf32> to vector<128x512xbf16>
    %c0_6 = arith.constant 0 : index
    %c0_7 = arith.constant 0 : index
    %9 = vector.load %arg4[%c0_6, %c0_7] : memref<512x512xbf16, #tpu.memory_space<vmem>>, vector<512x512xbf16>
    %cst_8 = arith.constant dense<0.000000e+00> : vector<128x512xf32>
    %10 = tpu.matmul %8, %9, %cst_8 {dimension_numbers = #tpu.dot_dimension_numbers<[1], [0], [0], [1], [0, 0, 1, 1], [], []>} : vector<128x512xbf16>, vector<512x512xbf16>, vector<128x512xf32> -> vector<128x512xf32>
    %c0_9 = arith.constant 0 : index
    %c0_10 = arith.constant 0 : index
    %11 = vector.load %arg5[%c0_9, %c0_10] : memref<1x512xf32, #tpu.memory_space<vmem>>, vector<1x512xf32>
    %12 = vector.broadcast %11 : vector<1x512xf32> to vector<128x512xf32>
    %13 = arith.addf %10, %12 : vector<128x512xf32>
    %14 = arith.truncf %13 : vector<128x512xf32> to vector<128x512xbf16>
    %c0_11 = arith.constant 0 : index
    %c0_12 = arith.constant 0 : index
    %15 = vector.load %arg6[%c0_11, %c0_12] : memref<128x512xbf16, #tpu.memory_space<vmem>>, vector<128x512xbf16>
    tpu.vector_store %arg6[%c0_11, %c0_12], %14 {strides = array<i32>} : memref<128x512xbf16, #tpu.memory_space<vmem>>, vector<128x512xbf16>,
    return
  }
  func.func @transform_0(%arg0: i32) -> (i32, i32) {
    %c0_i32 = arith.constant 0 : i32
    %c0_i32_0 = arith.constant 0 : i32
    return %arg0, %c0_i32 : i32, i32
  }
  func.func @transform_1(%arg0: i32) -> (i32, i32) {
    %c0_i32 = arith.constant 0 : i32
    %c0_i32_0 = arith.constant 0 : i32
    %c0_i32_1 = arith.constant 0 : i32
    return %c0_i32, %c0_i32_0 : i32, i32
  }
  func.func @transform_2(%arg0: i32) -> (i32, i32) {
    %c0_i32 = arith.constant 0 : i32
    %c0_i32_0 = arith.constant 0 : i32
    %c0_i32_1 = arith.constant 0 : i32
    return %c0_i32, %c0_i32_0 : i32, i32
  }
  func.func @transform_3(%arg0: i32) -> (i32, i32) {
    %c0_i32 = arith.constant 0 : i32
    %c0_i32_0 = arith.constant 0 : i32
    %c0_i32_1 = arith.constant 0 : i32
    return %c0_i32, %c0_i32_0 : i32, i32
  }
  func.func @transform_4(%arg0: i32) -> (i32, i32) {
    %c0_i32 = arith.constant 0 : i32
    %c0_i32_0 = arith.constant 0 : i32
    %c0_i32_1 = arith.constant 0 : i32
    return %c0_i32, %c0_i32_0 : i32, i32
  }
  func.func @transform_5(%arg0: i32) -> (i32, i32) {
    %c0_i32 = arith.constant 0 : i32
    %c0_i32_0 = arith.constant 0 : i32
    return %arg0, %c0_i32 : i32, i32
  }
}

</mosaic_0001>

<llo_original>
// kernel: tpu_custom_call.1
$region0: #{tpu_custom_call.1}
  #allocation0 [shape = 'u32[]', space=smem, size = 0x4, offset = 0x4, fixed_abs, tag = 'smem constant byte address 0x4 - core index']
  #allocation1 [shape = 'u32[72,128]{1,0:T(1,128)}', space=vmem, size = 0x9000, scoped, tag = 'internal scratch']
  %s0 = inlined_call_operand.hbm [shape: bf16[256,512], index: 0, kind: input, shape index: {}]
  %s1 = inlined_call_operand.hbm [shape: bf16[512,512], index: 1, kind: input, shape index: {}]
  %s2 = inlined_call_operand.hbm [shape: f32[1,512], index: 2, kind: input, shape index: {}]
  %s3 = inlined_call_operand.hbm [shape: bf16[512,512], index: 3, kind: input, shape index: {}]
  %s4 = inlined_call_operand.hbm [shape: f32[1,512], index: 4, kind: input, shape index: {}]
  %s5 = inlined_call_operand.hbm [shape: bf16[256,512], index: 5, kind: output, shape index: {}]
  %s6 = sld [smem:[#allocation0]]
  $region73: #{tpu_custom_call.1} parent=0
    _
  %s8 = ssub.s32 1, %s6
  %s9 = scalar_select 0, %s8, %s6
  $region1: #{tpu_custom_call.1} parent=0
    #allocation2 [shape = 'u8[262144]{0}', space=vmem, size = 0x40000, scoped, tag = 'input window, operand 0']
    #allocation3 [shape = 's32[2]{0}', space=sflag, size = 0x8, scoped, tag = 'scoped memory for tpu_custom_call.1']
    #allocation4 [shape = 's32[2]{0}', space=sflag, size = 0x8, scoped, tag = 'scoped memory for tpu_custom_call.1']
    #allocation5 [shape = 'u8[524288]{0}', space=vmem, size = 0x80000, scoped, tag = 'input window, operand 1, single buffered']
    #allocation6 [shape = 's32[1]{0}', space=sflag, size = 0x4, scoped, tag = 'scoped memory for tpu_custom_call.1']
    #allocation7 [shape = 'u8[2048]{0}', space=vmem, size = 0x800, scoped, tag = 'input window, operand 2, single buffered']
    #allocation8 [shape = 'u8[524288]{0}', space=vmem, size = 0x80000, scoped, tag = 'input window, operand 3, single buffered']
    #allocation9 [shape = 's32[1]{0}', space=sflag, size = 0x4, scoped, tag = 'scoped memory for tpu_custom_call.1']
    #allocation10 [shape = 'u8[2048]{0}', space=vmem, size = 0x800, scoped, tag = 'input window, operand 4, single buffered']
    #allocation11 [shape = 'u8[262144]{0}', space=vmem, size = 0x40000, scoped, tag = 'output window, operand 0']
    %10 = vsyncpa [#allocation3], 0
    %s11 = scalar_lea.sflag [#allocation3], 1
    %12 = vsyncpa %s11, 0
    %13 = vsyncpa [#allocation6], 0
    %14 = vsyncpa [#allocation9], 0
    %15 = vsyncpa [#allocation4], 0
    %s16 = scalar_lea.sflag [#allocation4], 1
    %17 = vsyncpa %s16, 0
    loop: start=0, step=1, limit=4
    $region2: #{tpu_custom_call.1} parent=1 // loop_pre_header
      _
    $region3: #{tpu_custom_call.1} parent=1 // loop_header
      %s19 = sphi 0, %s23
      %p20 = scmp.ge.s32.totalorder %s19, 4
      %s29 = sphi 0, %s31
      %s32 = sphi 0, %s29
      %s33 = sphi 0, %s32
      %s49 = sphi 0, %s33
      %s53 = sphi 0, %s53
      %s55 = sphi 0, %s53
      %s56 = sphi 0, %s55
      %s70 = sphi 0, %s56
      %s74 = sphi 0, %s74
      %s76 = sphi 0, %s74
      %s77 = sphi 0, %s76
      %s91 = sphi 0, %s77
      %s95 = sphi 0, %s95
      %s97 = sphi 0, %s95
      %s98 = sphi 0, %s97
      %s112 = sphi 0, %s98
      %s116 = sphi 0, %s116
      %s118 = sphi 0, %s116
      %s119 = sphi 0, %s118
      %s133 = sphi 0, %s119
      %s139 = sphi 0, %s141
      %s142 = sphi 0, %s139
      %s143 = sphi 0, %s142
      %s159 = sphi 0, %s143
    $region4: #{tpu_custom_call.1} parent=1 // loop_header_branch
      %22 = sbr.rel (%p20) target = $region8
    $region5: #{tpu_custom_call.1} parent=1 // loop_body
      %s24 = ssub.s32 %s19, 1
      %s25 = ssub.s32 %s19, 2
      %s26 = sadd.s32 %s19, 1
      %s27 = ssub.s32 %s19, %s26
      %p28 = scmp.eq.s32.totalorder %s27, 0
      %s30 = sadd.s32 %s29, 1
      %s31 = scalar_select %p28, %s29, %s30
      %p34 = pneg %p28
      %p35 = scmp.eq.s32.totalorder %s19, 1
      %p36 = por %p34, %p35
      %p37 = scmp.ne.s32.totalorder %s29, %s32
      %p38 = scmp.eq.s32.totalorder %s19, 0
      %p39 = por %p37, %p38
      %p40 = scmp.ne.s32.totalorder %s29, %s32
      %p41 = scmp.eq.s32.totalorder %s24, 1
      %p42 = por %p40, %p41
      %p43 = scmp.ne.s32.totalorder %s32, %s33
      %p44 = scmp.eq.s32.totalorder %s24, 0
      %p45 = por %p43, %p44
      %p46 = scmp.ne.s32.totalorder %s32, %s33
      %p47 = scmp.eq.s32.totalorder %s25, 1
      %p48 = por %p46, %p47
      %p50 = scmp.ne.s32.totalorder %s33, %s49
      %p51 = scmp.eq.s32.totalorder %s25, 0
      %p52 = por %p50, %p51
      %s54 = sadd.s32 %s53, 1
      %p57 = scmp.eq.s32.totalorder %s19, 1
      %p58 = scmp.ne.s32.totalorder %s53, %s55
      %p59 = scmp.eq.s32.totalorder %s19, 0
      %p60 = por %p58, %p59
      %p61 = scmp.ne.s32.totalorder %s53, %s55
      %p62 = scmp.eq.s32.totalorder %s24, 1
      %p63 = por %p61, %p62
      %p64 = scmp.ne.s32.totalorder %s55, %s56
      %p65 = scmp.eq.s32.totalorder %s24, 0
      %p66 = por %p64, %p65
      %p67 = scmp.ne.s32.totalorder %s55, %s56
      %p68 = scmp.eq.s32.totalorder %s25, 1
      %p69 = por %p67, %p68
      %p71 = scmp.ne.s32.totalorder %s56, %s70
      %p72 = scmp.eq.s32.totalorder %s25, 0
      %p73 = por %p71, %p72
      %s75 = sadd.s32 %s74, 1
      %p78 = scmp.eq.s32.totalorder %s19, 1
      %p79 = scmp.ne.s32.totalorder %s74, %s76
      %p80 = scmp.eq.s32.totalorder %s19, 0
      %p81 = por %p79, %p80
      %p82 = scmp.ne.s32.totalorder %s74, %s76
      %p83 = scmp.eq.s32.totalorder %s24, 1
      %p84 = por %p82, %p83
      %p85 = scmp.ne.s32.totalorder %s76, %s77
      %p86 = scmp.eq.s32.totalorder %s24, 0
      %p87 = por %p85, %p86
      %p88 = scmp.ne.s32.totalorder %s76, %s77
      %p89 = scmp.eq.s32.totalorder %s25, 1
      %p90 = por %p88, %p89
      %p92 = scmp.ne.s32.totalorder %s77, %s91
      %p93 = scmp.eq.s32.totalorder %s25, 0
      %p94 = por %p92, %p93
      %s96 = sadd.s32 %s95, 1
      %p99 = scmp.eq.s32.totalorder %s19, 1
      %p100 = scmp.ne.s32.totalorder %s95, %s97
      %p101 = scmp.eq.s32.totalorder %s19, 0
      %p102 = por %p100, %p101
      %p103 = scmp.ne.s32.totalorder %s95, %s97
      %p104 = scmp.eq.s32.totalorder %s24, 1
      %p105 = por %p103, %p104
      %p106 = scmp.ne.s32.totalorder %s97, %s98
      %p107 = scmp.eq.s32.totalorder %s24, 0
      %p108 = por %p106, %p107
      %p109 = scmp.ne.s32.totalorder %s97, %s98
      %p110 = scmp.eq.s32.totalorder %s25, 1
      %p111 = por %p109, %p110
      %p113 = scmp.ne.s32.totalorder %s98, %s112
      %p114 = scmp.eq.s32.totalorder %s25, 0
      %p115 = por %p113, %p114
      %s117 = sadd.s32 %s116, 1
      %p120 = scmp.eq.s32.totalorder %s19, 1
      %p121 = scmp.ne.s32.totalorder %s116, %s118
      %p122 = scmp.eq.s32.totalorder %s19, 0
      %p123 = por %p121, %p122
      %p124 = scmp.ne.s32.totalorder %s116, %s118
      %p125 = scmp.eq.s32.totalorder %s24, 1
      %p126 = por %p124, %p125
      %p127 = scmp.ne.s32.totalorder %s118, %s119
      %p128 = scmp.eq.s32.totalorder %s24, 0
      %p129 = por %p127, %p128
      %p130 = scmp.ne.s32.totalorder %s118, %s119
      %p131 = scmp.eq.s32.totalorder %s25, 1
      %p132 = por %p130, %p131
      %p134 = scmp.ne.s32.totalorder %s119, %s133
      %p135 = scmp.eq.s32.totalorder %s25, 0
      %p136 = por %p134, %p135
      %s137 = ssub.s32 %s19, %s26
      %p138 = scmp.eq.s32.totalorder %s137, 0
      %s140 = sadd.s32 %s139, 1
      %s141 = scalar_select %p138, %s139, %s140
      %p144 = pneg %p138
      %p145 = scmp.eq.s32.totalorder %s19, 1
      %p146 = por %p144, %p145
      %p147 = scmp.ne.s32.totalorder %s139, %s142
      %p148 = scmp.eq.s32.totalorder %s19, 0
      %p149 = por %p147, %p148
      %p150 = scmp.ne.s32.totalorder %s139, %s142
      %p151 = scmp.eq.s32.totalorder %s24, 1
      %p152 = por %p150, %p151
      %p153 = scmp.ne.s32.totalorder %s142, %s143
      %p154 = scmp.eq.s32.totalorder %s24, 0
      %p155 = por %p153, %p154
      %p156 = scmp.ne.s32.totalorder %s142, %s143
      %p157 = scmp.eq.s32.totalorder %s25, 1
      %p158 = por %p156, %p157
      %p160 = scmp.ne.s32.totalorder %s143, %s159
      %p161 = scmp.eq.s32.totalorder %s25, 0
      %p162 = por %p160, %p161
      %p163 = scmp.le.s32.totalorder 1, %s19
      %p164 = scmp.lt.s32.totalorder %s19, 3
      %p165 = pnand %p163, %p164
      %p166 = pneg %p165
      // Predicated region
      $region9: #{tpu_custom_call.1} parent=5 // pred_check
        _
      $region10: #{tpu_custom_call.1} parent=5 // pred_check_branch
        %168 = sbr.rel (%p165) target = $region12
      $region11: #{tpu_custom_call.1} parent=5 // pred_region
        %s169 = ssub.s32 %s19, 1
        // Predicated region
        $region13: #{tpu_custom_call.1} parent=11 // pred_check
          %p170 = pneg %p66
        $region14: #{tpu_custom_call.1} parent=11 // pred_check_branch
          %172 = sbr.rel (%p170) target = $region16
        $region15: #{tpu_custom_call.1} parent=11 // pred_region
          %174 = vsyncadd [#allocation6], 0
          %s175 = sshll.u32 %s1, 4
          %s176 = int_to_ptr.hbm [resolvable:$true] %s175
          %s177 = sshll.u32 [#allocation5], 4
          %s178 = int_to_ptr.vmem [resolvable:$true] %s177
          %183 = dma.hbm_to_vmem [thread:$0]  %s176, 16384, %s178, [#allocation6], 256, 256, 16
        $region16: #{tpu_custom_call.1} parent=11 // pred_fallthru
          _
        // Predicated region
        $region17: #{tpu_custom_call.1} parent=11 // pred_check
          %p184 = pneg %p87
        $region18: #{tpu_custom_call.1} parent=11 // pred_check_branch
          %186 = sbr.rel (%p184) target = $region20
        $region19: #{tpu_custom_call.1} parent=11 // pred_region
          %188 = vsyncadd [#allocation6], 0
          %s190 = sshll.u32 %s2, 4
          %s191 = int_to_ptr.hbm [resolvable:$true] %s190
          %s192 = sshll.u32 [#allocation7], 4
          %s193 = int_to_ptr.vmem [resolvable:$true] %s192
          %195 = dma.hbm_to_vmem [thread:$0]  %s191, 64, %s193, [#allocation6]
        $region20: #{tpu_custom_call.1} parent=11 // pred_fallthru
          _
        // Predicated region
        $region21: #{tpu_custom_call.1} parent=11 // pred_check
          %p196 = pneg %p108
        $region22: #{tpu_custom_call.1} parent=11 // pred_check_branch
          %198 = sbr.rel (%p196) target = $region24
        $region23: #{tpu_custom_call.1} parent=11 // pred_region
          %200 = vsyncadd [#allocation9], 0
          %s201 = sshll.u32 %s3, 4
          %s202 = int_to_ptr.hbm [resolvable:$true] %s201
          %s203 = sshll.u32 [#allocation8], 4
          %s204 = int_to_ptr.vmem [resolvable:$true] %s203
          %209 = dma.hbm_to_vmem [thread:$0]  %s202, 16384, %s204, [#allocation9], 256, 256, 16
        $region24: #{tpu_custom_call.1} parent=11 // pred_fallthru
          _
        // Predicated region
        $region25: #{tpu_custom_call.1} parent=11 // pred_check
          %p210 = pneg %p129
        $region26: #{tpu_custom_call.1} parent=11 // pred_check_branch
          %212 = sbr.rel (%p210) target = $region28
        $region27: #{tpu_custom_call.1} parent=11 // pred_region
          %214 = vsyncadd [#allocation9], 0
          %s216 = sshll.u32 %s4, 4
          %s217 = int_to_ptr.hbm [resolvable:$true] %s216
          %s218 = sshll.u32 [#allocation10], 4
          %s219 = int_to_ptr.vmem [resolvable:$true] %s218
          %221 = dma.hbm_to_vmem [thread:$0]  %s217, 64, %s219, [#allocation9]
        $region28: #{tpu_custom_call.1} parent=11 // pred_fallthru
          _
      $region12: #{tpu_custom_call.1} parent=5 // pred_fallthru
        _
      %p222 = scmp.lt.s32.totalorder %s19, 2
      // Predicated region
      $region29: #{tpu_custom_call.1} parent=5 // pred_check
        %p223 = pneg %p222
      $region30: #{tpu_custom_call.1} parent=5 // pred_check_branch
        %225 = sbr.rel (%p223) target = $region32
      $region31: #{tpu_custom_call.1} parent=5 // pred_region
        // Predicated region
        $region33: #{tpu_custom_call.1} parent=31 // pred_check
          %p226 = pneg %p39
        $region34: #{tpu_custom_call.1} parent=31 // pred_check_branch
          %228 = sbr.rel (%p226) target = $region36
        $region35: #{tpu_custom_call.1} parent=31 // pred_region
          %s229 = sand.u32 %s29, 1
          %s230 = scalar_lea.sflag [#allocation3], %s229
          %s231 = sand.u32 %s29, 1
          %s232 = smul.addr %s231, 256
          %s233 = scalar_lea.vmem [#allocation2], %s232
          %s234 = smul.u32 16, %s19
          %236 = vsyncadd %s230, 0
          %s237 = smul.addr %s234, 4
          %s238 = smul.addr %s237, 4
          %s239 = scalar_lea.hbm %s0, %s238
          %s240 = sshll.u32 %s239, 4
          %s241 = int_to_ptr.hbm [resolvable:$true] %s240
          %s242 = sshll.u32 %s233, 4
          %s243 = int_to_ptr.vmem [resolvable:$true] %s242
          %248 = dma.hbm_to_vmem [thread:$0]  %s241, 4096, %s243, %s230, 256, 256, 16
        $region36: #{tpu_custom_call.1} parent=31 // pred_fallthru
          _
      $region32: #{tpu_custom_call.1} parent=5 // pred_fallthru
        _
      %p249 = scmp.le.s32.totalorder 1, %s19
      %p250 = scmp.lt.s32.totalorder %s19, 3
      %p251 = pnand %p249, %p250
      %p252 = pneg %p251
      // Predicated region
      $region37: #{tpu_custom_call.1} parent=5 // pred_check
        _
      $region38: #{tpu_custom_call.1} parent=5 // pred_check_branch
        %254 = sbr.rel (%p251) target = $region40
      $region39: #{tpu_custom_call.1} parent=5 // pred_region
        %s255 = ssub.s32 %s19, 1
        %s256 = sand.u32 %s32, 1
        %s257 = scalar_lea.sflag [#allocation3], %s256
        %s258 = sand.u32 %s32, 1
        %s259 = smul.addr %s258, 256
        %s260 = scalar_lea.vmem [#allocation2], %s259
        // Predicated region
        $region41: #{tpu_custom_call.1} parent=39 // pred_check
          %p261 = pneg %p45
        $region42: #{tpu_custom_call.1} parent=39 // pred_check_branch
          %263 = sbr.rel (%p261) target = $region44
        $region43: #{tpu_custom_call.1} parent=39 // pred_region
          %265 = dma.done %s257, 4096
        $region44: #{tpu_custom_call.1} parent=39 // pred_fallthru
          _
        // Predicated region
        $region45: #{tpu_custom_call.1} parent=39 // pred_check
          %p266 = pneg %p66
        $region46: #{tpu_custom_call.1} parent=39 // pred_check_branch
          %268 = sbr.rel (%p266) target = $region48
        $region47: #{tpu_custom_call.1} parent=39 // pred_region
          %270 = dma.done [#allocation6], 16384
        $region48: #{tpu_custom_call.1} parent=39 // pred_fallthru
          _
        // Predicated region
        $region49: #{tpu_custom_call.1} parent=39 // pred_check
          %p271 = pneg %p87
        $region50: #{tpu_custom_call.1} parent=39 // pred_check_branch
          %273 = sbr.rel (%p271) target = $region52
        $region51: #{tpu_custom_call.1} parent=39 // pred_region
          %275 = dma.done [#allocation6], 64
        $region52: #{tpu_custom_call.1} parent=39 // pred_fallthru
          _
        // Predicated region
        $region53: #{tpu_custom_call.1} parent=39 // pred_check
          %p276 = pneg %p108
        $region54: #{tpu_custom_call.1} parent=39 // pred_check_branch
          %278 = sbr.rel (%p276) target = $region56
        $region55: #{tpu_custom_call.1} parent=39 // pred_region
          %280 = dma.done [#allocation9], 16384
        $region56: #{tpu_custom_call.1} parent=39 // pred_fallthru
          _
        // Predicated region
        $region57: #{tpu_custom_call.1} parent=39 // pred_check
          %p281 = pneg %p129
        $region58: #{tpu_custom_call.1} parent=39 // pred_check_branch
          %283 = sbr.rel (%p281) target = $region60
        $region59: #{tpu_custom_call.1} parent=39 // pred_region
          %285 = dma.done [#allocation9], 64
        $region60: #{tpu_custom_call.1} parent=39 // pred_fallthru
          _
        %s286 = sand.u32 %s32, 1
        %s287 = scalar_lea.sflag [#allocation3], %s286
        %s288 = sand.u32 %s32, 1
        %s289 = smul.addr %s288, 256
        %s290 = scalar_lea.vmem [#allocation2], %s289
        %p291 = pneg %p45
        %p292 = pneg %p42
        %p293 = pneg %p66
        %p294 = pneg %p63
        %p295 = pneg %p87
        %p296 = pneg %p84
        %p297 = pneg %p108
        %p298 = pneg %p105
        %p299 = pneg %p129
        %p300 = pneg %p126
        %p301 = pneg %p155
        %p302 = pneg %p152
        %s303 = sand.u32 %s142, 1
        %s304 = scalar_lea.sflag [#allocation4], %s303
        %s305 = sand.u32 %s142, 1
        %s306 = smul.addr %s305, 256
        %s307 = scalar_lea.vmem [#allocation11], %s306
        %s308 = smul.u32 16, %s24
        %s309 = smul.u32 16, %s24
        %v310 = vld [vmem:[%s260] sm:$0xff]
        %v311 = vld [vmem:[%s260 + $0x8] sm:$0xff]
        %v312 = vld [vmem:[%s260 + $0x10] sm:$0xff]
        %v313 = vld [vmem:[%s260 + $0x18] sm:$0xff]
        %v314 = vld [vmem:[%s260 + $0x20] sm:$0xff]
        %v315 = vld [vmem:[%s260 + $0x28] sm:$0xff]
        %v316 = vld [vmem:[%s260 + $0x30] sm:$0xff]
        %v317 = vld [vmem:[%s260 + $0x38] sm:$0xff]
        %v318 = vld [vmem:[%s260 + $0x40] sm:$0xff]
        %v319 = vld [vmem:[%s260 + $0x48] sm:$0xff]
        %v320 = vld [vmem:[%s260 + $0x50] sm:$0xff]
        %v321 = vld [vmem:[%s260 + $0x58] sm:$0xff]
        %v322 = vld [vmem:[%s260 + $0x60] sm:$0xff]
        %v323 = vld [vmem:[%s260 + $0x68] sm:$0xff]
        %v324 = vld [vmem:[%s260 + $0x70] sm:$0xff]
        %v325 = vld [vmem:[%s260 + $0x78] sm:$0xff]
        %v326 = vld [vmem:[%s260 + $0x80] sm:$0xff]
        %v327 = vld [vmem:[%s260 + $0x88] sm:$0xff]
        %v328 = vld [vmem:[%s260 + $0x90] sm:$0xff]
        %v329 = vld [vmem:[%s260 + $0x98] sm:$0xff]
        %v330 = vld [vmem:[%s260 + $0xa0] sm:$0xff]
        %v331 = vld [vmem:[%s260 + $0xa8] sm:$0xff]
        %v332 = vld [vmem:[%s260 + $0xb0] sm:$0xff]
        %v333 = vld [vmem:[%s260 + $0xb8] sm:$0xff]
        %v334 = vld [vmem:[%s260 + $0xc0] sm:$0xff]
        %v335 = vld [vmem:[%s260 + $0xc8] sm:$0xff]
        %v336 = vld [vmem:[%s260 + $0xd0] sm:$0xff]
        %v337 = vld [vmem:[%s260 + $0xd8] sm:$0xff]
        %v338 = vld [vmem:[%s260 + $0xe0] sm:$0xff]
        %v339 = vld [vmem:[%s260 + $0xe8] sm:$0xff]
        %v340 = vld [vmem:[%s260 + $0xf0] sm:$0xff]
        %v341 = vld [vmem:[%s260 + $0xf8] sm:$0xff]
        %v342 = vld [vmem:[#allocation5] sm:$0xff]
        %v343 = vld [vmem:[#allocation5 + $0x8] sm:$0xff]
        %v344 = vld [vmem:[#allocation5 + $0x10] sm:$0xff]
        %v345 = vld [vmem:[#allocation5 + $0x18] sm:$0xff]
        %v346 = vld [vmem:[#allocation5 + $0x20] sm:$0xff]
        %v347 = vld [vmem:[#allocation5 + $0x28] sm:$0xff]
        %v348 = vld [vmem:[#allocation5 + $0x30] sm:$0xff]
        %v349 = vld [vmem:[#allocation5 + $0x38] sm:$0xff]
        %v350 = vld [vmem:[#allocation5 + $0x40] sm:$0xff]
        %v351 = vld [vmem:[#allocation5 + $0x48] sm:$0xff]
        %v352 = vld [vmem:[#allocation5 + $0x50] sm:$0xff]
        %v353 = vld [vmem:[#allocation5 + $0x58] sm:$0xff]
        %v354 = vld [vmem:[#allocation5 + $0x60] sm:$0xff]
        %v355 = vld [vmem:[#allocation5 + $0x68] sm:$0xff]
        %v356 = vld [vmem:[#allocation5 + $0x70] sm:$0xff]
        %v357 = vld [vmem:[#allocation5 + $0x78] sm:$0xff]
        %v358 = vld [vmem:[#allocation5 + $0x80] sm:$0xff]
        %v359 = vld [vmem:[#allocation5 + $0x88] sm:$0xff]
        %v360 = vld [vmem:[#allocation5 + $0x90] sm:$0xff]
        %v361 = vld [vmem:[#allocation5 + $0x98] sm:$0xff]
        %v362 = vld [vmem:[#allocation5 + $0xa0] sm:$0xff]
        %v363 = vld [vmem:[#allocation5 + $0xa8] sm:$0xff]
        %v364 = vld [vmem:[#allocation5 + $0xb0] sm:$0xff]
        %v365 = vld [vmem:[#allocation5 + $0xb8] sm:$0xff]
        %v366 = vld [vmem:[#allocation5 + $0xc0] sm:$0xff]
        %v367 = vld [vmem:[#allocation5 + $0xc8] sm:$0xff]
        %v368 = vld [vmem:[#allocation5 + $0xd0] sm:$0xff]
        %v369 = vld [vmem:[#allocation5 + $0xd8] sm:$0xff]
        %v370 = vld [vmem:[#allocation5 + $0xe0] sm:$0xff]
        %v371 = vld [vmem:[#allocation5 + $0xe8] sm:$0xff]
        %v372 = vld [vmem:[#allocation5 + $0xf0] sm:$0xff]
        %v373 = vld [vmem:[#allocation5 + $0xf8] sm:$0xff]
        %v374 = vld [vmem:[#allocation5 + $0x100] sm:$0xff]
        %v375 = vld [vmem:[#allocation5 + $0x108] sm:$0xff]
        %v376 = vld [vmem:[#allocation5 + $0x110] sm:$0xff]
        %v377 = vld [vmem:[#allocation5 + $0x118] sm:$0xff]
        %v378 = vld [vmem:[#allocation5 + $0x120] sm:$0xff]
        %v379 = vld [vmem:[#allocation5 + $0x128] sm:$0xff]
        %v380 = vld [vmem:[#allocation5 + $0x130] sm:$0xff]
        %v381 = vld [vmem:[#allocation5 + $0x138] sm:$0xff]
        %v382 = vld [vmem:[#allocation5 + $0x140] sm:$0xff]
        %v383 = vld [vmem:[#allocation5 + $0x148] sm:$0xff]
        %v384 = vld [vmem:[#allocation5 + $0x150] sm:$0xff]
        %v385 = vld [vmem:[#allocation5 + $0x158] sm:$0xff]
        %v386 = vld [vmem:[#allocation5 + $0x160] sm:$0xff]
        %v387 = vld [vmem:[#allocation5 + $0x168] sm:$0xff]
        %v388 = vld [vmem:[#allocation5 + $0x170] sm:$0xff]
        %v389 = vld [vmem:[#allocation5 + $0x178] sm:$0xff]
        %v390 = vld [vmem:[#allocation5 + $0x180] sm:$0xff]
        %v391 = vld [vmem:[#allocation5 + $0x188] sm:$0xff]
        %v392 = vld [vmem:[#allocation5 + $0x190] sm:$0xff]
        %v393 = vld [vmem:[#allocation5 + $0x198] sm:$0xff]
        %v394 = vld [vmem:[#allocation5 + $0x1a0] sm:$0xff]
        %v395 = vld [vmem:[#allocation5 + $0x1a8] sm:$0xff]
        %v396 = vld [vmem:[#allocation5 + $0x1b0] sm:$0xff]
        %v397 = vld [vmem:[#allocation5 + $0x1b8] sm:$0xff]
        %v398 = vld [vmem:[#allocation5 + $0x1c0] sm:$0xff]
        %v399 = vld [vmem:[#allocation5 + $0x1c8] sm:$0xff]
        %v400 = vld [vmem:[#allocation5 + $0x1d0] sm:$0xff]
        %v401 = vld [vmem:[#allocation5 + $0x1d8] sm:$0xff]
        %v402 = vld [vmem:[#allocation5 + $0x1e0] sm:$0xff]
        %v403 = vld [vmem:[#allocation5 + $0x1e8] sm:$0xff]
        %v404 = vld [vmem:[#allocation5 + $0x1f0] sm:$0xff]
        %v405 = vld [vmem:[#allocation5 + $0x1f8] sm:$0xff]
        %v406 = vld [vmem:[#allocation5 + $0x200] sm:$0xff]
        %v407 = vld [vmem:[#allocation5 + $0x208] sm:$0xff]
        %v408 = vld [vmem:[#allocation5 + $0x210] sm:$0xff]
        %v409 = vld [vmem:[#allocation5 + $0x218] sm:$0xff]
        %v410 = vld [vmem:[#allocation5 + $0x220] sm:$0xff]
        %v411 = vld [vmem:[#allocation5 + $0x228] sm:$0xff]
        %v412 = vld [vmem:[#allocation5 + $0x230] sm:$0xff]
        %v413 = vld [vmem:[#allocation5 + $0x238] sm:$0xff]
        %v414 = vld [vmem:[#allocation5 + $0x240] sm:$0xff]
        %v415 = vld [vmem:[#allocation5 + $0x248] sm:$0xff]
        %v416 = vld [vmem:[#allocation5 + $0x250] sm:$0xff]
        %v417 = vld [vmem:[#allocation5 + $0x258] sm:$0xff]
        %v418 = vld [vmem:[#allocation5 + $0x260] sm:$0xff]
        %v419 = vld [vmem:[#allocation5 + $0x268] sm:$0xff]
        %v420 = vld [vmem:[#allocation5 + $0x270] sm:$0xff]
        %v421 = vld [vmem:[#allocation5 + $0x278] sm:$0xff]
        %v422 = vld [vmem:[#allocation5 + $0x280] sm:$0xff]
        %v423 = vld [vmem:[#allocation5 + $0x288] sm:$0xff]
        %v424 = vld [vmem:[#allocation5 + $0x290] sm:$0xff]
        %v425 = vld [vmem:[#allocation5 + $0x298] sm:$0xff]
        %v426 = vld [vmem:[#allocation5 + $0x2a0] sm:$0xff]
        %v427 = vld [vmem:[#allocation5 + $0x2a8] sm:$0xff]
        %v428 = vld [vmem:[#allocation5 + $0x2b0] sm:$0xff]
        %v429 = vld [vmem:[#allocation5 + $0x2b8] sm:$0xff]
        %v430 = vld [vmem:[#allocation5 + $0x2c0] sm:$0xff]
        %v431 = vld [vmem:[#allocation5 + $0x2c8] sm:$0xff]
        %v432 = vld [vmem:[#allocation5 + $0x2d0] sm:$0xff]
        %v433 = vld [vmem:[#allocation5 + $0x2d8] sm:$0xff]
        %v434 = vld [vmem:[#allocation5 + $0x2e0] sm:$0xff]
        %v435 = vld [vmem:[#allocation5 + $0x2e8] sm:$0xff]
        %v436 = vld [vmem:[#allocation5 + $0x2f0] sm:$0xff]
        %v437 = vld [vmem:[#allocation5 + $0x2f8] sm:$0xff]
        %v438 = vld [vmem:[#allocation5 + $0x300] sm:$0xff]
        %v439 = vld [vmem:[#allocation5 + $0x308] sm:$0xff]
        %v440 = vld [vmem:[#allocation5 + $0x310] sm:$0xff]
        %v441 = vld [vmem:[#allocation5 + $0x318] sm:$0xff]
        %v442 = vld [vmem:[#allocation5 + $0x320] sm:$0xff]
        %v443 = vld [vmem:[#allocation5 + $0x328] sm:$0xff]
        %v444 = vld [vmem:[#allocation5 + $0x330] sm:$0xff]
        %v445 = vld [vmem:[#allocation5 + $0x338] sm:$0xff]
        %v446 = vld [vmem:[#allocation5 + $0x340] sm:$0xff]
        %v447 = vld [vmem:[#allocation5 + $0x348] sm:$0xff]
        %v448 = vld [vmem:[#allocation5 + $0x350] sm:$0xff]
        %v449 = vld [vmem:[#allocation5 + $0x358] sm:$0xff]
        %v450 = vld [vmem:[#allocation5 + $0x360] sm:$0xff]
        %v451 = vld [vmem:[#allocation5 + $0x368] sm:$0xff]
        %v452 = vld [vmem:[#allocation5 + $0x370] sm:$0xff]
        %v453 = vld [vmem:[#allocation5 + $0x378] sm:$0xff]
        %v454 = vld [vmem:[#allocation5 + $0x380] sm:$0xff]
        %v455 = vld [vmem:[#allocation5 + $0x388] sm:$0xff]
        %v456 = vld [vmem:[#allocation5 + $0x390] sm:$0xff]
        %v457 = vld [vmem:[#allocation5 + $0x398] sm:$0xff]
        %v458 = vld [vmem:[#allocation5 + $0x3a0] sm:$0xff]
        %v459 = vld [vmem:[#allocation5 + $0x3a8] sm:$0xff]
        %v460 = vld [vmem:[#allocation5 + $0x3b0] sm:$0xff]
        %v461 = vld [vmem:[#allocation5 + $0x3b8] sm:$0xff]
        %v462 = vld [vmem:[#allocation5 + $0x3c0] sm:$0xff]
        %v463 = vld [vmem:[#allocation5 + $0x3c8] sm:$0xff]
        %v464 = vld [vmem:[#allocation5 + $0x3d0] sm:$0xff]
        %v465 = vld [vmem:[#allocation5 + $0x3d8] sm:$0xff]
        %v466 = vld [vmem:[#allocation5 + $0x3e0] sm:$0xff]
        %v467 = vld [vmem:[#allocation5 + $0x3e8] sm:$0xff]
        %v468 = vld [vmem:[#allocation5 + $0x3f0] sm:$0xff]
        %v469 = vld [vmem:[#allocation5 + $0x3f8] sm:$0xff]
        %v470 = vld [vmem:[#allocation7] sm:$0xf]
        %v472 = vperm.slane %v470, 0
        %v473 = vperm.slane %v470, 1
        %v474 = vperm.slane %v470, 2
        %v475 = vperm.slane %v470, 3
        %v512 = vunpack.c.l.b16 %v310
        %v513 = vunpack.c.h.b16 %v310
        %v514 = vunpack.c.l.b16 %v311
        %v515 = vunpack.c.h.b16 %v311
        %v516 = vunpack.c.l.b16 %v312
        %v517 = vunpack.c.h.b16 %v312
        %v518 = vunpack.c.l.b16 %v313
        %v519 = vunpack.c.h.b16 %v313
        %v520 = vunpack.c.l.b16 %v314
        %v521 = vunpack.c.h.b16 %v314
        %v522 = vunpack.c.l.b16 %v315
        %v523 = vunpack.c.h.b16 %v315
        %v524 = vunpack.c.l.b16 %v316
        %v525 = vunpack.c.h.b16 %v316
        %v526 = vunpack.c.l.b16 %v317
        %v527 = vunpack.c.h.b16 %v317
        %v528 = vunpack.c.l.b16 %v318
        %v529 = vunpack.c.h.b16 %v318
        %v530 = vunpack.c.l.b16 %v319
        %v531 = vunpack.c.h.b16 %v319
        %v532 = vunpack.c.l.b16 %v320
        %v533 = vunpack.c.h.b16 %v320
        %v534 = vunpack.c.l.b16 %v321
        %v535 = vunpack.c.h.b16 %v321
        %v536 = vunpack.c.l.b16 %v322
        %v537 = vunpack.c.h.b16 %v322
        %v538 = vunpack.c.l.b16 %v323
        %v539 = vunpack.c.h.b16 %v323
        %v540 = vunpack.c.l.b16 %v324
        %v541 = vunpack.c.h.b16 %v324
        %v542 = vunpack.c.l.b16 %v325
        %v543 = vunpack.c.h.b16 %v325
        %v544 = vunpack.c.l.b16 %v326
        %v545 = vunpack.c.h.b16 %v326
        %v546 = vunpack.c.l.b16 %v327
        %v547 = vunpack.c.h.b16 %v327
        %v548 = vunpack.c.l.b16 %v328
        %v549 = vunpack.c.h.b16 %v328
        %v550 = vunpack.c.l.b16 %v329
        %v551 = vunpack.c.h.b16 %v329
        %v552 = vunpack.c.l.b16 %v330
        %v553 = vunpack.c.h.b16 %v330
        %v554 = vunpack.c.l.b16 %v331
        %v555 = vunpack.c.h.b16 %v331
        %v556 = vunpack.c.l.b16 %v332
        %v557 = vunpack.c.h.b16 %v332
        %v558 = vunpack.c.l.b16 %v333
        %v559 = vunpack.c.h.b16 %v333
        %v560 = vunpack.c.l.b16 %v334
        %v561 = vunpack.c.h.b16 %v334
        %v562 = vunpack.c.l.b16 %v335
        %v563 = vunpack.c.h.b16 %v335
        %v564 = vunpack.c.l.b16 %v336
        %v565 = vunpack.c.h.b16 %v336
        %v566 = vunpack.c.l.b16 %v337
        %v567 = vunpack.c.h.b16 %v337
        %v568 = vunpack.c.l.b16 %v338
        %v569 = vunpack.c.h.b16 %v338
        %v570 = vunpack.c.l.b16 %v339
        %v571 = vunpack.c.h.b16 %v339
        %v572 = vunpack.c.l.b16 %v340
        %v573 = vunpack.c.h.b16 %v340
        %v574 = vunpack.c.l.b16 %v341
        %v575 = vunpack.c.h.b16 %v341
        %v576 = vpack.c.b16 %v516, %v512
        %v577 = vpack.c.b16 %v517, %v513
        %v578 = vpack.c.b16 %v518, %v514
        %v579 = vpack.c.b16 %v519, %v515
        %v580 = vpack.c.b16 %v524, %v520
        %v581 = vpack.c.b16 %v525, %v521
        %v582 = vpack.c.b16 %v526, %v522
        %v583 = vpack.c.b16 %v527, %v523
        %v584 = vpack.c.b16 %v532, %v528
        %v585 = vpack.c.b16 %v533, %v529
        %v586 = vpack.c.b16 %v534, %v530
        %v587 = vpack.c.b16 %v535, %v531
        %v588 = vpack.c.b16 %v540, %v536
        %v589 = vpack.c.b16 %v541, %v537
        %v590 = vpack.c.b16 %v542, %v538
        %v591 = vpack.c.b16 %v543, %v539
        %v592 = vpack.c.b16 %v548, %v544
        %v593 = vpack.c.b16 %v549, %v545
        %v594 = vpack.c.b16 %v550, %v546
        %v595 = vpack.c.b16 %v551, %v547
        %v596 = vpack.c.b16 %v556, %v552
        %v597 = vpack.c.b16 %v557, %v553
        %v598 = vpack.c.b16 %v558, %v554
        %v599 = vpack.c.b16 %v559, %v555
        %v600 = vpack.c.b16 %v564, %v560
        %v601 = vpack.c.b16 %v565, %v561
        %v602 = vpack.c.b16 %v566, %v562
        %v603 = vpack.c.b16 %v567, %v563
        %v604 = vpack.c.b16 %v572, %v568
        %v605 = vpack.c.b16 %v573, %v569
        %v606 = vpack.c.b16 %v574, %v570
        %v607 = vpack.c.b16 %v575, %v571
        %v768 = vunpack.c.l.b16 %v342
        %v769 = vunpack.c.h.b16 %v342
        %v770 = vunpack.c.l.b16 %v343
        %v771 = vunpack.c.h.b16 %v343
        %v772 = vunpack.c.l.b16 %v344
        %v773 = vunpack.c.h.b16 %v344
        %v774 = vunpack.c.l.b16 %v345
        %v775 = vunpack.c.h.b16 %v345
        %v776 = vunpack.c.l.b16 %v346
        %v777 = vunpack.c.h.b16 %v346
        %v778 = vunpack.c.l.b16 %v347
        %v779 = vunpack.c.h.b16 %v347
        %v780 = vunpack.c.l.b16 %v348
        %v781 = vunpack.c.h.b16 %v348
        %v782 = vunpack.c.l.b16 %v349
        %v783 = vunpack.c.h.b16 %v349
        %v784 = vunpack.c.l.b16 %v350
        %v785 = vunpack.c.h.b16 %v350
        %v786 = vunpack.c.l.b16 %v351
        %v787 = vunpack.c.h.b16 %v351
        %v788 = vunpack.c.l.b16 %v352
        %v789 = vunpack.c.h.b16 %v352
        %v790 = vunpack.c.l.b16 %v353
        %v791 = vunpack.c.h.b16 %v353
        %v792 = vunpack.c.l.b16 %v354
        %v793 = vunpack.c.h.b16 %v354
        %v794 = vunpack.c.l.b16 %v355
        %v795 = vunpack.c.h.b16 %v355
        %v796 = vunpack.c.l.b16 %v356
        %v797 = vunpack.c.h.b16 %v356
        %v798 = vunpack.c.l.b16 %v357
        %v799 = vunpack.c.h.b16 %v357
        %v800 = vunpack.c.l.b16 %v358
        %v801 = vunpack.c.h.b16 %v358
        %v802 = vunpack.c.l.b16 %v359
        %v803 = vunpack.c.h.b16 %v359
        %v804 = vunpack.c.l.b16 %v360
        %v805 = vunpack.c.h.b16 %v360
        %v806 = vunpack.c.l.b16 %v361
        %v807 = vunpack.c.h.b16 %v361
        %v808 = vunpack.c.l.b16 %v362
        %v809 = vunpack.c.h.b16 %v362
        %v810 = vunpack.c.l.b16 %v363
        %v811 = vunpack.c.h.b16 %v363
        %v812 = vunpack.c.l.b16 %v364
        %v813 = vunpack.c.h.b16 %v364
        %v814 = vunpack.c.l.b16 %v365
        %v815 = vunpack.c.h.b16 %v365
        %v816 = vunpack.c.l.b16 %v366
        %v817 = vunpack.c.h.b16 %v366
        %v818 = vunpack.c.l.b16 %v367
        %v819 = vunpack.c.h.b16 %v367
        %v820 = vunpack.c.l.b16 %v368
        %v821 = vunpack.c.h.b16 %v368
        %v822 = vunpack.c.l.b16 %v369
        %v823 = vunpack.c.h.b16 %v369
        %v824 = vunpack.c.l.b16 %v370
        %v825 = vunpack.c.h.b16 %v370
        %v826 = vunpack.c.l.b16 %v371
        %v827 = vunpack.c.h.b16 %v371
        %v828 = vunpack.c.l.b16 %v372
        %v829 = vunpack.c.h.b16 %v372
        %v830 = vunpack.c.l.b16 %v373
        %v831 = vunpack.c.h.b16 %v373
        %v832 = vunpack.c.l.b16 %v374
        %v833 = vunpack.c.h.b16 %v374
        %v834 = vunpack.c.l.b16 %v375
        %v835 = vunpack.c.h.b16 %v375
        %v836 = vunpack.c.l.b16 %v376
        %v837 = vunpack.c.h.b16 %v376
        %v838 = vunpack.c.l.b16 %v377
        %v839 = vunpack.c.h.b16 %v377
        %v840 = vunpack.c.l.b16 %v378
        %v841 = vunpack.c.h.b16 %v378
        %v842 = vunpack.c.l.b16 %v379
        %v843 = vunpack.c.h.b16 %v379
        %v844 = vunpack.c.l.b16 %v380
        %v845 = vunpack.c.h.b16 %v380
        %v846 = vunpack.c.l.b16 %v381
        %v847 = vunpack.c.h.b16 %v381
        %v848 = vunpack.c.l.b16 %v382
        %v849 = vunpack.c.h.b16 %v382
        %v850 = vunpack.c.l.b16 %v383
        %v851 = vunpack.c.h.b16 %v383
        %v852 = vunpack.c.l.b16 %v384
        %v853 = vunpack.c.h.b16 %v384
        %v854 = vunpack.c.l.b16 %v385
        %v855 = vunpack.c.h.b16 %v385
        %v856 = vunpack.c.l.b16 %v386
        %v857 = vunpack.c.h.b16 %v386
        %v858 = vunpack.c.l.b16 %v387
        %v859 = vunpack.c.h.b16 %v387
        %v860 = vunpack.c.l.b16 %v388
        %v861 = vunpack.c.h.b16 %v388
        %v862 = vunpack.c.l.b16 %v389
        %v863 = vunpack.c.h.b16 %v389
        %v864 = vunpack.c.l.b16 %v390
        %v865 = vunpack.c.h.b16 %v390
        %v866 = vunpack.c.l.b16 %v391
        %v867 = vunpack.c.h.b16 %v391
        %v868 = vunpack.c.l.b16 %v392
        %v869 = vunpack.c.h.b16 %v392
        %v870 = vunpack.c.l.b16 %v393
        %v871 = vunpack.c.h.b16 %v393
        %v872 = vunpack.c.l.b16 %v394
        %v873 = vunpack.c.h.b16 %v394
        %v874 = vunpack.c.l.b16 %v395
        %v875 = vunpack.c.h.b16 %v395
        %v876 = vunpack.c.l.b16 %v396
        %v877 = vunpack.c.h.b16 %v396
        %v878 = vunpack.c.l.b16 %v397
        %v879 = vunpack.c.h.b16 %v397
        %v880 = vunpack.c.l.b16 %v398
        %v881 = vunpack.c.h.b16 %v398
        %v882 = vunpack.c.l.b16 %v399
        %v883 = vunpack.c.h.b16 %v399
        %v884 = vunpack.c.l.b16 %v400
        %v885 = vunpack.c.h.b16 %v400
        %v886 = vunpack.c.l.b16 %v401
        %v887 = vunpack.c.h.b16 %v401
        %v888 = vunpack.c.l.b16 %v402
        %v889 = vunpack.c.h.b16 %v402
        %v890 = vunpack.c.l.b16 %v403
        %v891 = vunpack.c.h.b16 %v403
        %v892 = vunpack.c.l.b16 %v404
        %v893 = vunpack.c.h.b16 %v404
        %v894 = vunpack.c.l.b16 %v405
        %v895 = vunpack.c.h.b16 %v405
        %v896 = vunpack.c.l.b16 %v406
        %v897 = vunpack.c.h.b16 %v406
        %v898 = vunpack.c.l.b16 %v407
        %v899 = vunpack.c.h.b16 %v407
        %v900 = vunpack.c.l.b16 %v408
        %v901 = vunpack.c.h.b16 %v408
        %v902 = vunpack.c.l.b16 %v409
        %v903 = vunpack.c.h.b16 %v409
        %v904 = vunpack.c.l.b16 %v410
        %v905 = vunpack.c.h.b16 %v410
        %v906 = vunpack.c.l.b16 %v411
        %v907 = vunpack.c.h.b16 %v411
        %v908 = vunpack.c.l.b16 %v412
        %v909 = vunpack.c.h.b16 %v412
        %v910 = vunpack.c.l.b16 %v413
        %v911 = vunpack.c.h.b16 %v413
        %v912 = vunpack.c.l.b16 %v414
        %v913 = vunpack.c.h.b16 %v414
        %v914 = vunpack.c.l.b16 %v415
        %v915 = vunpack.c.h.b16 %v415
        %v916 = vunpack.c.l.b16 %v416
        %v917 = vunpack.c.h.b16 %v416
        %v918 = vunpack.c.l.b16 %v417
        %v919 = vunpack.c.h.b16 %v417
        %v920 = vunpack.c.l.b16 %v418
        %v921 = vunpack.c.h.b16 %v418
        %v922 = vunpack.c.l.b16 %v419
        %v923 = vunpack.c.h.b16 %v419
        %v924 = vunpack.c.l.b16 %v420
        %v925 = vunpack.c.h.b16 %v420
        %v926 = vunpack.c.l.b16 %v421
        %v927 = vunpack.c.h.b16 %v421
        %v928 = vunpack.c.l.b16 %v422
        %v929 = vunpack.c.h.b16 %v422
        %v930 = vunpack.c.l.b16 %v423
        %v931 = vunpack.c.h.b16 %v423
        %v932 = vunpack.c.l.b16 %v424
        %v933 = vunpack.c.h.b16 %v424
        %v934 = vunpack.c.l.b16 %v425
        %v935 = vunpack.c.h.b16 %v425
        %v936 = vunpack.c.l.b16 %v426
        %v937 = vunpack.c.h.b16 %v426
        %v938 = vunpack.c.l.b16 %v427
        %v939 = vunpack.c.h.b16 %v427
        %v940 = vunpack.c.l.b16 %v428
        %v941 = vunpack.c.h.b16 %v428
        %v942 = vunpack.c.l.b16 %v429
        %v943 = vunpack.c.h.b16 %v429
        %v944 = vunpack.c.l.b16 %v430
        %v945 = vunpack.c.h.b16 %v430
        %v946 = vunpack.c.l.b16 %v431
        %v947 = vunpack.c.h.b16 %v431
        %v948 = vunpack.c.l.b16 %v432
        %v949 = vunpack.c.h.b16 %v432
        %v950 = vunpack.c.l.b16 %v433
        %v951 = vunpack.c.h.b16 %v433
        %v952 = vunpack.c.l.b16 %v434
        %v953 = vunpack.c.h.b16 %v434
        %v954 = vunpack.c.l.b16 %v435
        %v955 = vunpack.c.h.b16 %v435
        %v956 = vunpack.c.l.b16 %v436
        %v957 = vunpack.c.h.b16 %v436
        %v958 = vunpack.c.l.b16 %v437
        %v959 = vunpack.c.h.b16 %v437
        %v960 = vunpack.c.l.b16 %v438
        %v961 = vunpack.c.h.b16 %v438
        %v962 = vunpack.c.l.b16 %v439
        %v963 = vunpack.c.h.b16 %v439
        %v964 = vunpack.c.l.b16 %v440
        %v965 = vunpack.c.h.b16 %v440
        %v966 = vunpack.c.l.b16 %v441
        %v967 = vunpack.c.h.b16 %v441
        %v968 = vunpack.c.l.b16 %v442
        %v969 = vunpack.c.h.b16 %v442
        %v970 = vunpack.c.l.b16 %v443
        %v971 = vunpack.c.h.b16 %v443
        %v972 = vunpack.c.l.b16 %v444
        %v973 = vunpack.c.h.b16 %v444
        %v974 = vunpack.c.l.b16 %v445
        %v975 = vunpack.c.h.b16 %v445
        %v976 = vunpack.c.l.b16 %v446
        %v977 = vunpack.c.h.b16 %v446
        %v978 = vunpack.c.l.b16 %v447
        %v979 = vunpack.c.h.b16 %v447
        %v980 = vunpack.c.l.b16 %v448
        %v981 = vunpack.c.h.b16 %v448
        %v982 = vunpack.c.l.b16 %v449
        %v983 = vunpack.c.h.b16 %v449
        %v984 = vunpack.c.l.b16 %v450
        %v985 = vunpack.c.h.b16 %v450
        %v986 = vunpack.c.l.b16 %v451
        %v987 = vunpack.c.h.b16 %v451
        %v988 = vunpack.c.l.b16 %v452
        %v989 = vunpack.c.h.b16 %v452
        %v990 = vunpack.c.l.b16 %v453
        %v991 = vunpack.c.h.b16 %v453
        %v992 = vunpack.c.l.b16 %v454
        %v993 = vunpack.c.h.b16 %v454
        %v994 = vunpack.c.l.b16 %v455
        %v995 = vunpack.c.h.b16 %v455
        %v996 = vunpack.c.l.b16 %v456
        %v997 = vunpack.c.h.b16 %v456
        %v998 = vunpack.c.l.b16 %v457
        %v999 = vunpack.c.h.b16 %v457
        %v1000 = vunpack.c.l.b16 %v458
        %v1001 = vunpack.c.h.b16 %v458
        %v1002 = vunpack.c.l.b16 %v459
        %v1003 = vunpack.c.h.b16 %v459
        %v1004 = vunpack.c.l.b16 %v460
        %v1005 = vunpack.c.h.b16 %v460
        %v1006 = vunpack.c.l.b16 %v461
        %v1007 = vunpack.c.h.b16 %v461
        %v1008 = vunpack.c.l.b16 %v462
        %v1009 = vunpack.c.h.b16 %v462
        %v1010 = vunpack.c.l.b16 %v463
        %v1011 = vunpack.c.h.b16 %v463
        %v1012 = vunpack.c.l.b16 %v464
        %v1013 = vunpack.c.h.b16 %v464
        %v1014 = vunpack.c.l.b16 %v465
        %v1015 = vunpack.c.h.b16 %v465
        %v1016 = vunpack.c.l.b16 %v466
        %v1017 = vunpack.c.h.b16 %v466
        %v1018 = vunpack.c.l.b16 %v467
        %v1019 = vunpack.c.h.b16 %v467
        %v1020 = vunpack.c.l.b16 %v468
        %v1021 = vunpack.c.h.b16 %v468
        %v1022 = vunpack.c.l.b16 %v469
        %v1023 = vunpack.c.h.b16 %v469
        %v1024 = vpack.c.b16 %v772, %v768
        %v1025 = vpack.c.b16 %v773, %v769
        %v1026 = vpack.c.b16 %v774, %v770
        %v1027 = vpack.c.b16 %v775, %v771
        %v1028 = vpack.c.b16 %v780, %v776
        %v1029 = vpack.c.b16 %v781, %v777
        %v1030 = vpack.c.b16 %v782, %v778
        %v1031 = vpack.c.b16 %v783, %v779
        %v1032 = vpack.c.b16 %v788, %v784
        %v1033 = vpack.c.b16 %v789, %v785
        %v1034 = vpack.c.b16 %v790, %v786
        %v1035 = vpack.c.b16 %v791, %v787
        %v1036 = vpack.c.b16 %v796, %v792
        %v1037 = vpack.c.b16 %v797, %v793
        %v1038 = vpack.c.b16 %v798, %v794
        %v1039 = vpack.c.b16 %v799, %v795
        %v1040 = vpack.c.b16 %v804, %v800
        %v1041 = vpack.c.b16 %v805, %v801
        %v1042 = vpack.c.b16 %v806, %v802
        %v1043 = vpack.c.b16 %v807, %v803
        %v1044 = vpack.c.b16 %v812, %v808
        %v1045 = vpack.c.b16 %v813, %v809
        %v1046 = vpack.c.b16 %v814, %v810
        %v1047 = vpack.c.b16 %v815, %v811
        %v1048 = vpack.c.b16 %v820, %v816
        %v1049 = vpack.c.b16 %v821, %v817
        %v1050 = vpack.c.b16 %v822, %v818
        %v1051 = vpack.c.b16 %v823, %v819
        %v1052 = vpack.c.b16 %v828, %v824
        %v1053 = vpack.c.b16 %v829, %v825
        %v1054 = vpack.c.b16 %v830, %v826
        %v1055 = vpack.c.b16 %v831, %v827
        %v1056 = vpack.c.b16 %v836, %v832
        %v1057 = vpack.c.b16 %v837, %v833
        %v1058 = vpack.c.b16 %v838, %v834
        %v1059 = vpack.c.b16 %v839, %v835
        %v1060 = vpack.c.b16 %v844, %v840
        %v1061 = vpack.c.b16 %v845, %v841
        %v1062 = vpack.c.b16 %v846, %v842
        %v1063 = vpack.c.b16 %v847, %v843
        %v1064 = vpack.c.b16 %v852, %v848
        %v1065 = vpack.c.b16 %v853, %v849
        %v1066 = vpack.c.b16 %v854, %v850
        %v1067 = vpack.c.b16 %v855, %v851
        %v1068 = vpack.c.b16 %v860, %v856
        %v1069 = vpack.c.b16 %v861, %v857
        %v1070 = vpack.c.b16 %v862, %v858
        %v1071 = vpack.c.b16 %v863, %v859
        %v1072 = vpack.c.b16 %v868, %v864
        %v1073 = vpack.c.b16 %v869, %v865
        %v1074 = vpack.c.b16 %v870, %v866
        %v1075 = vpack.c.b16 %v871, %v867
        %v1076 = vpack.c.b16 %v876, %v872
        %v1077 = vpack.c.b16 %v877, %v873
        %v1078 = vpack.c.b16 %v878, %v874
        %v1079 = vpack.c.b16 %v879, %v875
        %v1080 = vpack.c.b16 %v884, %v880
        %v1081 = vpack.c.b16 %v885, %v881
        %v1082 = vpack.c.b16 %v886, %v882
        %v1083 = vpack.c.b16 %v887, %v883
        %v1084 = vpack.c.b16 %v892, %v888
        %v1085 = vpack.c.b16 %v893, %v889
        %v1086 = vpack.c.b16 %v894, %v890
        %v1087 = vpack.c.b16 %v895, %v891
        %v1088 = vpack.c.b16 %v900, %v896
        %v1089 = vpack.c.b16 %v901, %v897
        %v1090 = vpack.c.b16 %v902, %v898
        %v1091 = vpack.c.b16 %v903, %v899
        %v1092 = vpack.c.b16 %v908, %v904
        %v1093 = vpack.c.b16 %v909, %v905
        %v1094 = vpack.c.b16 %v910, %v906
        %v1095 = vpack.c.b16 %v911, %v907
        %v1096 = vpack.c.b16 %v916, %v912
        %v1097 = vpack.c.b16 %v917, %v913
        %v1098 = vpack.c.b16 %v918, %v914
        %v1099 = vpack.c.b16 %v919, %v915
        %v1100 = vpack.c.b16 %v924, %v920
        %v1101 = vpack.c.b16 %v925, %v921
        %v1102 = vpack.c.b16 %v926, %v922
        %v1103 = vpack.c.b16 %v927, %v923
        %v1104 = vpack.c.b16 %v932, %v928
        %v1105 = vpack.c.b16 %v933, %v929
        %v1106 = vpack.c.b16 %v934, %v930
        %v1107 = vpack.c.b16 %v935, %v931
        %v1108 = vpack.c.b16 %v940, %v936
        %v1109 = vpack.c.b16 %v941, %v937
        %v1110 = vpack.c.b16 %v942, %v938
        %v1111 = vpack.c.b16 %v943, %v939
        %v1112 = vpack.c.b16 %v948, %v944
        %v1113 = vpack.c.b16 %v949, %v945
        %v1114 = vpack.c.b16 %v950, %v946
        %v1115 = vpack.c.b16 %v951, %v947
        %v1116 = vpack.c.b16 %v956, %v952
        %v1117 = vpack.c.b16 %v957, %v953
        %v1118 = vpack.c.b16 %v958, %v954
        %v1119 = vpack.c.b16 %v959, %v955
        %v1120 = vpack.c.b16 %v964, %v960
        %v1121 = vpack.c.b16 %v965, %v961
        %v1122 = vpack.c.b16 %v966, %v962
        %v1123 = vpack.c.b16 %v967, %v963
        %v1124 = vpack.c.b16 %v972, %v968
        %v1125 = vpack.c.b16 %v973, %v969
        %v1126 = vpack.c.b16 %v974, %v970
        %v1127 = vpack.c.b16 %v975, %v971
        %v1128 = vpack.c.b16 %v980, %v976
        %v1129 = vpack.c.b16 %v981, %v977
        %v1130 = vpack.c.b16 %v982, %v978
        %v1131 = vpack.c.b16 %v983, %v979
        %v1132 = vpack.c.b16 %v988, %v984
        %v1133 = vpack.c.b16 %v989, %v985
        %v1134 = vpack.c.b16 %v990, %v986
        %v1135 = vpack.c.b16 %v991, %v987
        %v1136 = vpack.c.b16 %v996, %v992
        %v1137 = vpack.c.b16 %v997, %v993
        %v1138 = vpack.c.b16 %v998, %v994
        %v1139 = vpack.c.b16 %v999, %v995
        %v1140 = vpack.c.b16 %v1004, %v1000
        %v1141 = vpack.c.b16 %v1005, %v1001
        %v1142 = vpack.c.b16 %v1006, %v1002
        %v1143 = vpack.c.b16 %v1007, %v1003
        %v1144 = vpack.c.b16 %v1012, %v1008
        %v1145 = vpack.c.b16 %v1013, %v1009
        %v1146 = vpack.c.b16 %v1014, %v1010
        %v1147 = vpack.c.b16 %v1015, %v1011
        %v1148 = vpack.c.b16 %v1020, %v1016
        %v1149 = vpack.c.b16 %v1021, %v1017
        %v1150 = vpack.c.b16 %v1022, %v1018
        %v1151 = vpack.c.b16 %v1023, %v1019
        %1280 = vmatpush.bf16.msra.mxu0 %v1052
        %1281 = vmatpush.bf16.msra.mxu0 %v1048
        %1282 = vmatpush.bf16.msra.mxu0 %v1044
        %1283 = vmatpush.bf16.msra.mxu0 %v1040
        %1284 = vmatpush.bf16.msra.mxu0 %v1036
        %1285 = vmatpush.bf16.msra.mxu0 %v1032
        %1286 = vmatpush.bf16.msra.mxu0 %v1028
        %1287 = vmatpush.bf16.msra.mxu0 %v1024
        %1288 = vmatmul.bf16.gmra.mxu0 %v576
        %v1289 = vpop.f32.mrf.mxu0
        %v1290 = vadd.f32 %v472, %v1289
        %v1291 = vpop.f32.mrf.mxu0
        %v1292 = vadd.f32 %v472, %v1291
        %1293 = vmatmul.bf16.gmra.mxu0 %v580
        %v1294 = vpop.f32.mrf.mxu0
        %v1295 = vadd.f32 %v472, %v1294
        %v1296 = vpop.f32.mrf.mxu0
        %v1297 = vadd.f32 %v472, %v1296
        %1298 = vmatmul.bf16.gmra.mxu0 %v584
        %v1299 = vpop.f32.mrf.mxu0
        %v1300 = vadd.f32 %v472, %v1299
        %v1301 = vpop.f32.mrf.mxu0
        %v1302 = vadd.f32 %v472, %v1301
        %1303 = vmatmul.bf16.gmra.mxu0 %v588
        %v1304 = vpop.f32.mrf.mxu0
        %v1305 = vadd.f32 %v472, %v1304
        %v1306 = vpop.f32.mrf.mxu0
        %v1307 = vadd.f32 %v472, %v1306
        %1308 = vmatmul.bf16.gmra.mxu0 %v592
        %v1309 = vpop.f32.mrf.mxu0
        %v1310 = vadd.f32 %v472, %v1309
        %v1311 = vpop.f32.mrf.mxu0
        %v1312 = vadd.f32 %v472, %v1311
        %1313 = vmatmul.bf16.gmra.mxu0 %v596
        %v1314 = vpop.f32.mrf.mxu0
        %v1315 = vadd.f32 %v472, %v1314
        %v1316 = vpop.f32.mrf.mxu0
        %v1317 = vadd.f32 %v472, %v1316
        %1318 = vmatmul.bf16.gmra.mxu0 %v600
        %v1319 = vpop.f32.mrf.mxu0
        %v1320 = vadd.f32 %v472, %v1319
        %v1321 = vpop.f32.mrf.mxu0
        %v1322 = vadd.f32 %v472, %v1321
        %1323 = vmatmul.bf16.gmra.mxu0 %v604
        %v1324 = vpop.f32.mrf.mxu0
        %v1325 = vadd.f32 %v472, %v1324
        %v1326 = vpop.f32.mrf.mxu0
        %v1327 = vadd.f32 %v472, %v1326
        %1328 = vdwg.mxu0
        %1329 = vmatpush.bf16.msra.mxu0 %v1084
        %1330 = vmatpush.bf16.msra.mxu0 %v1080
        %1331 = vmatpush.bf16.msra.mxu0 %v1076
        %1332 = vmatpush.bf16.msra.mxu0 %v1072
        %1333 = vmatpush.bf16.msra.mxu0 %v1068
        %1334 = vmatpush.bf16.msra.mxu0 %v1064
        %1335 = vmatpush.bf16.msra.mxu0 %v1060
        %1336 = vmatpush.bf16.msra.mxu0 %v1056
        %1337 = vmatmul.bf16.gmra.mxu0 %v577
        %v1338 = vpop.f32.mrf.mxu0
        %v1339 = vadd.f32 %v1290, %v1338
        %v1340 = vpop.f32.mrf.mxu0
        %v1341 = vadd.f32 %v1292, %v1340
        %1342 = vmatmul.bf16.gmra.mxu0 %v581
        %v1343 = vpop.f32.mrf.mxu0
        %v1344 = vadd.f32 %v1295, %v1343
        %v1345 = vpop.f32.mrf.mxu0
        %v1346 = vadd.f32 %v1297, %v1345
        %1347 = vmatmul.bf16.gmra.mxu0 %v585
        %v1348 = vpop.f32.mrf.mxu0
        %v1349 = vadd.f32 %v1300, %v1348
        %v1350 = vpop.f32.mrf.mxu0
        %v1351 = vadd.f32 %v1302, %v1350
        %1352 = vmatmul.bf16.gmra.mxu0 %v589
        %v1353 = vpop.f32.mrf.mxu0
        %v1354 = vadd.f32 %v1305, %v1353
        %v1355 = vpop.f32.mrf.mxu0
        %v1356 = vadd.f32 %v1307, %v1355
        %1357 = vmatmul.bf16.gmra.mxu0 %v593
        %v1358 = vpop.f32.mrf.mxu0
        %v1359 = vadd.f32 %v1310, %v1358
        %v1360 = vpop.f32.mrf.mxu0
        %v1361 = vadd.f32 %v1312, %v1360
        %1362 = vmatmul.bf16.gmra.mxu0 %v597
        %v1363 = vpop.f32.mrf.mxu0
        %v1364 = vadd.f32 %v1315, %v1363
        %v1365 = vpop.f32.mrf.mxu0
        %v1366 = vadd.f32 %v1317, %v1365
        %1367 = vmatmul.bf16.gmra.mxu0 %v601
        %v1368 = vpop.f32.mrf.mxu0
        %v1369 = vadd.f32 %v1320, %v1368
        %v1370 = vpop.f32.mrf.mxu0
        %v1371 = vadd.f32 %v1322, %v1370
        %1372 = vmatmul.bf16.gmra.mxu0 %v605
        %v1373 = vpop.f32.mrf.mxu0
        %v1374 = vadd.f32 %v1325, %v1373
        %v1375 = vpop.f32.mrf.mxu0
        %v1376 = vadd.f32 %v1327, %v1375
        %1377 = vdwg.mxu0
        %1378 = vmatpush.bf16.msra.mxu0 %v1116
        %1379 = vmatpush.bf16.msra.mxu0 %v1112
        %1380 = vmatpush.bf16.msra.mxu0 %v1108
        %1381 = vmatpush.bf16.msra.mxu0 %v1104
        %1382 = vmatpush.bf16.msra.mxu0 %v1100
        %1383 = vmatpush.bf16.msra.mxu0 %v1096
        %1384 = vmatpush.bf16.msra.mxu0 %v1092
        %1385 = vmatpush.bf16.msra.mxu0 %v1088
        %1386 = vmatmul.bf16.gmra.mxu0 %v578
        %v1387 = vpop.f32.mrf.mxu0
        %v1388 = vadd.f32 %v1339, %v1387
        %v1389 = vpop.f32.mrf.mxu0
        %v1390 = vadd.f32 %v1341, %v1389
        %1391 = vmatmul.bf16.gmra.mxu0 %v582
        %v1392 = vpop.f32.mrf.mxu0
        %v1393 = vadd.f32 %v1344, %v1392
        %v1394 = vpop.f32.mrf.mxu0
        %v1395 = vadd.f32 %v1346, %v1394
        %1396 = vmatmul.bf16.gmra.mxu0 %v586
        %v1397 = vpop.f32.mrf.mxu0
        %v1398 = vadd.f32 %v1349, %v1397
        %v1399 = vpop.f32.mrf.mxu0
        %v1400 = vadd.f32 %v1351, %v1399
        %1401 = vmatmul.bf16.gmra.mxu0 %v590
        %v1402 = vpop.f32.mrf.mxu0
        %v1403 = vadd.f32 %v1354, %v1402
        %v1404 = vpop.f32.mrf.mxu0
        %v1405 = vadd.f32 %v1356, %v1404
        %1406 = vmatmul.bf16.gmra.mxu0 %v594
        %v1407 = vpop.f32.mrf.mxu0
        %v1408 = vadd.f32 %v1359, %v1407
        %v1409 = vpop.f32.mrf.mxu0
        %v1410 = vadd.f32 %v1361, %v1409
        %1411 = vmatmul.bf16.gmra.mxu0 %v598
        %v1412 = vpop.f32.mrf.mxu0
        %v1413 = vadd.f32 %v1364, %v1412
        %v1414 = vpop.f32.mrf.mxu0
        %v1415 = vadd.f32 %v1366, %v1414
        %1416 = vmatmul.bf16.gmra.mxu0 %v602
        %v1417 = vpop.f32.mrf.mxu0
        %v1418 = vadd.f32 %v1369, %v1417
        %v1419 = vpop.f32.mrf.mxu0
        %v1420 = vadd.f32 %v1371, %v1419
        %1421 = vmatmul.bf16.gmra.mxu0 %v606
        %v1422 = vpop.f32.mrf.mxu0
        %v1423 = vadd.f32 %v1374, %v1422
        %v1424 = vpop.f32.mrf.mxu0
        %v1425 = vadd.f32 %v1376, %v1424
        %1426 = vdwg.mxu0
        %1427 = vmatpush.bf16.msra.mxu0 %v1148
        %1428 = vmatpush.bf16.msra.mxu0 %v1144
        %1429 = vmatpush.bf16.msra.mxu0 %v1140
        %1430 = vmatpush.bf16.msra.mxu0 %v1136
        %1431 = vmatpush.bf16.msra.mxu0 %v1132
        %1432 = vmatpush.bf16.msra.mxu0 %v1128
        %1433 = vmatpush.bf16.msra.mxu0 %v1124
        %1434 = vmatpush.bf16.msra.mxu0 %v1120
        %1435 = vmatmul.bf16.gmra.mxu0 %v579
        %v1436 = vpop.f32.mrf.mxu0
        %v1437 = vadd.f32 %v1388, %v1436
        %v1438 = vpop.f32.mrf.mxu0
        %v1439 = vadd.f32 %v1390, %v1438
        %1440 = vmatmul.bf16.gmra.mxu0 %v583
        %v1441 = vpop.f32.mrf.mxu0
        %v1442 = vadd.f32 %v1393, %v1441
        %v1443 = vpop.f32.mrf.mxu0
        %v1444 = vadd.f32 %v1395, %v1443
        %1445 = vmatmul.bf16.gmra.mxu0 %v587
        %v1446 = vpop.f32.mrf.mxu0
        %v1447 = vadd.f32 %v1398, %v1446
        %v1448 = vpop.f32.mrf.mxu0
        %v1449 = vadd.f32 %v1400, %v1448
        %1450 = vmatmul.bf16.gmra.mxu0 %v591
        %v1451 = vpop.f32.mrf.mxu0
        %v1452 = vadd.f32 %v1403, %v1451
        %v1453 = vpop.f32.mrf.mxu0
        %v1454 = vadd.f32 %v1405, %v1453
        %1455 = vmatmul.bf16.gmra.mxu0 %v595
        %v1456 = vpop.f32.mrf.mxu0
        %v1457 = vadd.f32 %v1408, %v1456
        %v1458 = vpop.f32.mrf.mxu0
        %v1459 = vadd.f32 %v1410, %v1458
        %1460 = vmatmul.bf16.gmra.mxu0 %v599
        %v1461 = vpop.f32.mrf.mxu0
        %v1462 = vadd.f32 %v1413, %v1461
        %v1463 = vpop.f32.mrf.mxu0
        %v1464 = vadd.f32 %v1415, %v1463
        %1465 = vmatmul.bf16.gmra.mxu0 %v603
        %v1466 = vpop.f32.mrf.mxu0
        %v1467 = vadd.f32 %v1418, %v1466
        %v1468 = vpop.f32.mrf.mxu0
        %v1469 = vadd.f32 %v1420, %v1468
        %1470 = vmatmul.bf16.gmra.mxu0 %v607
        %v1471 = vpop.f32.mrf.mxu0
        %v1472 = vadd.f32 %v1423, %v1471
        %v1473 = vpop.f32.mrf.mxu0
        %v1474 = vadd.f32 %v1425, %v1473
        %1475 = vdwg.mxu0
        %1476 = vmatpush.bf16.msra.mxu0 %v1053
        %1477 = vmatpush.bf16.msra.mxu0 %v1049
        %1478 = vmatpush.bf16.msra.mxu0 %v1045
        %1479 = vmatpush.bf16.msra.mxu0 %v1041
        %1480 = vmatpush.bf16.msra.mxu0 %v1037
        %1481 = vmatpush.bf16.msra.mxu0 %v1033
        %1482 = vmatpush.bf16.msra.mxu0 %v1029
        %1483 = vmatpush.bf16.msra.mxu0 %v1025
        %1484 = vmatmul.bf16.gmra.mxu0 %v576
        %v1485 = vpop.f32.mrf.mxu0
        %v1486 = vadd.f32 %v473, %v1485
        %v1487 = vpop.f32.mrf.mxu0
        %v1488 = vadd.f32 %v473, %v1487
        %1489 = vmatmul.bf16.gmra.mxu0 %v580
        %v1490 = vpop.f32.mrf.mxu0
        %v1491 = vadd.f32 %v473, %v1490
        %v1492 = vpop.f32.mrf.mxu0
        %v1493 = vadd.f32 %v473, %v1492
        %1494 = vmatmul.bf16.gmra.mxu0 %v584
        %v1495 = vpop.f32.mrf.mxu0
        %v1496 = vadd.f32 %v473, %v1495
        %v1497 = vpop.f32.mrf.mxu0
        %v1498 = vadd.f32 %v473, %v1497
        %1499 = vmatmul.bf16.gmra.mxu0 %v588
        %v1500 = vpop.f32.mrf.mxu0
        %v1501 = vadd.f32 %v473, %v1500
        %v1502 = vpop.f32.mrf.mxu0
        %v1503 = vadd.f32 %v473, %v1502
        %1504 = vmatmul.bf16.gmra.mxu0 %v592
        %v1505 = vpop.f32.mrf.mxu0
        %v1506 = vadd.f32 %v473, %v1505
        %v1507 = vpop.f32.mrf.mxu0
        %v1508 = vadd.f32 %v473, %v1507
        %1509 = vmatmul.bf16.gmra.mxu0 %v596
        %v1510 = vpop.f32.mrf.mxu0
        %v1511 = vadd.f32 %v473, %v1510
        %v1512 = vpop.f32.mrf.mxu0
        %v1513 = vadd.f32 %v473, %v1512
        %1514 = vmatmul.bf16.gmra.mxu0 %v600
        %v1515 = vpop.f32.mrf.mxu0
        %v1516 = vadd.f32 %v473, %v1515
        %v1517 = vpop.f32.mrf.mxu0
        %v1518 = vadd.f32 %v473, %v1517
        %1519 = vmatmul.bf16.gmra.mxu0 %v604
        %v1520 = vpop.f32.mrf.mxu0
        %v1521 = vadd.f32 %v473, %v1520
        %v1522 = vpop.f32.mrf.mxu0
        %v1523 = vadd.f32 %v473, %v1522
        %1524 = vdwg.mxu0
        %1525 = vmatpush.bf16.msra.mxu0 %v1085
        %1526 = vmatpush.bf16.msra.mxu0 %v1081
        %1527 = vmatpush.bf16.msra.mxu0 %v1077
        %1528 = vmatpush.bf16.msra.mxu0 %v1073
        %1529 = vmatpush.bf16.msra.mxu0 %v1069
        %1530 = vmatpush.bf16.msra.mxu0 %v1065
        %1531 = vmatpush.bf16.msra.mxu0 %v1061
        %1532 = vmatpush.bf16.msra.mxu0 %v1057
        %1533 = vmatmul.bf16.gmra.mxu0 %v577
        %v1534 = vpop.f32.mrf.mxu0
        %v1535 = vadd.f32 %v1486, %v1534
        %v1536 = vpop.f32.mrf.mxu0
        %v1537 = vadd.f32 %v1488, %v1536
        %1538 = vmatmul.bf16.gmra.mxu0 %v581
        %v1539 = vpop.f32.mrf.mxu0
        %v1540 = vadd.f32 %v1491, %v1539
        %v1541 = vpop.f32.mrf.mxu0
        %v1542 = vadd.f32 %v1493, %v1541
        %1543 = vmatmul.bf16.gmra.mxu0 %v585
        %v1544 = vpop.f32.mrf.mxu0
        %v1545 = vadd.f32 %v1496, %v1544
        %v1546 = vpop.f32.mrf.mxu0
        %v1547 = vadd.f32 %v1498, %v1546
        %1548 = vmatmul.bf16.gmra.mxu0 %v589
        %v1549 = vpop.f32.mrf.mxu0
        %v1550 = vadd.f32 %v1501, %v1549
        %v1551 = vpop.f32.mrf.mxu0
        %v1552 = vadd.f32 %v1503, %v1551
        %1553 = vmatmul.bf16.gmra.mxu0 %v593
        %v1554 = vpop.f32.mrf.mxu0
        %v1555 = vadd.f32 %v1506, %v1554
        %v1556 = vpop.f32.mrf.mxu0
        %v1557 = vadd.f32 %v1508, %v1556
        %1558 = vmatmul.bf16.gmra.mxu0 %v597
        %v1559 = vpop.f32.mrf.mxu0
        %v1560 = vadd.f32 %v1511, %v1559
        %v1561 = vpop.f32.mrf.mxu0
        %v1562 = vadd.f32 %v1513, %v1561
        %1563 = vmatmul.bf16.gmra.mxu0 %v601
        %v1564 = vpop.f32.mrf.mxu0
        %v1565 = vadd.f32 %v1516, %v1564
        %v1566 = vpop.f32.mrf.mxu0
        %v1567 = vadd.f32 %v1518, %v1566
        %1568 = vmatmul.bf16.gmra.mxu0 %v605
        %v1569 = vpop.f32.mrf.mxu0
        %v1570 = vadd.f32 %v1521, %v1569
        %v1571 = vpop.f32.mrf.mxu0
        %v1572 = vadd.f32 %v1523, %v1571
        %1573 = vdwg.mxu0
        %1574 = vmatpush.bf16.msra.mxu0 %v1117
        %1575 = vmatpush.bf16.msra.mxu0 %v1113
        %1576 = vmatpush.bf16.msra.mxu0 %v1109
        %1577 = vmatpush.bf16.msra.mxu0 %v1105
        %1578 = vmatpush.bf16.msra.mxu0 %v1101
        %1579 = vmatpush.bf16.msra.mxu0 %v1097
        %1580 = vmatpush.bf16.msra.mxu0 %v1093
        %1581 = vmatpush.bf16.msra.mxu0 %v1089
        %1582 = vmatmul.bf16.gmra.mxu0 %v578
        %v1583 = vpop.f32.mrf.mxu0
        %v1584 = vadd.f32 %v1535, %v1583
        %v1585 = vpop.f32.mrf.mxu0
        %v1586 = vadd.f32 %v1537, %v1585
        %1587 = vmatmul.bf16.gmra.mxu0 %v582
        %v1588 = vpop.f32.mrf.mxu0
        %v1589 = vadd.f32 %v1540, %v1588
        %v1590 = vpop.f32.mrf.mxu0
        %v1591 = vadd.f32 %v1542, %v1590
        %1592 = vmatmul.bf16.gmra.mxu0 %v586
        %v1593 = vpop.f32.mrf.mxu0
        %v1594 = vadd.f32 %v1545, %v1593
        %v1595 = vpop.f32.mrf.mxu0
        %v1596 = vadd.f32 %v1547, %v1595
        %1597 = vmatmul.bf16.gmra.mxu0 %v590
        %v1598 = vpop.f32.mrf.mxu0
        %v1599 = vadd.f32 %v1550, %v1598
        %v1600 = vpop.f32.mrf.mxu0
        %v1601 = vadd.f32 %v1552, %v1600
        %1602 = vmatmul.bf16.gmra.mxu0 %v594
        %v1603 = vpop.f32.mrf.mxu0
        %v1604 = vadd.f32 %v1555, %v1603
        %v1605 = vpop.f32.mrf.mxu0
        %v1606 = vadd.f32 %v1557, %v1605
        %1607 = vmatmul.bf16.gmra.mxu0 %v598
        %v1608 = vpop.f32.mrf.mxu0
        %v1609 = vadd.f32 %v1560, %v1608
        %v1610 = vpop.f32.mrf.mxu0
        %v1611 = vadd.f32 %v1562, %v1610
        %1612 = vmatmul.bf16.gmra.mxu0 %v602
        %v1613 = vpop.f32.mrf.mxu0
        %v1614 = vadd.f32 %v1565, %v1613
        %v1615 = vpop.f32.mrf.mxu0
        %v1616 = vadd.f32 %v1567, %v1615
        %1617 = vmatmul.bf16.gmra.mxu0 %v606
        %v1618 = vpop.f32.mrf.mxu0
        %v1619 = vadd.f32 %v1570, %v1618
        %v1620 = vpop.f32.mrf.mxu0
        %v1621 = vadd.f32 %v1572, %v1620
        %1622 = vdwg.mxu0
        %1623 = vmatpush.bf16.msra.mxu0 %v1149
        %1624 = vmatpush.bf16.msra.mxu0 %v1145
        %1625 = vmatpush.bf16.msra.mxu0 %v1141
        %1626 = vmatpush.bf16.msra.mxu0 %v1137
        %1627 = vmatpush.bf16.msra.mxu0 %v1133
        %1628 = vmatpush.bf16.msra.mxu0 %v1129
        %1629 = vmatpush.bf16.msra.mxu0 %v1125
        %1630 = vmatpush.bf16.msra.mxu0 %v1121
        %1631 = vmatmul.bf16.gmra.mxu0 %v579
        %v1632 = vpop.f32.mrf.mxu0
        %v1633 = vadd.f32 %v1584, %v1632
        %v1634 = vpop.f32.mrf.mxu0
        %v1635 = vadd.f32 %v1586, %v1634
        %1636 = vmatmul.bf16.gmra.mxu0 %v583
        %v1637 = vpop.f32.mrf.mxu0
        %v1638 = vadd.f32 %v1589, %v1637
        %v1639 = vpop.f32.mrf.mxu0
        %v1640 = vadd.f32 %v1591, %v1639
        %1641 = vmatmul.bf16.gmra.mxu0 %v587
        %v1642 = vpop.f32.mrf.mxu0
        %v1643 = vadd.f32 %v1594, %v1642
        %v1644 = vpop.f32.mrf.mxu0
        %v1645 = vadd.f32 %v1596, %v1644
        %1646 = vmatmul.bf16.gmra.mxu0 %v591
        %v1647 = vpop.f32.mrf.mxu0
        %v1648 = vadd.f32 %v1599, %v1647
        %v1649 = vpop.f32.mrf.mxu0
        %v1650 = vadd.f32 %v1601, %v1649
        %1651 = vmatmul.bf16.gmra.mxu0 %v595
        %v1652 = vpop.f32.mrf.mxu0
        %v1653 = vadd.f32 %v1604, %v1652
        %v1654 = vpop.f32.mrf.mxu0
        %v1655 = vadd.f32 %v1606, %v1654
        %1656 = vmatmul.bf16.gmra.mxu0 %v599
        %v1657 = vpop.f32.mrf.mxu0
        %v1658 = vadd.f32 %v1609, %v1657
        %v1659 = vpop.f32.mrf.mxu0
        %v1660 = vadd.f32 %v1611, %v1659
        %1661 = vmatmul.bf16.gmra.mxu0 %v603
        %v1662 = vpop.f32.mrf.mxu0
        %v1663 = vadd.f32 %v1614, %v1662
        %v1664 = vpop.f32.mrf.mxu0
        %v1665 = vadd.f32 %v1616, %v1664
        %1666 = vmatmul.bf16.gmra.mxu0 %v607
        %v1667 = vpop.f32.mrf.mxu0
        %v1668 = vadd.f32 %v1619, %v1667
        %v1669 = vpop.f32.mrf.mxu0
        %v1670 = vadd.f32 %v1621, %v1669
        %1671 = vdwg.mxu0
        %1672 = vmatpush.bf16.msra.mxu0 %v1054
        %1673 = vmatpush.bf16.msra.mxu0 %v1050
        %1674 = vmatpush.bf16.msra.mxu0 %v1046
        %1675 = vmatpush.bf16.msra.mxu0 %v1042
        %1676 = vmatpush.bf16.msra.mxu0 %v1038
        %1677 = vmatpush.bf16.msra.mxu0 %v1034
        %1678 = vmatpush.bf16.msra.mxu0 %v1030
        %1679 = vmatpush.bf16.msra.mxu0 %v1026
        %1680 = vmatmul.bf16.gmra.mxu0 %v576
        %v1681 = vpop.f32.mrf.mxu0
        %v1682 = vadd.f32 %v474, %v1681
        %v1683 = vpop.f32.mrf.mxu0
        %v1684 = vadd.f32 %v474, %v1683
        %1685 = vmatmul.bf16.gmra.mxu0 %v580
        %v1686 = vpop.f32.mrf.mxu0
        %v1687 = vadd.f32 %v474, %v1686
        %v1688 = vpop.f32.mrf.mxu0
        %v1689 = vadd.f32 %v474, %v1688
        %1690 = vmatmul.bf16.gmra.mxu0 %v584
        %v1691 = vpop.f32.mrf.mxu0
        %v1692 = vadd.f32 %v474, %v1691
        %v1693 = vpop.f32.mrf.mxu0
        %v1694 = vadd.f32 %v474, %v1693
        %1695 = vmatmul.bf16.gmra.mxu0 %v588
        %v1696 = vpop.f32.mrf.mxu0
        %v1697 = vadd.f32 %v474, %v1696
        %v1698 = vpop.f32.mrf.mxu0
        %v1699 = vadd.f32 %v474, %v1698
        %1700 = vmatmul.bf16.gmra.mxu0 %v592
        %v1701 = vpop.f32.mrf.mxu0
        %v1702 = vadd.f32 %v474, %v1701
        %v1703 = vpop.f32.mrf.mxu0
        %v1704 = vadd.f32 %v474, %v1703
        %1705 = vmatmul.bf16.gmra.mxu0 %v596
        %v1706 = vpop.f32.mrf.mxu0
        %v1707 = vadd.f32 %v474, %v1706
        %v1708 = vpop.f32.mrf.mxu0
        %v1709 = vadd.f32 %v474, %v1708
        %1710 = vmatmul.bf16.gmra.mxu0 %v600
        %v1711 = vpop.f32.mrf.mxu0
        %v1712 = vadd.f32 %v474, %v1711
        %v1713 = vpop.f32.mrf.mxu0
        %v1714 = vadd.f32 %v474, %v1713
        %1715 = vmatmul.bf16.gmra.mxu0 %v604
        %v1716 = vpop.f32.mrf.mxu0
        %v1717 = vadd.f32 %v474, %v1716
        %v1718 = vpop.f32.mrf.mxu0
        %v1719 = vadd.f32 %v474, %v1718
        %1720 = vdwg.mxu0
        %1721 = vmatpush.bf16.msra.mxu0 %v1086
        %1722 = vmatpush.bf16.msra.mxu0 %v1082
        %1723 = vmatpush.bf16.msra.mxu0 %v1078
        %1724 = vmatpush.bf16.msra.mxu0 %v1074
        %1725 = vmatpush.bf16.msra.mxu0 %v1070
        %1726 = vmatpush.bf16.msra.mxu0 %v1066
        %1727 = vmatpush.bf16.msra.mxu0 %v1062
        %1728 = vmatpush.bf16.msra.mxu0 %v1058
        %1729 = vmatmul.bf16.gmra.mxu0 %v577
        %v1730 = vpop.f32.mrf.mxu0
        %v1731 = vadd.f32 %v1682, %v1730
        %v1732 = vpop.f32.mrf.mxu0
        %v1733 = vadd.f32 %v1684, %v1732
        %1734 = vmatmul.bf16.gmra.mxu0 %v581
        %v1735 = vpop.f32.mrf.mxu0
        %v1736 = vadd.f32 %v1687, %v1735
        %v1737 = vpop.f32.mrf.mxu0
        %v1738 = vadd.f32 %v1689, %v1737
        %1739 = vmatmul.bf16.gmra.mxu0 %v585
        %v1740 = vpop.f32.mrf.mxu0
        %v1741 = vadd.f32 %v1692, %v1740
        %v1742 = vpop.f32.mrf.mxu0
        %v1743 = vadd.f32 %v1694, %v1742
        %1744 = vmatmul.bf16.gmra.mxu0 %v589
        %v1745 = vpop.f32.mrf.mxu0
        %v1746 = vadd.f32 %v1697, %v1745
        %v1747 = vpop.f32.mrf.mxu0
        %v1748 = vadd.f32 %v1699, %v1747
        %1749 = vmatmul.bf16.gmra.mxu0 %v593
        %v1750 = vpop.f32.mrf.mxu0
        %v1751 = vadd.f32 %v1702, %v1750
        %v1752 = vpop.f32.mrf.mxu0
        %v1753 = vadd.f32 %v1704, %v1752
        %1754 = vmatmul.bf16.gmra.mxu0 %v597
        %v1755 = vpop.f32.mrf.mxu0
        %v1756 = vadd.f32 %v1707, %v1755
        %v1757 = vpop.f32.mrf.mxu0
        %v1758 = vadd.f32 %v1709, %v1757
        %1759 = vmatmul.bf16.gmra.mxu0 %v601
        %v1760 = vpop.f32.mrf.mxu0
        %v1761 = vadd.f32 %v1712, %v1760
        %v1762 = vpop.f32.mrf.mxu0
        %v1763 = vadd.f32 %v1714, %v1762
        %1764 = vmatmul.bf16.gmra.mxu0 %v605
        %v1765 = vpop.f32.mrf.mxu0
        %v1766 = vadd.f32 %v1717, %v1765
        %v1767 = vpop.f32.mrf.mxu0
        %v1768 = vadd.f32 %v1719, %v1767
        %1769 = vdwg.mxu0
        %1770 = vmatpush.bf16.msra.mxu0 %v1118
        %1771 = vmatpush.bf16.msra.mxu0 %v1114
        %1772 = vmatpush.bf16.msra.mxu0 %v1110
        %1773 = vmatpush.bf16.msra.mxu0 %v1106
        %1774 = vmatpush.bf16.msra.mxu0 %v1102
        %1775 = vmatpush.bf16.msra.mxu0 %v1098
        %1776 = vmatpush.bf16.msra.mxu0 %v1094
        %1777 = vmatpush.bf16.msra.mxu0 %v1090
        %1778 = vmatmul.bf16.gmra.mxu0 %v578
        %v1779 = vpop.f32.mrf.mxu0
        %v1780 = vadd.f32 %v1731, %v1779
        %v1781 = vpop.f32.mrf.mxu0
        %v1782 = vadd.f32 %v1733, %v1781
        %1783 = vmatmul.bf16.gmra.mxu0 %v582
        %v1784 = vpop.f32.mrf.mxu0
        %v1785 = vadd.f32 %v1736, %v1784
        %v1786 = vpop.f32.mrf.mxu0
        %v1787 = vadd.f32 %v1738, %v1786
        %1788 = vmatmul.bf16.gmra.mxu0 %v586
        %v1789 = vpop.f32.mrf.mxu0
        %v1790 = vadd.f32 %v1741, %v1789
        %v1791 = vpop.f32.mrf.mxu0
        %v1792 = vadd.f32 %v1743, %v1791
        %1793 = vmatmul.bf16.gmra.mxu0 %v590
        %v1794 = vpop.f32.mrf.mxu0
        %v1795 = vadd.f32 %v1746, %v1794
        %v1796 = vpop.f32.mrf.mxu0
        %v1797 = vadd.f32 %v1748, %v1796
        %1798 = vmatmul.bf16.gmra.mxu0 %v594
        %v1799 = vpop.f32.mrf.mxu0
        %v1800 = vadd.f32 %v1751, %v1799
        %v1801 = vpop.f32.mrf.mxu0
        %v1802 = vadd.f32 %v1753, %v1801
        %1803 = vmatmul.bf16.gmra.mxu0 %v598
        %v1804 = vpop.f32.mrf.mxu0
        %v1805 = vadd.f32 %v1756, %v1804
        %v1806 = vpop.f32.mrf.mxu0
        %v1807 = vadd.f32 %v1758, %v1806
        %1808 = vmatmul.bf16.gmra.mxu0 %v602
        %v1809 = vpop.f32.mrf.mxu0
        %v1810 = vadd.f32 %v1761, %v1809
        %v1811 = vpop.f32.mrf.mxu0
        %v1812 = vadd.f32 %v1763, %v1811
        %1813 = vmatmul.bf16.gmra.mxu0 %v606
        %v1814 = vpop.f32.mrf.mxu0
        %v1815 = vadd.f32 %v1766, %v1814
        %v1816 = vpop.f32.mrf.mxu0
        %v1817 = vadd.f32 %v1768, %v1816
        %1818 = vdwg.mxu0
        %1819 = vmatpush.bf16.msra.mxu0 %v1150
        %1820 = vmatpush.bf16.msra.mxu0 %v1146
        %1821 = vmatpush.bf16.msra.mxu0 %v1142
        %1822 = vmatpush.bf16.msra.mxu0 %v1138
        %1823 = vmatpush.bf16.msra.mxu0 %v1134
        %1824 = vmatpush.bf16.msra.mxu0 %v1130
        %1825 = vmatpush.bf16.msra.mxu0 %v1126
        %1826 = vmatpush.bf16.msra.mxu0 %v1122
        %1827 = vmatmul.bf16.gmra.mxu0 %v579
        %v1828 = vpop.f32.mrf.mxu0
        %v1829 = vadd.f32 %v1780, %v1828
        %v1830 = vpop.f32.mrf.mxu0
        %v1831 = vadd.f32 %v1782, %v1830
        %1832 = vmatmul.bf16.gmra.mxu0 %v583
        %v1833 = vpop.f32.mrf.mxu0
        %v1834 = vadd.f32 %v1785, %v1833
        %v1835 = vpop.f32.mrf.mxu0
        %v1836 = vadd.f32 %v1787, %v1835
        %1837 = vmatmul.bf16.gmra.mxu0 %v587
        %v1838 = vpop.f32.mrf.mxu0
        %v1839 = vadd.f32 %v1790, %v1838
        %v1840 = vpop.f32.mrf.mxu0
        %v1841 = vadd.f32 %v1792, %v1840
        %1842 = vmatmul.bf16.gmra.mxu0 %v591
        %v1843 = vpop.f32.mrf.mxu0
        %v1844 = vadd.f32 %v1795, %v1843
        %v1845 = vpop.f32.mrf.mxu0
        %v1846 = vadd.f32 %v1797, %v1845
        %1847 = vmatmul.bf16.gmra.mxu0 %v595
        %v1848 = vpop.f32.mrf.mxu0
        %v1849 = vadd.f32 %v1800, %v1848
        %v1850 = vpop.f32.mrf.mxu0
        %v1851 = vadd.f32 %v1802, %v1850
        %1852 = vmatmul.bf16.gmra.mxu0 %v599
        %v1853 = vpop.f32.mrf.mxu0
        %v1854 = vadd.f32 %v1805, %v1853
        %v1855 = vpop.f32.mrf.mxu0
        %v1856 = vadd.f32 %v1807, %v1855
        %1857 = vmatmul.bf16.gmra.mxu0 %v603
        %v1858 = vpop.f32.mrf.mxu0
        %v1859 = vadd.f32 %v1810, %v1858
        %v1860 = vpop.f32.mrf.mxu0
        %v1861 = vadd.f32 %v1812, %v1860
        %1862 = vmatmul.bf16.gmra.mxu0 %v607
        %v1863 = vpop.f32.mrf.mxu0
        %v1864 = vadd.f32 %v1815, %v1863
        %v1865 = vpop.f32.mrf.mxu0
        %v1866 = vadd.f32 %v1817, %v1865
        %1867 = vdwg.mxu0
        %1868 = vmatpush.bf16.msra.mxu0 %v1055
        %1869 = vmatpush.bf16.msra.mxu0 %v1051
        %1870 = vmatpush.bf16.msra.mxu0 %v1047
        %1871 = vmatpush.bf16.msra.mxu0 %v1043
        %1872 = vmatpush.bf16.msra.mxu0 %v1039
        %1873 = vmatpush.bf16.msra.mxu0 %v1035
        %1874 = vmatpush.bf16.msra.mxu0 %v1031
        %1875 = vmatpush.bf16.msra.mxu0 %v1027
        %1876 = vmatmul.bf16.gmra.mxu0 %v576
        %v1877 = vpop.f32.mrf.mxu0
        %v1878 = vadd.f32 %v475, %v1877
        %v1879 = vpop.f32.mrf.mxu0
        %v1880 = vadd.f32 %v475, %v1879
        %1881 = vmatmul.bf16.gmra.mxu0 %v580
        %v1882 = vpop.f32.mrf.mxu0
        %v1883 = vadd.f32 %v475, %v1882
        %v1884 = vpop.f32.mrf.mxu0
        %v1885 = vadd.f32 %v475, %v1884
        %1886 = vmatmul.bf16.gmra.mxu0 %v584
        %v1887 = vpop.f32.mrf.mxu0
        %v1888 = vadd.f32 %v475, %v1887
        %v1889 = vpop.f32.mrf.mxu0
        %v1890 = vadd.f32 %v475, %v1889
        %1891 = vmatmul.bf16.gmra.mxu0 %v588
        %v1892 = vpop.f32.mrf.mxu0
        %v1893 = vadd.f32 %v475, %v1892
        %v1894 = vpop.f32.mrf.mxu0
        %v1895 = vadd.f32 %v475, %v1894
        %1896 = vmatmul.bf16.gmra.mxu0 %v592
        %v1897 = vpop.f32.mrf.mxu0
        %v1898 = vadd.f32 %v475, %v1897
        %v1899 = vpop.f32.mrf.mxu0
        %v1900 = vadd.f32 %v475, %v1899
        %1901 = vmatmul.bf16.gmra.mxu0 %v596
        %v1902 = vpop.f32.mrf.mxu0
        %v1903 = vadd.f32 %v475, %v1902
        %v1904 = vpop.f32.mrf.mxu0
        %v1905 = vadd.f32 %v475, %v1904
        %1906 = vmatmul.bf16.gmra.mxu0 %v600
        %v1907 = vpop.f32.mrf.mxu0
        %v1908 = vadd.f32 %v475, %v1907
        %v1909 = vpop.f32.mrf.mxu0
        %v1910 = vadd.f32 %v475, %v1909
        %1911 = vmatmul.bf16.gmra.mxu0 %v604
        %v1912 = vpop.f32.mrf.mxu0
        %v1913 = vadd.f32 %v475, %v1912
        %v1914 = vpop.f32.mrf.mxu0
        %v1915 = vadd.f32 %v475, %v1914
        %1916 = vdwg.mxu0
        %1917 = vmatpush.bf16.msra.mxu0 %v1087
        %1918 = vmatpush.bf16.msra.mxu0 %v1083
        %1919 = vmatpush.bf16.msra.mxu0 %v1079
        %1920 = vmatpush.bf16.msra.mxu0 %v1075
        %1921 = vmatpush.bf16.msra.mxu0 %v1071
        %1922 = vmatpush.bf16.msra.mxu0 %v1067
        %1923 = vmatpush.bf16.msra.mxu0 %v1063
        %1924 = vmatpush.bf16.msra.mxu0 %v1059
        %1925 = vmatmul.bf16.gmra.mxu0 %v577
        %v1926 = vpop.f32.mrf.mxu0
        %v1927 = vadd.f32 %v1878, %v1926
        %v1928 = vpop.f32.mrf.mxu0
        %v1929 = vadd.f32 %v1880, %v1928
        %1930 = vmatmul.bf16.gmra.mxu0 %v581
        %v1931 = vpop.f32.mrf.mxu0
        %v1932 = vadd.f32 %v1883, %v1931
        %v1933 = vpop.f32.mrf.mxu0
        %v1934 = vadd.f32 %v1885, %v1933
        %1935 = vmatmul.bf16.gmra.mxu0 %v585
        %v1936 = vpop.f32.mrf.mxu0
        %v1937 = vadd.f32 %v1888, %v1936
        %v1938 = vpop.f32.mrf.mxu0
        %v1939 = vadd.f32 %v1890, %v1938
        %1940 = vmatmul.bf16.gmra.mxu0 %v589
        %v1941 = vpop.f32.mrf.mxu0
        %v1942 = vadd.f32 %v1893, %v1941
        %v1943 = vpop.f32.mrf.mxu0
        %v1944 = vadd.f32 %v1895, %v1943
        %1945 = vmatmul.bf16.gmra.mxu0 %v593
        %v1946 = vpop.f32.mrf.mxu0
        %v1947 = vadd.f32 %v1898, %v1946
        %v1948 = vpop.f32.mrf.mxu0
        %v1949 = vadd.f32 %v1900, %v1948
        %1950 = vmatmul.bf16.gmra.mxu0 %v597
        %v1951 = vpop.f32.mrf.mxu0
        %v1952 = vadd.f32 %v1903, %v1951
        %v1953 = vpop.f32.mrf.mxu0
        %v1954 = vadd.f32 %v1905, %v1953
        %1955 = vmatmul.bf16.gmra.mxu0 %v601
        %v1956 = vpop.f32.mrf.mxu0
        %v1957 = vadd.f32 %v1908, %v1956
        %v1958 = vpop.f32.mrf.mxu0
        %v1959 = vadd.f32 %v1910, %v1958
        %1960 = vmatmul.bf16.gmra.mxu0 %v605
        %v1961 = vpop.f32.mrf.mxu0
        %v1962 = vadd.f32 %v1913, %v1961
        %v1963 = vpop.f32.mrf.mxu0
        %v1964 = vadd.f32 %v1915, %v1963
        %1965 = vdwg.mxu0
        %1966 = vmatpush.bf16.msra.mxu0 %v1119
        %1967 = vmatpush.bf16.msra.mxu0 %v1115
        %1968 = vmatpush.bf16.msra.mxu0 %v1111
        %1969 = vmatpush.bf16.msra.mxu0 %v1107
        %1970 = vmatpush.bf16.msra.mxu0 %v1103
        %1971 = vmatpush.bf16.msra.mxu0 %v1099
        %1972 = vmatpush.bf16.msra.mxu0 %v1095
        %1973 = vmatpush.bf16.msra.mxu0 %v1091
        %1974 = vmatmul.bf16.gmra.mxu0 %v578
        %v1975 = vpop.f32.mrf.mxu0
        %v1976 = vadd.f32 %v1927, %v1975
        %v1977 = vpop.f32.mrf.mxu0
        %v1978 = vadd.f32 %v1929, %v1977
        %1979 = vmatmul.bf16.gmra.mxu0 %v582
        %v1980 = vpop.f32.mrf.mxu0
        %v1981 = vadd.f32 %v1932, %v1980
        %v1982 = vpop.f32.mrf.mxu0
        %v1983 = vadd.f32 %v1934, %v1982
        %1984 = vmatmul.bf16.gmra.mxu0 %v586
        %v1985 = vpop.f32.mrf.mxu0
        %v1986 = vadd.f32 %v1937, %v1985
        %v1987 = vpop.f32.mrf.mxu0
        %v1988 = vadd.f32 %v1939, %v1987
        %1989 = vmatmul.bf16.gmra.mxu0 %v590
        %v1990 = vpop.f32.mrf.mxu0
        %v1991 = vadd.f32 %v1942, %v1990
        %v1992 = vpop.f32.mrf.mxu0
        %v1993 = vadd.f32 %v1944, %v1992
        %1994 = vmatmul.bf16.gmra.mxu0 %v594
        %v1995 = vpop.f32.mrf.mxu0
        %v1996 = vadd.f32 %v1947, %v1995
        %v1997 = vpop.f32.mrf.mxu0
        %v1998 = vadd.f32 %v1949, %v1997
        %1999 = vmatmul.bf16.gmra.mxu0 %v598
        %v2000 = vpop.f32.mrf.mxu0
        %v2001 = vadd.f32 %v1952, %v2000
        %v2002 = vpop.f32.mrf.mxu0
        %v2003 = vadd.f32 %v1954, %v2002
        %2004 = vmatmul.bf16.gmra.mxu0 %v602
        %v2005 = vpop.f32.mrf.mxu0
        %v2006 = vadd.f32 %v1957, %v2005
        %v2007 = vpop.f32.mrf.mxu0
        %v2008 = vadd.f32 %v1959, %v2007
        %2009 = vmatmul.bf16.gmra.mxu0 %v606
        %v2010 = vpop.f32.mrf.mxu0
        %v2011 = vadd.f32 %v1962, %v2010
        %v2012 = vpop.f32.mrf.mxu0
        %v2013 = vadd.f32 %v1964, %v2012
        %2014 = vdwg.mxu0
        %2015 = vmatpush.bf16.msra.mxu0 %v1151
        %2016 = vmatpush.bf16.msra.mxu0 %v1147
        %2017 = vmatpush.bf16.msra.mxu0 %v1143
        %2018 = vmatpush.bf16.msra.mxu0 %v1139
        %2019 = vmatpush.bf16.msra.mxu0 %v1135
        %2020 = vmatpush.bf16.msra.mxu0 %v1131
        %2021 = vmatpush.bf16.msra.mxu0 %v1127
        %2022 = vmatpush.bf16.msra.mxu0 %v1123
        %2023 = vmatmul.bf16.gmra.mxu0 %v579
        %v2024 = vpop.f32.mrf.mxu0
        %v2025 = vadd.f32 %v1976, %v2024
        %v2026 = vpop.f32.mrf.mxu0
        %v2027 = vadd.f32 %v1978, %v2026
        %2028 = vmatmul.bf16.gmra.mxu0 %v583
        %v2029 = vpop.f32.mrf.mxu0
        %v2030 = vadd.f32 %v1981, %v2029
        %v2031 = vpop.f32.mrf.mxu0
        %v2032 = vadd.f32 %v1983, %v2031
        %2033 = vmatmul.bf16.gmra.mxu0 %v587
        %v2034 = vpop.f32.mrf.mxu0
        %v2035 = vadd.f32 %v1986, %v2034
        %v2036 = vpop.f32.mrf.mxu0
        %v2037 = vadd.f32 %v1988, %v2036
        %2038 = vmatmul.bf16.gmra.mxu0 %v591
        %v2039 = vpop.f32.mrf.mxu0
        %v2040 = vadd.f32 %v1991, %v2039
        %v2041 = vpop.f32.mrf.mxu0
        %v2042 = vadd.f32 %v1993, %v2041
        %2043 = vmatmul.bf16.gmra.mxu0 %v595
        %v2044 = vpop.f32.mrf.mxu0
        %v2045 = vadd.f32 %v1996, %v2044
        %v2046 = vpop.f32.mrf.mxu0
        %v2047 = vadd.f32 %v1998, %v2046
        %2048 = vmatmul.bf16.gmra.mxu0 %v599
        %v2049 = vpop.f32.mrf.mxu0
        %v2050 = vadd.f32 %v2001, %v2049
        %v2051 = vpop.f32.mrf.mxu0
        %v2052 = vadd.f32 %v2003, %v2051
        %2053 = vmatmul.bf16.gmra.mxu0 %v603
        %v2054 = vpop.f32.mrf.mxu0
        %v2055 = vadd.f32 %v2006, %v2054
        %v2056 = vpop.f32.mrf.mxu0
        %v2057 = vadd.f32 %v2008, %v2056
        %2058 = vmatmul.bf16.gmra.mxu0 %v607
        %v2059 = vpop.f32.mrf.mxu0
        %v2060 = vadd.f32 %v2011, %v2059
        %v2061 = vpop.f32.mrf.mxu0
        %v2062 = vadd.f32 %v2013, %v2061
        %2063 = vdwg.mxu0
        %v2064 = vmax.f32 %v1437, 0.0
        %v2065 = vmax.f32 %v1633, 0.0
        %v2066 = vmax.f32 %v1829, 0.0
        %v2067 = vmax.f32 %v2025, 0.0
        %v2068 = vmax.f32 %v1439, 0.0
        %v2069 = vmax.f32 %v1635, 0.0
        %v2070 = vmax.f32 %v1831, 0.0
        %v2071 = vmax.f32 %v2027, 0.0
        %v2072 = vmax.f32 %v1442, 0.0
        %v2073 = vmax.f32 %v1638, 0.0
        %v2074 = vmax.f32 %v1834, 0.0
        %v2075 = vmax.f32 %v2030, 0.0
        %v2076 = vmax.f32 %v1444, 0.0
        %v2077 = vmax.f32 %v1640, 0.0
        %v2078 = vmax.f32 %v1836, 0.0
        %v2079 = vmax.f32 %v2032, 0.0
        %v2080 = vmax.f32 %v1447, 0.0
        %v2081 = vmax.f32 %v1643, 0.0
        %v2082 = vmax.f32 %v1839, 0.0
        %v2083 = vmax.f32 %v2035, 0.0
        %v2084 = vmax.f32 %v1449, 0.0
        %v2085 = vmax.f32 %v1645, 0.0
        %v2086 = vmax.f32 %v1841, 0.0
        %v2087 = vmax.f32 %v2037, 0.0
        %v2088 = vmax.f32 %v1452, 0.0
        %v2089 = vmax.f32 %v1648, 0.0
        %v2090 = vmax.f32 %v1844, 0.0
        %v2091 = vmax.f32 %v2040, 0.0
        %v2092 = vmax.f32 %v1454, 0.0
        %v2093 = vmax.f32 %v1650, 0.0
        %v2094 = vmax.f32 %v1846, 0.0
        %v2095 = vmax.f32 %v2042, 0.0
        %v2096 = vmax.f32 %v1457, 0.0
        %v2097 = vmax.f32 %v1653, 0.0
        %v2098 = vmax.f32 %v1849, 0.0
        %v2099 = vmax.f32 %v2045, 0.0
        %v2100 = vmax.f32 %v1459, 0.0
        %v2101 = vmax.f32 %v1655, 0.0
        %v2102 = vmax.f32 %v1851, 0.0
        %v2103 = vmax.f32 %v2047, 0.0
        %v2104 = vmax.f32 %v1462, 0.0
        %v2105 = vmax.f32 %v1658, 0.0
        %v2106 = vmax.f32 %v1854, 0.0
        %v2107 = vmax.f32 %v2050, 0.0
        %v2108 = vmax.f32 %v1464, 0.0
        %v2109 = vmax.f32 %v1660, 0.0
        %v2110 = vmax.f32 %v1856, 0.0
        %v2111 = vmax.f32 %v2052, 0.0
        %v2112 = vmax.f32 %v1467, 0.0
        %v2113 = vmax.f32 %v1663, 0.0
        %v2114 = vmax.f32 %v1859, 0.0
        %v2115 = vmax.f32 %v2055, 0.0
        %v2116 = vmax.f32 %v1469, 0.0
        %v2117 = vmax.f32 %v1665, 0.0
        %v2118 = vmax.f32 %v1861, 0.0
        %v2119 = vmax.f32 %v2057, 0.0
        %v2120 = vmax.f32 %v1472, 0.0
        %v2121 = vmax.f32 %v1668, 0.0
        %v2122 = vmax.f32 %v1864, 0.0
        %v2123 = vmax.f32 %v2060, 0.0
        %v2124 = vmax.f32 %v1474, 0.0
        %v2125 = vmax.f32 %v1670, 0.0
        %v2126 = vmax.f32 %v1866, 0.0
        %v2127 = vmax.f32 %v2062, 0.0
        %v2128 = vpack.c.bf16 %v2068, %v2064
        %v2129 = vpack.c.bf16 %v2069, %v2065
        %v2130 = vpack.c.bf16 %v2070, %v2066
        %v2131 = vpack.c.bf16 %v2071, %v2067
        %v2132 = vpack.c.bf16 %v2076, %v2072
        %v2133 = vpack.c.bf16 %v2077, %v2073
        %v2134 = vpack.c.bf16 %v2078, %v2074
        %v2135 = vpack.c.bf16 %v2079, %v2075
        %v2136 = vpack.c.bf16 %v2084, %v2080
        %v2137 = vpack.c.bf16 %v2085, %v2081
        %v2138 = vpack.c.bf16 %v2086, %v2082
        %v2139 = vpack.c.bf16 %v2087, %v2083
        %v2140 = vpack.c.bf16 %v2092, %v2088
        %v2141 = vpack.c.bf16 %v2093, %v2089
        %v2142 = vpack.c.bf16 %v2094, %v2090
        %v2143 = vpack.c.bf16 %v2095, %v2091
        %v2144 = vpack.c.bf16 %v2100, %v2096
        %v2145 = vpack.c.bf16 %v2101, %v2097
        %v2146 = vpack.c.bf16 %v2102, %v2098
        %v2147 = vpack.c.bf16 %v2103, %v2099
        %v2148 = vpack.c.bf16 %v2108, %v2104
        %v2149 = vpack.c.bf16 %v2109, %v2105
        %v2150 = vpack.c.bf16 %v2110, %v2106
        %v2151 = vpack.c.bf16 %v2111, %v2107
        %v2152 = vpack.c.bf16 %v2116, %v2112
        %v2153 = vpack.c.bf16 %v2117, %v2113
        %v2154 = vpack.c.bf16 %v2118, %v2114
        %v2155 = vpack.c.bf16 %v2119, %v2115
        %v2156 = vpack.c.bf16 %v2124, %v2120
        %v2157 = vpack.c.bf16 %v2125, %v2121
        %v2158 = vpack.c.bf16 %v2126, %v2122
        %v2159 = vpack.c.bf16 %v2127, %v2123
        %v2160 = vld [vmem:[#allocation8] sm:$0xff]
        %v2161 = vld [vmem:[#allocation8 + $0x8] sm:$0xff]
        %v2162 = vld [vmem:[#allocation8 + $0x10] sm:$0xff]
        %v2163 = vld [vmem:[#allocation8 + $0x18] sm:$0xff]
        %v2164 = vld [vmem:[#allocation8 + $0x20] sm:$0xff]
        %v2165 = vld [vmem:[#allocation8 + $0x28] sm:$0xff]
        %v2166 = vld [vmem:[#allocation8 + $0x30] sm:$0xff]
        %v2167 = vld [vmem:[#allocation8 + $0x38] sm:$0xff]
        %v2168 = vld [vmem:[#allocation8 + $0x40] sm:$0xff]
        %v2169 = vld [vmem:[#allocation8 + $0x48] sm:$0xff]
        %v2170 = vld [vmem:[#allocation8 + $0x50] sm:$0xff]
        %v2171 = vld [vmem:[#allocation8 + $0x58] sm:$0xff]
        %v2172 = vld [vmem:[#allocation8 + $0x60] sm:$0xff]
        %v2173 = vld [vmem:[#allocation8 + $0x68] sm:$0xff]
        %v2174 = vld [vmem:[#allocation8 + $0x70] sm:$0xff]
        %v2175 = vld [vmem:[#allocation8 + $0x78] sm:$0xff]
        %v2176 = vld [vmem:[#allocation8 + $0x80] sm:$0xff]
        %v2177 = vld [vmem:[#allocation8 + $0x88] sm:$0xff]
        %v2178 = vld [vmem:[#allocation8 + $0x90] sm:$0xff]
        %v2179 = vld [vmem:[#allocation8 + $0x98] sm:$0xff]
        %v2180 = vld [vmem:[#allocation8 + $0xa0] sm:$0xff]
        %v2181 = vld [vmem:[#allocation8 + $0xa8] sm:$0xff]
        %v2182 = vld [vmem:[#allocation8 + $0xb0] sm:$0xff]
        %v2183 = vld [vmem:[#allocation8 + $0xb8] sm:$0xff]
        %v2184 = vld [vmem:[#allocation8 + $0xc0] sm:$0xff]
        %v2185 = vld [vmem:[#allocation8 + $0xc8] sm:$0xff]
        %v2186 = vld [vmem:[#allocation8 + $0xd0] sm:$0xff]
        %v2187 = vld [vmem:[#allocation8 + $0xd8] sm:$0xff]
        %v2188 = vld [vmem:[#allocation8 + $0xe0] sm:$0xff]
        %v2189 = vld [vmem:[#allocation8 + $0xe8] sm:$0xff]
        %v2190 = vld [vmem:[#allocation8 + $0xf0] sm:$0xff]
        %v2191 = vld [vmem:[#allocation8 + $0xf8] sm:$0xff]
        %v2192 = vld [vmem:[#allocation8 + $0x100] sm:$0xff]
        %v2193 = vld [vmem:[#allocation8 + $0x108] sm:$0xff]
        %v2194 = vld [vmem:[#allocation8 + $0x110] sm:$0xff]
        %v2195 = vld [vmem:[#allocation8 + $0x118] sm:$0xff]
        %v2196 = vld [vmem:[#allocation8 + $0x120] sm:$0xff]
        %v2197 = vld [vmem:[#allocation8 + $0x128] sm:$0xff]
        %v2198 = vld [vmem:[#allocation8 + $0x130] sm:$0xff]
        %v2199 = vld [vmem:[#allocation8 + $0x138] sm:$0xff]
        %v2200 = vld [vmem:[#allocation8 + $0x140] sm:$0xff]
        %v2201 = vld [vmem:[#allocation8 + $0x148] sm:$0xff]
        %v2202 = vld [vmem:[#allocation8 + $0x150] sm:$0xff]
        %v2203 = vld [vmem:[#allocation8 + $0x158] sm:$0xff]
        %v2204 = vld [vmem:[#allocation8 + $0x160] sm:$0xff]
        %v2205 = vld [vmem:[#allocation8 + $0x168] sm:$0xff]
        %v2206 = vld [vmem:[#allocation8 + $0x170] sm:$0xff]
        %v2207 = vld [vmem:[#allocation8 + $0x178] sm:$0xff]
        %v2208 = vld [vmem:[#allocation8 + $0x180] sm:$0xff]
        %v2209 = vld [vmem:[#allocation8 + $0x188] sm:$0xff]
        %v2210 = vld [vmem:[#allocation8 + $0x190] sm:$0xff]
        %v2211 = vld [vmem:[#allocation8 + $0x198] sm:$0xff]
        %v2212 = vld [vmem:[#allocation8 + $0x1a0] sm:$0xff]
        %v2213 = vld [vmem:[#allocation8 + $0x1a8] sm:$0xff]
        %v2214 = vld [vmem:[#allocation8 + $0x1b0] sm:$0xff]
        %v2215 = vld [vmem:[#allocation8 + $0x1b8] sm:$0xff]
        %v2216 = vld [vmem:[#allocation8 + $0x1c0] sm:$0xff]
        %v2217 = vld [vmem:[#allocation8 + $0x1c8] sm:$0xff]
        %v2218 = vld [vmem:[#allocation8 + $0x1d0] sm:$0xff]
        %v2219 = vld [vmem:[#allocation8 + $0x1d8] sm:$0xff]
        %v2220 = vld [vmem:[#allocation8 + $0x1e0] sm:$0xff]
        %v2221 = vld [vmem:[#allocation8 + $0x1e8] sm:$0xff]
        %v2222 = vld [vmem:[#allocation8 + $0x1f0] sm:$0xff]
        %v2223 = vld [vmem:[#allocation8 + $0x1f8] sm:$0xff]
        %v2224 = vld [vmem:[#allocation8 + $0x200] sm:$0xff]
        %v2225 = vld [vmem:[#allocation8 + $0x208] sm:$0xff]
        %v2226 = vld [vmem:[#allocation8 + $0x210] sm:$0xff]
        %v2227 = vld [vmem:[#allocation8 + $0x218] sm:$0xff]
        %v2228 = vld [vmem:[#allocation8 + $0x220] sm:$0xff]
        %v2229 = vld [vmem:[#allocation8 + $0x228] sm:$0xff]
        %v2230 = vld [vmem:[#allocation8 + $0x230] sm:$0xff]
        %v2231 = vld [vmem:[#allocation8 + $0x238] sm:$0xff]
        %v2232 = vld [vmem:[#allocation8 + $0x240] sm:$0xff]
        %v2233 = vld [vmem:[#allocation8 + $0x248] sm:$0xff]
        %v2234 = vld [vmem:[#allocation8 + $0x250] sm:$0xff]
        %v2235 = vld [vmem:[#allocation8 + $0x258] sm:$0xff]
        %v2236 = vld [vmem:[#allocation8 + $0x260] sm:$0xff]
        %v2237 = vld [vmem:[#allocation8 + $0x268] sm:$0xff]
        %v2238 = vld [vmem:[#allocation8 + $0x270] sm:$0xff]
        %v2239 = vld [vmem:[#allocation8 + $0x278] sm:$0xff]
        %v2240 = vld [vmem:[#allocation8 + $0x280] sm:$0xff]
        %v2241 = vld [vmem:[#allocation8 + $0x288] sm:$0xff]
        %v2242 = vld [vmem:[#allocation8 + $0x290] sm:$0xff]
        %v2243 = vld [vmem:[#allocation8 + $0x298] sm:$0xff]
        %v2244 = vld [vmem:[#allocation8 + $0x2a0] sm:$0xff]
        %v2245 = vld [vmem:[#allocation8 + $0x2a8] sm:$0xff]
        %v2246 = vld [vmem:[#allocation8 + $0x2b0] sm:$0xff]
        %v2247 = vld [vmem:[#allocation8 + $0x2b8] sm:$0xff]
        %v2248 = vld [vmem:[#allocation8 + $0x2c0] sm:$0xff]
        %v2249 = vld [vmem:[#allocation8 + $0x2c8] sm:$0xff]
        %v2250 = vld [vmem:[#allocation8 + $0x2d0] sm:$0xff]
        %v2251 = vld [vmem:[#allocation8 + $0x2d8] sm:$0xff]
        %v2252 = vld [vmem:[#allocation8 + $0x2e0] sm:$0xff]
        %v2253 = vld [vmem:[#allocation8 + $0x2e8] sm:$0xff]
        %v2254 = vld [vmem:[#allocation8 + $0x2f0] sm:$0xff]
        %v2255 = vld [vmem:[#allocation8 + $0x2f8] sm:$0xff]
        %v2256 = vld [vmem:[#allocation8 + $0x300] sm:$0xff]
        %v2257 = vld [vmem:[#allocation8 + $0x308] sm:$0xff]
        %v2258 = vld [vmem:[#allocation8 + $0x310] sm:$0xff]
        %v2259 = vld [vmem:[#allocation8 + $0x318] sm:$0xff]
        %v2260 = vld [vmem:[#allocation8 + $0x320] sm:$0xff]
        %v2261 = vld [vmem:[#allocation8 + $0x328] sm:$0xff]
        %v2262 = vld [vmem:[#allocation8 + $0x330] sm:$0xff]
        %v2263 = vld [vmem:[#allocation8 + $0x338] sm:$0xff]
        %v2264 = vld [vmem:[#allocation8 + $0x340] sm:$0xff]
        %v2265 = vld [vmem:[#allocation8 + $0x348] sm:$0xff]
        %v2266 = vld [vmem:[#allocation8 + $0x350] sm:$0xff]
        %v2267 = vld [vmem:[#allocation8 + $0x358] sm:$0xff]
        %v2268 = vld [vmem:[#allocation8 + $0x360] sm:$0xff]
        %v2269 = vld [vmem:[#allocation8 + $0x368] sm:$0xff]
        %v2270 = vld [vmem:[#allocation8 + $0x370] sm:$0xff]
        %v2271 = vld [vmem:[#allocation8 + $0x378] sm:$0xff]
        %v2272 = vld [vmem:[#allocation8 + $0x380] sm:$0xff]
        %v2273 = vld [vmem:[#allocation8 + $0x388] sm:$0xff]
        %v2274 = vld [vmem:[#allocation8 + $0x390] sm:$0xff]
        %v2275 = vld [vmem:[#allocation8 + $0x398] sm:$0xff]
        %v2276 = vld [vmem:[#allocation8 + $0x3a0] sm:$0xff]
        %v2277 = vld [vmem:[#allocation8 + $0x3a8] sm:$0xff]
        %v2278 = vld [vmem:[#allocation8 + $0x3b0] sm:$0xff]
        %v2279 = vld [vmem:[#allocation8 + $0x3b8] sm:$0xff]
        %v2280 = vld [vmem:[#allocation8 + $0x3c0] sm:$0xff]
        %v2281 = vld [vmem:[#allocation8 + $0x3c8] sm:$0xff]
        %v2282 = vld [vmem:[#allocation8 + $0x3d0] sm:$0xff]
        %v2283 = vld [vmem:[#allocation8 + $0x3d8] sm:$0xff]
        %v2284 = vld [vmem:[#allocation8 + $0x3e0] sm:$0xff]
        %v2285 = vld [vmem:[#allocation8 + $0x3e8] sm:$0xff]
        %v2286 = vld [vmem:[#allocation8 + $0x3f0] sm:$0xff]
        %v2287 = vld [vmem:[#allocation8 + $0x3f8] sm:$0xff]
        %v2288 = vld [vmem:[#allocation10] sm:$0xf]
        %v2290 = vperm.slane %v2288, 0
        %v2291 = vperm.slane %v2288, 1
        %v2292 = vperm.slane %v2288, 2
        %v2293 = vperm.slane %v2288, 3
        %v2426 = vunpack.c.l.b16 %v2160
        %v2427 = vunpack.c.h.b16 %v2160
        %v2428 = vunpack.c.l.b16 %v2161
        %v2429 = vunpack.c.h.b16 %v2161
        %v2430 = vunpack.c.l.b16 %v2162
        %v2431 = vunpack.c.h.b16 %v2162
        %v2432 = vunpack.c.l.b16 %v2163
        %v2433 = vunpack.c.h.b16 %v2163
        %v2434 = vunpack.c.l.b16 %v2164
        %v2435 = vunpack.c.h.b16 %v2164
        %v2436 = vunpack.c.l.b16 %v2165
        %v2437 = vunpack.c.h.b16 %v2165
        %v2438 = vunpack.c.l.b16 %v2166
        %v2439 = vunpack.c.h.b16 %v2166
        %v2440 = vunpack.c.l.b16 %v2167
        %v2441 = vunpack.c.h.b16 %v2167
        %v2442 = vunpack.c.l.b16 %v2168
        %v2443 = vunpack.c.h.b16 %v2168
        %v2444 = vunpack.c.l.b16 %v2169
        %v2445 = vunpack.c.h.b16 %v2169
        %v2446 = vunpack.c.l.b16 %v2170
        %v2447 = vunpack.c.h.b16 %v2170
        %v2448 = vunpack.c.l.b16 %v2171
        %v2449 = vunpack.c.h.b16 %v2171
        %v2450 = vunpack.c.l.b16 %v2172
        %v2451 = vunpack.c.h.b16 %v2172
        %v2452 = vunpack.c.l.b16 %v2173
        %v2453 = vunpack.c.h.b16 %v2173
        %v2454 = vunpack.c.l.b16 %v2174
        %v2455 = vunpack.c.h.b16 %v2174
        %v2456 = vunpack.c.l.b16 %v2175
        %v2457 = vunpack.c.h.b16 %v2175
        %v2458 = vunpack.c.l.b16 %v2176
        %v2459 = vunpack.c.h.b16 %v2176
        %v2460 = vunpack.c.l.b16 %v2177
        %v2461 = vunpack.c.h.b16 %v2177
        %v2462 = vunpack.c.l.b16 %v2178
        %v2463 = vunpack.c.h.b16 %v2178
        %v2464 = vunpack.c.l.b16 %v2179
        %v2465 = vunpack.c.h.b16 %v2179
        %v2466 = vunpack.c.l.b16 %v2180
        %v2467 = vunpack.c.h.b16 %v2180
        %v2468 = vunpack.c.l.b16 %v2181
        %v2469 = vunpack.c.h.b16 %v2181
        %v2470 = vunpack.c.l.b16 %v2182
        %v2471 = vunpack.c.h.b16 %v2182
        %v2472 = vunpack.c.l.b16 %v2183
        %v2473 = vunpack.c.h.b16 %v2183
        %v2474 = vunpack.c.l.b16 %v2184
        %v2475 = vunpack.c.h.b16 %v2184
        %v2476 = vunpack.c.l.b16 %v2185
        %v2477 = vunpack.c.h.b16 %v2185
        %v2478 = vunpack.c.l.b16 %v2186
        %v2479 = vunpack.c.h.b16 %v2186
        %v2480 = vunpack.c.l.b16 %v2187
        %v2481 = vunpack.c.h.b16 %v2187
        %v2482 = vunpack.c.l.b16 %v2188
        %v2483 = vunpack.c.h.b16 %v2188
        %v2484 = vunpack.c.l.b16 %v2189
        %v2485 = vunpack.c.h.b16 %v2189
        %v2486 = vunpack.c.l.b16 %v2190
        %v2487 = vunpack.c.h.b16 %v2190
        %v2488 = vunpack.c.l.b16 %v2191
        %v2489 = vunpack.c.h.b16 %v2191
        %v2490 = vunpack.c.l.b16 %v2192
        %v2491 = vunpack.c.h.b16 %v2192
        %v2492 = vunpack.c.l.b16 %v2193
        %v2493 = vunpack.c.h.b16 %v2193
        %v2494 = vunpack.c.l.b16 %v2194
        %v2495 = vunpack.c.h.b16 %v2194
        %v2496 = vunpack.c.l.b16 %v2195
        %v2497 = vunpack.c.h.b16 %v2195
        %v2498 = vunpack.c.l.b16 %v2196
        %v2499 = vunpack.c.h.b16 %v2196
        %v2500 = vunpack.c.l.b16 %v2197
        %v2501 = vunpack.c.h.b16 %v2197
        %v2502 = vunpack.c.l.b16 %v2198
        %v2503 = vunpack.c.h.b16 %v2198
        %v2504 = vunpack.c.l.b16 %v2199
        %v2505 = vunpack.c.h.b16 %v2199
        %v2506 = vunpack.c.l.b16 %v2200
        %v2507 = vunpack.c.h.b16 %v2200
        %v2508 = vunpack.c.l.b16 %v2201
        %v2509 = vunpack.c.h.b16 %v2201
        %v2510 = vunpack.c.l.b16 %v2202
        %v2511 = vunpack.c.h.b16 %v2202
        %v2512 = vunpack.c.l.b16 %v2203
        %v2513 = vunpack.c.h.b16 %v2203
        %v2514 = vunpack.c.l.b16 %v2204
        %v2515 = vunpack.c.h.b16 %v2204
        %v2516 = vunpack.c.l.b16 %v2205
        %v2517 = vunpack.c.h.b16 %v2205
        %v2518 = vunpack.c.l.b16 %v2206
        %v2519 = vunpack.c.h.b16 %v2206
        %v2520 = vunpack.c.l.b16 %v2207
        %v2521 = vunpack.c.h.b16 %v2207
        %v2522 = vunpack.c.l.b16 %v2208
        %v2523 = vunpack.c.h.b16 %v2208
        %v2524 = vunpack.c.l.b16 %v2209
        %v2525 = vunpack.c.h.b16 %v2209
        %v2526 = vunpack.c.l.b16 %v2210
        %v2527 = vunpack.c.h.b16 %v2210
        %v2528 = vunpack.c.l.b16 %v2211
        %v2529 = vunpack.c.h.b16 %v2211
        %v2530 = vunpack.c.l.b16 %v2212
        %v2531 = vunpack.c.h.b16 %v2212
        %v2532 = vunpack.c.l.b16 %v2213
        %v2533 = vunpack.c.h.b16 %v2213
        %v2534 = vunpack.c.l.b16 %v2214
        %v2535 = vunpack.c.h.b16 %v2214
        %v2536 = vunpack.c.l.b16 %v2215
        %v2537 = vunpack.c.h.b16 %v2215
        %v2538 = vunpack.c.l.b16 %v2216
        %v2539 = vunpack.c.h.b16 %v2216
        %v2540 = vunpack.c.l.b16 %v2217
        %v2541 = vunpack.c.h.b16 %v2217
        %v2542 = vunpack.c.l.b16 %v2218
        %v2543 = vunpack.c.h.b16 %v2218
        %v2544 = vunpack.c.l.b16 %v2219
        %v2545 = vunpack.c.h.b16 %v2219
        %v2546 = vunpack.c.l.b16 %v2220
        %v2547 = vunpack.c.h.b16 %v2220
        %v2548 = vunpack.c.l.b16 %v2221
        %v2549 = vunpack.c.h.b16 %v2221
        %v2550 = vunpack.c.l.b16 %v2222
        %v2551 = vunpack.c.h.b16 %v2222
        %v2552 = vunpack.c.l.b16 %v2223
        %v2553 = vunpack.c.h.b16 %v2223
        %v2554 = vunpack.c.l.b16 %v2224
        %v2555 = vunpack.c.h.b16 %v2224
        %v2556 = vunpack.c.l.b16 %v2225
        %v2557 = vunpack.c.h.b16 %v2225
        %v2558 = vunpack.c.l.b16 %v2226
        %v2559 = vunpack.c.h.b16 %v2226
        %v2560 = vunpack.c.l.b16 %v2227
        %v2561 = vunpack.c.h.b16 %v2227
        %v2562 = vunpack.c.l.b16 %v2228
        %v2563 = vunpack.c.h.b16 %v2228
        %v2564 = vunpack.c.l.b16 %v2229
        %v2565 = vunpack.c.h.b16 %v2229
        %v2566 = vunpack.c.l.b16 %v2230
        %v2567 = vunpack.c.h.b16 %v2230
        %v2568 = vunpack.c.l.b16 %v2231
        %v2569 = vunpack.c.h.b16 %v2231
        %v2570 = vunpack.c.l.b16 %v2232
        %v2571 = vunpack.c.h.b16 %v2232
        %v2572 = vunpack.c.l.b16 %v2233
        %v2573 = vunpack.c.h.b16 %v2233
        %v2574 = vunpack.c.l.b16 %v2234
        %v2575 = vunpack.c.h.b16 %v2234
        %v2576 = vunpack.c.l.b16 %v2235
        %v2577 = vunpack.c.h.b16 %v2235
        %v2578 = vunpack.c.l.b16 %v2236
        %v2579 = vunpack.c.h.b16 %v2236
        %v2580 = vunpack.c.l.b16 %v2237
        %v2581 = vunpack.c.h.b16 %v2237
        %v2582 = vunpack.c.l.b16 %v2238
        %v2583 = vunpack.c.h.b16 %v2238
        %v2584 = vunpack.c.l.b16 %v2239
        %v2585 = vunpack.c.h.b16 %v2239
        %v2586 = vunpack.c.l.b16 %v2240
        %v2587 = vunpack.c.h.b16 %v2240
        %v2588 = vunpack.c.l.b16 %v2241
        %v2589 = vunpack.c.h.b16 %v2241
        %v2590 = vunpack.c.l.b16 %v2242
        %v2591 = vunpack.c.h.b16 %v2242
        %v2592 = vunpack.c.l.b16 %v2243
        %v2593 = vunpack.c.h.b16 %v2243
        %v2594 = vunpack.c.l.b16 %v2244
        %v2595 = vunpack.c.h.b16 %v2244
        %v2596 = vunpack.c.l.b16 %v2245
        %v2597 = vunpack.c.h.b16 %v2245
        %v2598 = vunpack.c.l.b16 %v2246
        %v2599 = vunpack.c.h.b16 %v2246
        %v2600 = vunpack.c.l.b16 %v2247
        %v2601 = vunpack.c.h.b16 %v2247
        %v2602 = vunpack.c.l.b16 %v2248
        %v2603 = vunpack.c.h.b16 %v2248
        %v2604 = vunpack.c.l.b16 %v2249
        %v2605 = vunpack.c.h.b16 %v2249
        %v2606 = vunpack.c.l.b16 %v2250
        %v2607 = vunpack.c.h.b16 %v2250
        %v2608 = vunpack.c.l.b16 %v2251
        %v2609 = vunpack.c.h.b16 %v2251
        %v2610 = vunpack.c.l.b16 %v2252
        %v2611 = vunpack.c.h.b16 %v2252
        %v2612 = vunpack.c.l.b16 %v2253
        %v2613 = vunpack.c.h.b16 %v2253
        %v2614 = vunpack.c.l.b16 %v2254
        %v2615 = vunpack.c.h.b16 %v2254
        %v2616 = vunpack.c.l.b16 %v2255
        %v2617 = vunpack.c.h.b16 %v2255
        %v2618 = vunpack.c.l.b16 %v2256
        %v2619 = vunpack.c.h.b16 %v2256
        %v2620 = vunpack.c.l.b16 %v2257
        %v2621 = vunpack.c.h.b16 %v2257
        %v2622 = vunpack.c.l.b16 %v2258
        %v2623 = vunpack.c.h.b16 %v2258
        %v2624 = vunpack.c.l.b16 %v2259
        %v2625 = vunpack.c.h.b16 %v2259
        %v2626 = vunpack.c.l.b16 %v2260
        %v2627 = vunpack.c.h.b16 %v2260
        %v2628 = vunpack.c.l.b16 %v2261
        %v2629 = vunpack.c.h.b16 %v2261
        %v2630 = vunpack.c.l.b16 %v2262
        %v2631 = vunpack.c.h.b16 %v2262
        %v2632 = vunpack.c.l.b16 %v2263
        %v2633 = vunpack.c.h.b16 %v2263
        %v2634 = vunpack.c.l.b16 %v2264
        %v2635 = vunpack.c.h.b16 %v2264
        %v2636 = vunpack.c.l.b16 %v2265
        %v2637 = vunpack.c.h.b16 %v2265
        %v2638 = vunpack.c.l.b16 %v2266
        %v2639 = vunpack.c.h.b16 %v2266
        %v2640 = vunpack.c.l.b16 %v2267
        %v2641 = vunpack.c.h.b16 %v2267
        %v2642 = vunpack.c.l.b16 %v2268
        %v2643 = vunpack.c.h.b16 %v2268
        %v2644 = vunpack.c.l.b16 %v2269
        %v2645 = vunpack.c.h.b16 %v2269
        %v2646 = vunpack.c.l.b16 %v2270
        %v2647 = vunpack.c.h.b16 %v2270
        %v2648 = vunpack.c.l.b16 %v2271
        %v2649 = vunpack.c.h.b16 %v2271
        %v2650 = vunpack.c.l.b16 %v2272
        %v2651 = vunpack.c.h.b16 %v2272
        %v2652 = vunpack.c.l.b16 %v2273
        %v2653 = vunpack.c.h.b16 %v2273
        %v2654 = vunpack.c.l.b16 %v2274
        %v2655 = vunpack.c.h.b16 %v2274
        %v2656 = vunpack.c.l.b16 %v2275
        %v2657 = vunpack.c.h.b16 %v2275
        %v2658 = vunpack.c.l.b16 %v2276
        %v2659 = vunpack.c.h.b16 %v2276
        %v2660 = vunpack.c.l.b16 %v2277
        %v2661 = vunpack.c.h.b16 %v2277
        %v2662 = vunpack.c.l.b16 %v2278
        %v2663 = vunpack.c.h.b16 %v2278
        %v2664 = vunpack.c.l.b16 %v2279
        %v2665 = vunpack.c.h.b16 %v2279
        %v2666 = vunpack.c.l.b16 %v2280
        %v2667 = vunpack.c.h.b16 %v2280
        %v2668 = vunpack.c.l.b16 %v2281
        %v2669 = vunpack.c.h.b16 %v2281
        %v2670 = vunpack.c.l.b16 %v2282
        %v2671 = vunpack.c.h.b16 %v2282
        %v2672 = vunpack.c.l.b16 %v2283
        %v2673 = vunpack.c.h.b16 %v2283
        %v2674 = vunpack.c.l.b16 %v2284
        %v2675 = vunpack.c.h.b16 %v2284
        %v2676 = vunpack.c.l.b16 %v2285
        %v2677 = vunpack.c.h.b16 %v2285
        %v2678 = vunpack.c.l.b16 %v2286
        %v2679 = vunpack.c.h.b16 %v2286
        %v2680 = vunpack.c.l.b16 %v2287
        %v2681 = vunpack.c.h.b16 %v2287
        %v2682 = vpack.c.b16 %v2430, %v2426
        %v2683 = vpack.c.b16 %v2431, %v2427
        %v2684 = vpack.c.b16 %v2432, %v2428
        %v2685 = vpack.c.b16 %v2433, %v2429
        %v2686 = vpack.c.b16 %v2438, %v2434
        %v2687 = vpack.c.b16 %v2439, %v2435
        %v2688 = vpack.c.b16 %v2440, %v2436
        %v2689 = vpack.c.b16 %v2441, %v2437
        %v2690 = vpack.c.b16 %v2446, %v2442
        %v2691 = vpack.c.b16 %v2447, %v2443
        %v2692 = vpack.c.b16 %v2448, %v2444
        %v2693 = vpack.c.b16 %v2449, %v2445
        %v2694 = vpack.c.b16 %v2454, %v2450
        %v2695 = vpack.c.b16 %v2455, %v2451
        %v2696 = vpack.c.b16 %v2456, %v2452
        %v2697 = vpack.c.b16 %v2457, %v2453
        %v2698 = vpack.c.b16 %v2462, %v2458
        %v2699 = vpack.c.b16 %v2463, %v2459
        %v2700 = vpack.c.b16 %v2464, %v2460
        %v2701 = vpack.c.b16 %v2465, %v2461
        %v2702 = vpack.c.b16 %v2470, %v2466
        %v2703 = vpack.c.b16 %v2471, %v2467
        %v2704 = vpack.c.b16 %v2472, %v2468
        %v2705 = vpack.c.b16 %v2473, %v2469
        %v2706 = vpack.c.b16 %v2478, %v2474
        %v2707 = vpack.c.b16 %v2479, %v2475
        %v2708 = vpack.c.b16 %v2480, %v2476
        %v2709 = vpack.c.b16 %v2481, %v2477
        %v2710 = vpack.c.b16 %v2486, %v2482
        %v2711 = vpack.c.b16 %v2487, %v2483
        %v2712 = vpack.c.b16 %v2488, %v2484
        %v2713 = vpack.c.b16 %v2489, %v2485
        %v2714 = vpack.c.b16 %v2494, %v2490
        %v2715 = vpack.c.b16 %v2495, %v2491
        %v2716 = vpack.c.b16 %v2496, %v2492
        %v2717 = vpack.c.b16 %v2497, %v2493
        %v2718 = vpack.c.b16 %v2502, %v2498
        %v2719 = vpack.c.b16 %v2503, %v2499
        %v2720 = vpack.c.b16 %v2504, %v2500
        %v2721 = vpack.c.b16 %v2505, %v2501
        %v2722 = vpack.c.b16 %v2510, %v2506
        %v2723 = vpack.c.b16 %v2511, %v2507
        %v2724 = vpack.c.b16 %v2512, %v2508
        %v2725 = vpack.c.b16 %v2513, %v2509
        %v2726 = vpack.c.b16 %v2518, %v2514
        %v2727 = vpack.c.b16 %v2519, %v2515
        %v2728 = vpack.c.b16 %v2520, %v2516
        %v2729 = vpack.c.b16 %v2521, %v2517
        %v2730 = vpack.c.b16 %v2526, %v2522
        %v2731 = vpack.c.b16 %v2527, %v2523
        %v2732 = vpack.c.b16 %v2528, %v2524
        %v2733 = vpack.c.b16 %v2529, %v2525
        %v2734 = vpack.c.b16 %v2534, %v2530
        %v2735 = vpack.c.b16 %v2535, %v2531
        %v2736 = vpack.c.b16 %v2536, %v2532
        %v2737 = vpack.c.b16 %v2537, %v2533
        %v2738 = vpack.c.b16 %v2542, %v2538
        %v2739 = vpack.c.b16 %v2543, %v2539
        %v2740 = vpack.c.b16 %v2544, %v2540
        %v2741 = vpack.c.b16 %v2545, %v2541
        %v2742 = vpack.c.b16 %v2550, %v2546
        %v2743 = vpack.c.b16 %v2551, %v2547
        %v2744 = vpack.c.b16 %v2552, %v2548
        %v2745 = vpack.c.b16 %v2553, %v2549
        %v2746 = vpack.c.b16 %v2558, %v2554
        %v2747 = vpack.c.b16 %v2559, %v2555
        %v2748 = vpack.c.b16 %v2560, %v2556
        %v2749 = vpack.c.b16 %v2561, %v2557
        %v2750 = vpack.c.b16 %v2566, %v2562
        %v2751 = vpack.c.b16 %v2567, %v2563
        %v2752 = vpack.c.b16 %v2568, %v2564
        %v2753 = vpack.c.b16 %v2569, %v2565
        %v2754 = vpack.c.b16 %v2574, %v2570
        %v2755 = vpack.c.b16 %v2575, %v2571
        %v2756 = vpack.c.b16 %v2576, %v2572
        %v2757 = vpack.c.b16 %v2577, %v2573
        %v2758 = vpack.c.b16 %v2582, %v2578
        %v2759 = vpack.c.b16 %v2583, %v2579
        %v2760 = vpack.c.b16 %v2584, %v2580
        %v2761 = vpack.c.b16 %v2585, %v2581
        %v2762 = vpack.c.b16 %v2590, %v2586
        %v2763 = vpack.c.b16 %v2591, %v2587
        %v2764 = vpack.c.b16 %v2592, %v2588
        %v2765 = vpack.c.b16 %v2593, %v2589
        %v2766 = vpack.c.b16 %v2598, %v2594
        %v2767 = vpack.c.b16 %v2599, %v2595
        %v2768 = vpack.c.b16 %v2600, %v2596
        %v2769 = vpack.c.b16 %v2601, %v2597
        %v2770 = vpack.c.b16 %v2606, %v2602
        %v2771 = vpack.c.b16 %v2607, %v2603
        %v2772 = vpack.c.b16 %v2608, %v2604
        %v2773 = vpack.c.b16 %v2609, %v2605
        %v2774 = vpack.c.b16 %v2614, %v2610
        %v2775 = vpack.c.b16 %v2615, %v2611
        %v2776 = vpack.c.b16 %v2616, %v2612
        %v2777 = vpack.c.b16 %v2617, %v2613
        %v2778 = vpack.c.b16 %v2622, %v2618
        %v2779 = vpack.c.b16 %v2623, %v2619
        %v2780 = vpack.c.b16 %v2624, %v2620
        %v2781 = vpack.c.b16 %v2625, %v2621
        %v2782 = vpack.c.b16 %v2630, %v2626
        %v2783 = vpack.c.b16 %v2631, %v2627
        %v2784 = vpack.c.b16 %v2632, %v2628
        %v2785 = vpack.c.b16 %v2633, %v2629
        %v2786 = vpack.c.b16 %v2638, %v2634
        %v2787 = vpack.c.b16 %v2639, %v2635
        %v2788 = vpack.c.b16 %v2640, %v2636
        %v2789 = vpack.c.b16 %v2641, %v2637
        %v2790 = vpack.c.b16 %v2646, %v2642
        %v2791 = vpack.c.b16 %v2647, %v2643
        %v2792 = vpack.c.b16 %v2648, %v2644
        %v2793 = vpack.c.b16 %v2649, %v2645
        %v2794 = vpack.c.b16 %v2654, %v2650
        %v2795 = vpack.c.b16 %v2655, %v2651
        %v2796 = vpack.c.b16 %v2656, %v2652
        %v2797 = vpack.c.b16 %v2657, %v2653
        %v2798 = vpack.c.b16 %v2662, %v2658
        %v2799 = vpack.c.b16 %v2663, %v2659
        %v2800 = vpack.c.b16 %v2664, %v2660
        %v2801 = vpack.c.b16 %v2665, %v2661
        %v2802 = vpack.c.b16 %v2670, %v2666
        %v2803 = vpack.c.b16 %v2671, %v2667
        %v2804 = vpack.c.b16 %v2672, %v2668
        %v2805 = vpack.c.b16 %v2673, %v2669
        %v2806 = vpack.c.b16 %v2678, %v2674
        %v2807 = vpack.c.b16 %v2679, %v2675
        %v2808 = vpack.c.b16 %v2680, %v2676
        %v2809 = vpack.c.b16 %v2681, %v2677
        %2938 = vmatpush.bf16.msra.mxu0 %v2710
        %2939 = vmatpush.bf16.msra.mxu0 %v2706
        %2940 = vmatpush.bf16.msra.mxu0 %v2702
        %2941 = vmatpush.bf16.msra.mxu0 %v2698
        %2942 = vmatpush.bf16.msra.mxu0 %v2694
        %2943 = vmatpush.bf16.msra.mxu0 %v2690
        %2944 = vmatpush.bf16.msra.mxu0 %v2686
        %2945 = vmatpush.bf16.msra.mxu0 %v2682
        %2946 = vmatmul.bf16.gmra.mxu0 %v2128
        %v2947 = vpop.f32.mrf.mxu0
        %v2948 = vadd.f32 %v2290, %v2947
        %v2949 = vpop.f32.mrf.mxu0
        %v2950 = vadd.f32 %v2290, %v2949
        %2951 = vmatmul.bf16.gmra.mxu0 %v2132
        %v2952 = vpop.f32.mrf.mxu0
        %v2953 = vadd.f32 %v2290, %v2952
        %v2954 = vpop.f32.mrf.mxu0
        %v2955 = vadd.f32 %v2290, %v2954
        %2956 = vmatmul.bf16.gmra.mxu0 %v2136
        %v2957 = vpop.f32.mrf.mxu0
        %v2958 = vadd.f32 %v2290, %v2957
        %v2959 = vpop.f32.mrf.mxu0
        %v2960 = vadd.f32 %v2290, %v2959
        %2961 = vmatmul.bf16.gmra.mxu0 %v2140
        %v2962 = vpop.f32.mrf.mxu0
        %v2963 = vadd.f32 %v2290, %v2962
        %v2964 = vpop.f32.mrf.mxu0
        %v2965 = vadd.f32 %v2290, %v2964
        %2966 = vmatmul.bf16.gmra.mxu0 %v2144
        %v2967 = vpop.f32.mrf.mxu0
        %v2968 = vadd.f32 %v2290, %v2967
        %v2969 = vpop.f32.mrf.mxu0
        %v2970 = vadd.f32 %v2290, %v2969
        %2971 = vmatmul.bf16.gmra.mxu0 %v2148
        %v2972 = vpop.f32.mrf.mxu0
        %v2973 = vadd.f32 %v2290, %v2972
        %v2974 = vpop.f32.mrf.mxu0
        %v2975 = vadd.f32 %v2290, %v2974
        %2976 = vmatmul.bf16.gmra.mxu0 %v2152
        %v2977 = vpop.f32.mrf.mxu0
        %v2978 = vadd.f32 %v2290, %v2977
        %v2979 = vpop.f32.mrf.mxu0
        %v2980 = vadd.f32 %v2290, %v2979
        %2981 = vmatmul.bf16.gmra.mxu0 %v2156
        %v2982 = vpop.f32.mrf.mxu0
        %v2983 = vadd.f32 %v2290, %v2982
        %v2984 = vpop.f32.mrf.mxu0
        %v2985 = vadd.f32 %v2290, %v2984
        %2986 = vdwg.mxu0
        %2987 = vmatpush.bf16.msra.mxu0 %v2742
        %2988 = vmatpush.bf16.msra.mxu0 %v2738
        %2989 = vmatpush.bf16.msra.mxu0 %v2734
        %2990 = vmatpush.bf16.msra.mxu0 %v2730
        %2991 = vmatpush.bf16.msra.mxu0 %v2726
        %2992 = vmatpush.bf16.msra.mxu0 %v2722
        %2993 = vmatpush.bf16.msra.mxu0 %v2718
        %2994 = vmatpush.bf16.msra.mxu0 %v2714
        %2995 = vmatmul.bf16.gmra.mxu0 %v2129
        %v2996 = vpop.f32.mrf.mxu0
        %v2997 = vadd.f32 %v2948, %v2996
        %v2998 = vpop.f32.mrf.mxu0
        %v2999 = vadd.f32 %v2950, %v2998
        %3000 = vmatmul.bf16.gmra.mxu0 %v2133
        %v3001 = vpop.f32.mrf.mxu0
        %v3002 = vadd.f32 %v2953, %v3001
        %v3003 = vpop.f32.mrf.mxu0
        %v3004 = vadd.f32 %v2955, %v3003
        %3005 = vmatmul.bf16.gmra.mxu0 %v2137
        %v3006 = vpop.f32.mrf.mxu0
        %v3007 = vadd.f32 %v2958, %v3006
        %v3008 = vpop.f32.mrf.mxu0
        %v3009 = vadd.f32 %v2960, %v3008
        %3010 = vmatmul.bf16.gmra.mxu0 %v2141
        %v3011 = vpop.f32.mrf.mxu0
        %v3012 = vadd.f32 %v2963, %v3011
        %v3013 = vpop.f32.mrf.mxu0
        %v3014 = vadd.f32 %v2965, %v3013
        %3015 = vmatmul.bf16.gmra.mxu0 %v2145
        %v3016 = vpop.f32.mrf.mxu0
        %v3017 = vadd.f32 %v2968, %v3016
        %v3018 = vpop.f32.mrf.mxu0
        %v3019 = vadd.f32 %v2970, %v3018
        %3020 = vmatmul.bf16.gmra.mxu0 %v2149
        %v3021 = vpop.f32.mrf.mxu0
        %v3022 = vadd.f32 %v2973, %v3021
        %v3023 = vpop.f32.mrf.mxu0
        %v3024 = vadd.f32 %v2975, %v3023
        %3025 = vmatmul.bf16.gmra.mxu0 %v2153
        %v3026 = vpop.f32.mrf.mxu0
        %v3027 = vadd.f32 %v2978, %v3026
        %v3028 = vpop.f32.mrf.mxu0
        %v3029 = vadd.f32 %v2980, %v3028
        %3030 = vmatmul.bf16.gmra.mxu0 %v2157
        %v3031 = vpop.f32.mrf.mxu0
        %v3032 = vadd.f32 %v2983, %v3031
        %v3033 = vpop.f32.mrf.mxu0
        %v3034 = vadd.f32 %v2985, %v3033
        %3035 = vdwg.mxu0
        %3036 = vmatpush.bf16.msra.mxu0 %v2774
        %3037 = vmatpush.bf16.msra.mxu0 %v2770
        %3038 = vmatpush.bf16.msra.mxu0 %v2766
        %3039 = vmatpush.bf16.msra.mxu0 %v2762
        %3040 = vmatpush.bf16.msra.mxu0 %v2758
        %3041 = vmatpush.bf16.msra.mxu0 %v2754
        %3042 = vmatpush.bf16.msra.mxu0 %v2750
        %3043 = vmatpush.bf16.msra.mxu0 %v2746
        %3044 = vmatmul.bf16.gmra.mxu0 %v2130
        %v3045 = vpop.f32.mrf.mxu0
        %v3046 = vadd.f32 %v2997, %v3045
        %v3047 = vpop.f32.mrf.mxu0
        %v3048 = vadd.f32 %v2999, %v3047
        %3049 = vmatmul.bf16.gmra.mxu0 %v2134
        %v3050 = vpop.f32.mrf.mxu0
        %v3051 = vadd.f32 %v3002, %v3050
        %v3052 = vpop.f32.mrf.mxu0
        %v3053 = vadd.f32 %v3004, %v3052
        %3054 = vmatmul.bf16.gmra.mxu0 %v2138
        %v3055 = vpop.f32.mrf.mxu0
        %v3056 = vadd.f32 %v3007, %v3055
        %v3057 = vpop.f32.mrf.mxu0
        %v3058 = vadd.f32 %v3009, %v3057
        %3059 = vmatmul.bf16.gmra.mxu0 %v2142
        %v3060 = vpop.f32.mrf.mxu0
        %v3061 = vadd.f32 %v3012, %v3060
        %v3062 = vpop.f32.mrf.mxu0
        %v3063 = vadd.f32 %v3014, %v3062
        %3064 = vmatmul.bf16.gmra.mxu0 %v2146
        %v3065 = vpop.f32.mrf.mxu0
        %v3066 = vadd.f32 %v3017, %v3065
        %v3067 = vpop.f32.mrf.mxu0
        %v3068 = vadd.f32 %v3019, %v3067
        %3069 = vmatmul.bf16.gmra.mxu0 %v2150
        %v3070 = vpop.f32.mrf.mxu0
        %v3071 = vadd.f32 %v3022, %v3070
        %v3072 = vpop.f32.mrf.mxu0
        %v3073 = vadd.f32 %v3024, %v3072
        %3074 = vmatmul.bf16.gmra.mxu0 %v2154
        %v3075 = vpop.f32.mrf.mxu0
        %v3076 = vadd.f32 %v3027, %v3075
        %v3077 = vpop.f32.mrf.mxu0
        %v3078 = vadd.f32 %v3029, %v3077
        %3079 = vmatmul.bf16.gmra.mxu0 %v2158
        %v3080 = vpop.f32.mrf.mxu0
        %v3081 = vadd.f32 %v3032, %v3080
        %v3082 = vpop.f32.mrf.mxu0
        %v3083 = vadd.f32 %v3034, %v3082
        %3084 = vdwg.mxu0
        %3085 = vmatpush.bf16.msra.mxu0 %v2806
        %3086 = vmatpush.bf16.msra.mxu0 %v2802
        %3087 = vmatpush.bf16.msra.mxu0 %v2798
        %3088 = vmatpush.bf16.msra.mxu0 %v2794
        %3089 = vmatpush.bf16.msra.mxu0 %v2790
        %3090 = vmatpush.bf16.msra.mxu0 %v2786
        %3091 = vmatpush.bf16.msra.mxu0 %v2782
        %3092 = vmatpush.bf16.msra.mxu0 %v2778
        %3093 = vmatmul.bf16.gmra.mxu0 %v2131
        %v3094 = vpop.f32.mrf.mxu0
        %v3095 = vadd.f32 %v3046, %v3094
        %v3096 = vpop.f32.mrf.mxu0
        %v3097 = vadd.f32 %v3048, %v3096
        %3098 = vmatmul.bf16.gmra.mxu0 %v2135
        %v3099 = vpop.f32.mrf.mxu0
        %v3100 = vadd.f32 %v3051, %v3099
        %v3101 = vpop.f32.mrf.mxu0
        %v3102 = vadd.f32 %v3053, %v3101
        %3103 = vmatmul.bf16.gmra.mxu0 %v2139
        %v3104 = vpop.f32.mrf.mxu0
        %v3105 = vadd.f32 %v3056, %v3104
        %v3106 = vpop.f32.mrf.mxu0
        %v3107 = vadd.f32 %v3058, %v3106
        %3108 = vmatmul.bf16.gmra.mxu0 %v2143
        %v3109 = vpop.f32.mrf.mxu0
        %v3110 = vadd.f32 %v3061, %v3109
        %v3111 = vpop.f32.mrf.mxu0
        %v3112 = vadd.f32 %v3063, %v3111
        %3113 = vmatmul.bf16.gmra.mxu0 %v2147
        %v3114 = vpop.f32.mrf.mxu0
        %v3115 = vadd.f32 %v3066, %v3114
        %v3116 = vpop.f32.mrf.mxu0
        %v3117 = vadd.f32 %v3068, %v3116
        %3118 = vmatmul.bf16.gmra.mxu0 %v2151
        %v3119 = vpop.f32.mrf.mxu0
        %v3120 = vadd.f32 %v3071, %v3119
        %v3121 = vpop.f32.mrf.mxu0
        %v3122 = vadd.f32 %v3073, %v3121
        %3123 = vmatmul.bf16.gmra.mxu0 %v2155
        %v3124 = vpop.f32.mrf.mxu0
        %v3125 = vadd.f32 %v3076, %v3124
        %v3126 = vpop.f32.mrf.mxu0
        %v3127 = vadd.f32 %v3078, %v3126
        %3128 = vmatmul.bf16.gmra.mxu0 %v2159
        %v3129 = vpop.f32.mrf.mxu0
        %v3130 = vadd.f32 %v3081, %v3129
        %v3131 = vpop.f32.mrf.mxu0
        %v3132 = vadd.f32 %v3083, %v3131
        %3133 = vdwg.mxu0
        %3134 = vmatpush.bf16.msra.mxu0 %v2711
        %3135 = vmatpush.bf16.msra.mxu0 %v2707
        %3136 = vmatpush.bf16.msra.mxu0 %v2703
        %3137 = vmatpush.bf16.msra.mxu0 %v2699
        %3138 = vmatpush.bf16.msra.mxu0 %v2695
        %3139 = vmatpush.bf16.msra.mxu0 %v2691
        %3140 = vmatpush.bf16.msra.mxu0 %v2687
        %3141 = vmatpush.bf16.msra.mxu0 %v2683
        %3142 = vmatmul.bf16.gmra.mxu0 %v2128
        %v3143 = vpop.f32.mrf.mxu0
        %v3144 = vadd.f32 %v2291, %v3143
        %v3145 = vpop.f32.mrf.mxu0
        %v3146 = vadd.f32 %v2291, %v3145
        %3147 = vmatmul.bf16.gmra.mxu0 %v2132
        %v3148 = vpop.f32.mrf.mxu0
        %v3149 = vadd.f32 %v2291, %v3148
        %v3150 = vpop.f32.mrf.mxu0
        %v3151 = vadd.f32 %v2291, %v3150
        %3152 = vmatmul.bf16.gmra.mxu0 %v2136
        %v3153 = vpop.f32.mrf.mxu0
        %v3154 = vadd.f32 %v2291, %v3153
        %v3155 = vpop.f32.mrf.mxu0
        %v3156 = vadd.f32 %v2291, %v3155
        %3157 = vmatmul.bf16.gmra.mxu0 %v2140
        %v3158 = vpop.f32.mrf.mxu0
        %v3159 = vadd.f32 %v2291, %v3158
        %v3160 = vpop.f32.mrf.mxu0
        %v3161 = vadd.f32 %v2291, %v3160
        %3162 = vmatmul.bf16.gmra.mxu0 %v2144
        %v3163 = vpop.f32.mrf.mxu0
        %v3164 = vadd.f32 %v2291, %v3163
        %v3165 = vpop.f32.mrf.mxu0
        %v3166 = vadd.f32 %v2291, %v3165
        %3167 = vmatmul.bf16.gmra.mxu0 %v2148
        %v3168 = vpop.f32.mrf.mxu0
        %v3169 = vadd.f32 %v2291, %v3168
        %v3170 = vpop.f32.mrf.mxu0
        %v3171 = vadd.f32 %v2291, %v3170
        %3172 = vmatmul.bf16.gmra.mxu0 %v2152
        %v3173 = vpop.f32.mrf.mxu0
        %v3174 = vadd.f32 %v2291, %v3173
        %v3175 = vpop.f32.mrf.mxu0
        %v3176 = vadd.f32 %v2291, %v3175
        %3177 = vmatmul.bf16.gmra.mxu0 %v2156
        %v3178 = vpop.f32.mrf.mxu0
        %v3179 = vadd.f32 %v2291, %v3178
        %v3180 = vpop.f32.mrf.mxu0
        %v3181 = vadd.f32 %v2291, %v3180
        %3182 = vdwg.mxu0
        %3183 = vmatpush.bf16.msra.mxu0 %v2743
        %3184 = vmatpush.bf16.msra.mxu0 %v2739
        %3185 = vmatpush.bf16.msra.mxu0 %v2735
        %3186 = vmatpush.bf16.msra.mxu0 %v2731
        %3187 = vmatpush.bf16.msra.mxu0 %v2727
        %3188 = vmatpush.bf16.msra.mxu0 %v2723
        %3189 = vmatpush.bf16.msra.mxu0 %v2719
        %3190 = vmatpush.bf16.msra.mxu0 %v2715
        %3191 = vmatmul.bf16.gmra.mxu0 %v2129
        %v3192 = vpop.f32.mrf.mxu0
        %v3193 = vadd.f32 %v3144, %v3192
        %v3194 = vpop.f32.mrf.mxu0
        %v3195 = vadd.f32 %v3146, %v3194
        %3196 = vmatmul.bf16.gmra.mxu0 %v2133
        %v3197 = vpop.f32.mrf.mxu0
        %v3198 = vadd.f32 %v3149, %v3197
        %v3199 = vpop.f32.mrf.mxu0
        %v3200 = vadd.f32 %v3151, %v3199
        %3201 = vmatmul.bf16.gmra.mxu0 %v2137
        %v3202 = vpop.f32.mrf.mxu0
        %v3203 = vadd.f32 %v3154, %v3202
        %v3204 = vpop.f32.mrf.mxu0
        %v3205 = vadd.f32 %v3156, %v3204
        %3206 = vmatmul.bf16.gmra.mxu0 %v2141
        %v3207 = vpop.f32.mrf.mxu0
        %v3208 = vadd.f32 %v3159, %v3207
        %v3209 = vpop.f32.mrf.mxu0
        %v3210 = vadd.f32 %v3161, %v3209
        %3211 = vmatmul.bf16.gmra.mxu0 %v2145
        %v3212 = vpop.f32.mrf.mxu0
        %v3213 = vadd.f32 %v3164, %v3212
        %v3214 = vpop.f32.mrf.mxu0
        %v3215 = vadd.f32 %v3166, %v3214
        %3216 = vmatmul.bf16.gmra.mxu0 %v2149
        %v3217 = vpop.f32.mrf.mxu0
        %v3218 = vadd.f32 %v3169, %v3217
        %v3219 = vpop.f32.mrf.mxu0
        %v3220 = vadd.f32 %v3171, %v3219
        %3221 = vmatmul.bf16.gmra.mxu0 %v2153
        %v3222 = vpop.f32.mrf.mxu0
        %v3223 = vadd.f32 %v3174, %v3222
        %v3224 = vpop.f32.mrf.mxu0
        %v3225 = vadd.f32 %v3176, %v3224
        %3226 = vmatmul.bf16.gmra.mxu0 %v2157
        %v3227 = vpop.f32.mrf.mxu0
        %v3228 = vadd.f32 %v3179, %v3227
        %v3229 = vpop.f32.mrf.mxu0
        %v3230 = vadd.f32 %v3181, %v3229
        %3231 = vdwg.mxu0
        %3232 = vmatpush.bf16.msra.mxu0 %v2775
        %3233 = vmatpush.bf16.msra.mxu0 %v2771
        %3234 = vmatpush.bf16.msra.mxu0 %v2767
        %3235 = vmatpush.bf16.msra.mxu0 %v2763
        %3236 = vmatpush.bf16.msra.mxu0 %v2759
        %3237 = vmatpush.bf16.msra.mxu0 %v2755
        %3238 = vmatpush.bf16.msra.mxu0 %v2751
        %3239 = vmatpush.bf16.msra.mxu0 %v2747
        %3240 = vmatmul.bf16.gmra.mxu0 %v2130
        %v3241 = vpop.f32.mrf.mxu0
        %v3242 = vadd.f32 %v3193, %v3241
        %v3243 = vpop.f32.mrf.mxu0
        %v3244 = vadd.f32 %v3195, %v3243
        %3245 = vmatmul.bf16.gmra.mxu0 %v2134
        %v3246 = vpop.f32.mrf.mxu0
        %v3247 = vadd.f32 %v3198, %v3246
        %v3248 = vpop.f32.mrf.mxu0
        %v3249 = vadd.f32 %v3200, %v3248
        %3250 = vmatmul.bf16.gmra.mxu0 %v2138
        %v3251 = vpop.f32.mrf.mxu0
        %v3252 = vadd.f32 %v3203, %v3251
        %v3253 = vpop.f32.mrf.mxu0
        %v3254 = vadd.f32 %v3205, %v3253
        %3255 = vmatmul.bf16.gmra.mxu0 %v2142
        %v3256 = vpop.f32.mrf.mxu0
        %v3257 = vadd.f32 %v3208, %v3256
        %v3258 = vpop.f32.mrf.mxu0
        %v3259 = vadd.f32 %v3210, %v3258
        %3260 = vmatmul.bf16.gmra.mxu0 %v2146
        %v3261 = vpop.f32.mrf.mxu0
        %v3262 = vadd.f32 %v3213, %v3261
        %v3263 = vpop.f32.mrf.mxu0
        %v3264 = vadd.f32 %v3215, %v3263
        %3265 = vmatmul.bf16.gmra.mxu0 %v2150
        %v3266 = vpop.f32.mrf.mxu0
        %v3267 = vadd.f32 %v3218, %v3266
        %v3268 = vpop.f32.mrf.mxu0
        %v3269 = vadd.f32 %v3220, %v3268
        %3270 = vmatmul.bf16.gmra.mxu0 %v2154
        %v3271 = vpop.f32.mrf.mxu0
        %v3272 = vadd.f32 %v3223, %v3271
        %v3273 = vpop.f32.mrf.mxu0
        %v3274 = vadd.f32 %v3225, %v3273
        %3275 = vmatmul.bf16.gmra.mxu0 %v2158
        %v3276 = vpop.f32.mrf.mxu0
        %v3277 = vadd.f32 %v3228, %v3276
        %v3278 = vpop.f32.mrf.mxu0
        %v3279 = vadd.f32 %v3230, %v3278
        %3280 = vdwg.mxu0
        %3281 = vmatpush.bf16.msra.mxu0 %v2807
        %3282 = vmatpush.bf16.msra.mxu0 %v2803
        %3283 = vmatpush.bf16.msra.mxu0 %v2799
        %3284 = vmatpush.bf16.msra.mxu0 %v2795
        %3285 = vmatpush.bf16.msra.mxu0 %v2791
        %3286 = vmatpush.bf16.msra.mxu0 %v2787
        %3287 = vmatpush.bf16.msra.mxu0 %v2783
        %3288 = vmatpush.bf16.msra.mxu0 %v2779
        %3289 = vmatmul.bf16.gmra.mxu0 %v2131
        %v3290 = vpop.f32.mrf.mxu0
        %v3291 = vadd.f32 %v3242, %v3290
        %v3292 = vpop.f32.mrf.mxu0
        %v3293 = vadd.f32 %v3244, %v3292
        %3294 = vmatmul.bf16.gmra.mxu0 %v2135
        %v3295 = vpop.f32.mrf.mxu0
        %v3296 = vadd.f32 %v3247, %v3295
        %v3297 = vpop.f32.mrf.mxu0
        %v3298 = vadd.f32 %v3249, %v3297
        %3299 = vmatmul.bf16.gmra.mxu0 %v2139
        %v3300 = vpop.f32.mrf.mxu0
        %v3301 = vadd.f32 %v3252, %v3300
        %v3302 = vpop.f32.mrf.mxu0
        %v3303 = vadd.f32 %v3254, %v3302
        %3304 = vmatmul.bf16.gmra.mxu0 %v2143
        %v3305 = vpop.f32.mrf.mxu0
        %v3306 = vadd.f32 %v3257, %v3305
        %v3307 = vpop.f32.mrf.mxu0
        %v3308 = vadd.f32 %v3259, %v3307
        %3309 = vmatmul.bf16.gmra.mxu0 %v2147
        %v3310 = vpop.f32.mrf.mxu0
        %v3311 = vadd.f32 %v3262, %v3310
        %v3312 = vpop.f32.mrf.mxu0
        %v3313 = vadd.f32 %v3264, %v3312
        %3314 = vmatmul.bf16.gmra.mxu0 %v2151
        %v3315 = vpop.f32.mrf.mxu0
        %v3316 = vadd.f32 %v3267, %v3315
        %v3317 = vpop.f32.mrf.mxu0
        %v3318 = vadd.f32 %v3269, %v3317
        %3319 = vmatmul.bf16.gmra.mxu0 %v2155
        %v3320 = vpop.f32.mrf.mxu0
        %v3321 = vadd.f32 %v3272, %v3320
        %v3322 = vpop.f32.mrf.mxu0
        %v3323 = vadd.f32 %v3274, %v3322
        %3324 = vmatmul.bf16.gmra.mxu0 %v2159
        %v3325 = vpop.f32.mrf.mxu0
        %v3326 = vadd.f32 %v3277, %v3325
        %v3327 = vpop.f32.mrf.mxu0
        %v3328 = vadd.f32 %v3279, %v3327
        %3329 = vdwg.mxu0
        %3330 = vmatpush.bf16.msra.mxu0 %v2712
        %3331 = vmatpush.bf16.msra.mxu0 %v2708
        %3332 = vmatpush.bf16.msra.mxu0 %v2704
        %3333 = vmatpush.bf16.msra.mxu0 %v2700
        %3334 = vmatpush.bf16.msra.mxu0 %v2696
        %3335 = vmatpush.bf16.msra.mxu0 %v2692
        %3336 = vmatpush.bf16.msra.mxu0 %v2688
        %3337 = vmatpush.bf16.msra.mxu0 %v2684
        %3338 = vmatmul.bf16.gmra.mxu0 %v2128
        %v3339 = vpop.f32.mrf.mxu0
        %v3340 = vadd.f32 %v2292, %v3339
        %v3341 = vpop.f32.mrf.mxu0
        %v3342 = vadd.f32 %v2292, %v3341
        %3343 = vmatmul.bf16.gmra.mxu0 %v2132
        %v3344 = vpop.f32.mrf.mxu0
        %v3345 = vadd.f32 %v2292, %v3344
        %v3346 = vpop.f32.mrf.mxu0
        %v3347 = vadd.f32 %v2292, %v3346
        %3348 = vmatmul.bf16.gmra.mxu0 %v2136
        %v3349 = vpop.f32.mrf.mxu0
        %v3350 = vadd.f32 %v2292, %v3349
        %v3351 = vpop.f32.mrf.mxu0
        %v3352 = vadd.f32 %v2292, %v3351
        %3353 = vmatmul.bf16.gmra.mxu0 %v2140
        %v3354 = vpop.f32.mrf.mxu0
        %v3355 = vadd.f32 %v2292, %v3354
        %v3356 = vpop.f32.mrf.mxu0
        %v3357 = vadd.f32 %v2292, %v3356
        %3358 = vmatmul.bf16.gmra.mxu0 %v2144
        %v3359 = vpop.f32.mrf.mxu0
        %v3360 = vadd.f32 %v2292, %v3359
        %v3361 = vpop.f32.mrf.mxu0
        %v3362 = vadd.f32 %v2292, %v3361
        %3363 = vmatmul.bf16.gmra.mxu0 %v2148
        %v3364 = vpop.f32.mrf.mxu0
        %v3365 = vadd.f32 %v2292, %v3364
        %v3366 = vpop.f32.mrf.mxu0
        %v3367 = vadd.f32 %v2292, %v3366
        %3368 = vmatmul.bf16.gmra.mxu0 %v2152
        %v3369 = vpop.f32.mrf.mxu0
        %v3370 = vadd.f32 %v2292, %v3369
        %v3371 = vpop.f32.mrf.mxu0
        %v3372 = vadd.f32 %v2292, %v3371
        %3373 = vmatmul.bf16.gmra.mxu0 %v2156
        %v3374 = vpop.f32.mrf.mxu0
        %v3375 = vadd.f32 %v2292, %v3374
        %v3376 = vpop.f32.mrf.mxu0
        %v3377 = vadd.f32 %v2292, %v3376
        %3378 = vdwg.mxu0
        %3379 = vmatpush.bf16.msra.mxu0 %v2744
        %3380 = vmatpush.bf16.msra.mxu0 %v2740
        %3381 = vmatpush.bf16.msra.mxu0 %v2736
        %3382 = vmatpush.bf16.msra.mxu0 %v2732
        %3383 = vmatpush.bf16.msra.mxu0 %v2728
        %3384 = vmatpush.bf16.msra.mxu0 %v2724
        %3385 = vmatpush.bf16.msra.mxu0 %v2720
        %3386 = vmatpush.bf16.msra.mxu0 %v2716
        %3387 = vmatmul.bf16.gmra.mxu0 %v2129
        %v3388 = vpop.f32.mrf.mxu0
        %v3389 = vadd.f32 %v3340, %v3388
        %v3390 = vpop.f32.mrf.mxu0
        %v3391 = vadd.f32 %v3342, %v3390
        %3392 = vmatmul.bf16.gmra.mxu0 %v2133
        %v3393 = vpop.f32.mrf.mxu0
        %v3394 = vadd.f32 %v3345, %v3393
        %v3395 = vpop.f32.mrf.mxu0
        %v3396 = vadd.f32 %v3347, %v3395
        %3397 = vmatmul.bf16.gmra.mxu0 %v2137
        %v3398 = vpop.f32.mrf.mxu0
        %v3399 = vadd.f32 %v3350, %v3398
        %v3400 = vpop.f32.mrf.mxu0
        %v3401 = vadd.f32 %v3352, %v3400
        %3402 = vmatmul.bf16.gmra.mxu0 %v2141
        %v3403 = vpop.f32.mrf.mxu0
        %v3404 = vadd.f32 %v3355, %v3403
        %v3405 = vpop.f32.mrf.mxu0
        %v3406 = vadd.f32 %v3357, %v3405
        %3407 = vmatmul.bf16.gmra.mxu0 %v2145
        %v3408 = vpop.f32.mrf.mxu0
        %v3409 = vadd.f32 %v3360, %v3408
        %v3410 = vpop.f32.mrf.mxu0
        %v3411 = vadd.f32 %v3362, %v3410
        %3412 = vmatmul.bf16.gmra.mxu0 %v2149
        %v3413 = vpop.f32.mrf.mxu0
        %v3414 = vadd.f32 %v3365, %v3413
        %v3415 = vpop.f32.mrf.mxu0
        %v3416 = vadd.f32 %v3367, %v3415
        %3417 = vmatmul.bf16.gmra.mxu0 %v2153
        %v3418 = vpop.f32.mrf.mxu0
        %v3419 = vadd.f32 %v3370, %v3418
        %v3420 = vpop.f32.mrf.mxu0
        %v3421 = vadd.f32 %v3372, %v3420
        %3422 = vmatmul.bf16.gmra.mxu0 %v2157
        %v3423 = vpop.f32.mrf.mxu0
        %v3424 = vadd.f32 %v3375, %v3423
        %v3425 = vpop.f32.mrf.mxu0
        %v3426 = vadd.f32 %v3377, %v3425
        %3427 = vdwg.mxu0
        %3428 = vmatpush.bf16.msra.mxu0 %v2776
        %3429 = vmatpush.bf16.msra.mxu0 %v2772
        %3430 = vmatpush.bf16.msra.mxu0 %v2768
        %3431 = vmatpush.bf16.msra.mxu0 %v2764
        %3432 = vmatpush.bf16.msra.mxu0 %v2760
        %3433 = vmatpush.bf16.msra.mxu0 %v2756
        %3434 = vmatpush.bf16.msra.mxu0 %v2752
        %3435 = vmatpush.bf16.msra.mxu0 %v2748
        %3436 = vmatmul.bf16.gmra.mxu0 %v2130
        %v3437 = vpop.f32.mrf.mxu0
        %v3438 = vadd.f32 %v3389, %v3437
        %v3439 = vpop.f32.mrf.mxu0
        %v3440 = vadd.f32 %v3391, %v3439
        %3441 = vmatmul.bf16.gmra.mxu0 %v2134
        %v3442 = vpop.f32.mrf.mxu0
        %v3443 = vadd.f32 %v3394, %v3442
        %v3444 = vpop.f32.mrf.mxu0
        %v3445 = vadd.f32 %v3396, %v3444
        %3446 = vmatmul.bf16.gmra.mxu0 %v2138
        %v3447 = vpop.f32.mrf.mxu0
        %v3448 = vadd.f32 %v3399, %v3447
        %v3449 = vpop.f32.mrf.mxu0
        %v3450 = vadd.f32 %v3401, %v3449
        %3451 = vmatmul.bf16.gmra.mxu0 %v2142
        %v3452 = vpop.f32.mrf.mxu0
        %v3453 = vadd.f32 %v3404, %v3452
        %v3454 = vpop.f32.mrf.mxu0
        %v3455 = vadd.f32 %v3406, %v3454
        %3456 = vmatmul.bf16.gmra.mxu0 %v2146
        %v3457 = vpop.f32.mrf.mxu0
        %v3458 = vadd.f32 %v3409, %v3457
        %v3459 = vpop.f32.mrf.mxu0
        %v3460 = vadd.f32 %v3411, %v3459
        %3461 = vmatmul.bf16.gmra.mxu0 %v2150
        %v3462 = vpop.f32.mrf.mxu0
        %v3463 = vadd.f32 %v3414, %v3462
        %v3464 = vpop.f32.mrf.mxu0
        %v3465 = vadd.f32 %v3416, %v3464
        %3466 = vmatmul.bf16.gmra.mxu0 %v2154
        %v3467 = vpop.f32.mrf.mxu0
        %v3468 = vadd.f32 %v3419, %v3467
        %v3469 = vpop.f32.mrf.mxu0
        %v3470 = vadd.f32 %v3421, %v3469
        %3471 = vmatmul.bf16.gmra.mxu0 %v2158
        %v3472 = vpop.f32.mrf.mxu0
        %v3473 = vadd.f32 %v3424, %v3472
        %v3474 = vpop.f32.mrf.mxu0
        %v3475 = vadd.f32 %v3426, %v3474
        %3476 = vdwg.mxu0
        %3477 = vmatpush.bf16.msra.mxu0 %v2808
        %3478 = vmatpush.bf16.msra.mxu0 %v2804
        %3479 = vmatpush.bf16.msra.mxu0 %v2800
        %3480 = vmatpush.bf16.msra.mxu0 %v2796
        %3481 = vmatpush.bf16.msra.mxu0 %v2792
        %3482 = vmatpush.bf16.msra.mxu0 %v2788
        %3483 = vmatpush.bf16.msra.mxu0 %v2784
        %3484 = vmatpush.bf16.msra.mxu0 %v2780
        %3485 = vmatmul.bf16.gmra.mxu0 %v2131
        %v3486 = vpop.f32.mrf.mxu0
        %v3487 = vadd.f32 %v3438, %v3486
        %v3488 = vpop.f32.mrf.mxu0
        %v3489 = vadd.f32 %v3440, %v3488
        %3490 = vmatmul.bf16.gmra.mxu0 %v2135
        %v3491 = vpop.f32.mrf.mxu0
        %v3492 = vadd.f32 %v3443, %v3491
        %v3493 = vpop.f32.mrf.mxu0
        %v3494 = vadd.f32 %v3445, %v3493
        %3495 = vmatmul.bf16.gmra.mxu0 %v2139
        %v3496 = vpop.f32.mrf.mxu0
        %v3497 = vadd.f32 %v3448, %v3496
        %v3498 = vpop.f32.mrf.mxu0
        %v3499 = vadd.f32 %v3450, %v3498
        %3500 = vmatmul.bf16.gmra.mxu0 %v2143
        %v3501 = vpop.f32.mrf.mxu0
        %v3502 = vadd.f32 %v3453, %v3501
        %v3503 = vpop.f32.mrf.mxu0
        %v3504 = vadd.f32 %v3455, %v3503
        %3505 = vmatmul.bf16.gmra.mxu0 %v2147
        %v3506 = vpop.f32.mrf.mxu0
        %v3507 = vadd.f32 %v3458, %v3506
        %v3508 = vpop.f32.mrf.mxu0
        %v3509 = vadd.f32 %v3460, %v3508
        %3510 = vmatmul.bf16.gmra.mxu0 %v2151
        %v3511 = vpop.f32.mrf.mxu0
        %v3512 = vadd.f32 %v3463, %v3511
        %v3513 = vpop.f32.mrf.mxu0
        %v3514 = vadd.f32 %v3465, %v3513
        %3515 = vmatmul.bf16.gmra.mxu0 %v2155
        %v3516 = vpop.f32.mrf.mxu0
        %v3517 = vadd.f32 %v3468, %v3516
        %v3518 = vpop.f32.mrf.mxu0
        %v3519 = vadd.f32 %v3470, %v3518
        %3520 = vmatmul.bf16.gmra.mxu0 %v2159
        %v3521 = vpop.f32.mrf.mxu0
        %v3522 = vadd.f32 %v3473, %v3521
        %v3523 = vpop.f32.mrf.mxu0
        %v3524 = vadd.f32 %v3475, %v3523
        %3525 = vdwg.mxu0
        %3526 = vmatpush.bf16.msra.mxu0 %v2713
        %3527 = vmatpush.bf16.msra.mxu0 %v2709
        %3528 = vmatpush.bf16.msra.mxu0 %v2705
        %3529 = vmatpush.bf16.msra.mxu0 %v2701
        %3530 = vmatpush.bf16.msra.mxu0 %v2697
        %3531 = vmatpush.bf16.msra.mxu0 %v2693
        %3532 = vmatpush.bf16.msra.mxu0 %v2689
        %3533 = vmatpush.bf16.msra.mxu0 %v2685
        %3534 = vmatmul.bf16.gmra.mxu0 %v2128
        %v3535 = vpop.f32.mrf.mxu0
        %v3536 = vadd.f32 %v2293, %v3535
        %v3537 = vpop.f32.mrf.mxu0
        %v3538 = vadd.f32 %v2293, %v3537
        %3539 = vmatmul.bf16.gmra.mxu0 %v2132
        %v3540 = vpop.f32.mrf.mxu0
        %v3541 = vadd.f32 %v2293, %v3540
        %v3542 = vpop.f32.mrf.mxu0
        %v3543 = vadd.f32 %v2293, %v3542
        %3544 = vmatmul.bf16.gmra.mxu0 %v2136
        %v3545 = vpop.f32.mrf.mxu0
        %v3546 = vadd.f32 %v2293, %v3545
        %v3547 = vpop.f32.mrf.mxu0
        %v3548 = vadd.f32 %v2293, %v3547
        %3549 = vmatmul.bf16.gmra.mxu0 %v2140
        %v3550 = vpop.f32.mrf.mxu0
        %v3551 = vadd.f32 %v2293, %v3550
        %v3552 = vpop.f32.mrf.mxu0
        %v3553 = vadd.f32 %v2293, %v3552
        %3554 = vmatmul.bf16.gmra.mxu0 %v2144
        %v3555 = vpop.f32.mrf.mxu0
        %v3556 = vadd.f32 %v2293, %v3555
        %v3557 = vpop.f32.mrf.mxu0
        %v3558 = vadd.f32 %v2293, %v3557
        %3559 = vmatmul.bf16.gmra.mxu0 %v2148
        %v3560 = vpop.f32.mrf.mxu0
        %v3561 = vadd.f32 %v2293, %v3560
        %v3562 = vpop.f32.mrf.mxu0
        %v3563 = vadd.f32 %v2293, %v3562
        %3564 = vmatmul.bf16.gmra.mxu0 %v2152
        %v3565 = vpop.f32.mrf.mxu0
        %v3566 = vadd.f32 %v2293, %v3565
        %v3567 = vpop.f32.mrf.mxu0
        %v3568 = vadd.f32 %v2293, %v3567
        %3569 = vmatmul.bf16.gmra.mxu0 %v2156
        %v3570 = vpop.f32.mrf.mxu0
        %v3571 = vadd.f32 %v2293, %v3570
        %v3572 = vpop.f32.mrf.mxu0
        %v3573 = vadd.f32 %v2293, %v3572
        %3574 = vdwg.mxu0
        %3575 = vmatpush.bf16.msra.mxu0 %v2745
        %3576 = vmatpush.bf16.msra.mxu0 %v2741
        %3577 = vmatpush.bf16.msra.mxu0 %v2737
        %3578 = vmatpush.bf16.msra.mxu0 %v2733
        %3579 = vmatpush.bf16.msra.mxu0 %v2729
        %3580 = vmatpush.bf16.msra.mxu0 %v2725
        %3581 = vmatpush.bf16.msra.mxu0 %v2721
        %3582 = vmatpush.bf16.msra.mxu0 %v2717
        %3583 = vmatmul.bf16.gmra.mxu0 %v2129
        %v3584 = vpop.f32.mrf.mxu0
        %v3585 = vadd.f32 %v3536, %v3584
        %v3586 = vpop.f32.mrf.mxu0
        %v3587 = vadd.f32 %v3538, %v3586
        %3588 = vmatmul.bf16.gmra.mxu0 %v2133
        %v3589 = vpop.f32.mrf.mxu0
        %v3590 = vadd.f32 %v3541, %v3589
        %v3591 = vpop.f32.mrf.mxu0
        %v3592 = vadd.f32 %v3543, %v3591
        %3593 = vmatmul.bf16.gmra.mxu0 %v2137
        %v3594 = vpop.f32.mrf.mxu0
        %v3595 = vadd.f32 %v3546, %v3594
        %v3596 = vpop.f32.mrf.mxu0
        %v3597 = vadd.f32 %v3548, %v3596
        %3598 = vmatmul.bf16.gmra.mxu0 %v2141
        %v3599 = vpop.f32.mrf.mxu0
        %v3600 = vadd.f32 %v3551, %v3599
        %v3601 = vpop.f32.mrf.mxu0
        %v3602 = vadd.f32 %v3553, %v3601
        %3603 = vmatmul.bf16.gmra.mxu0 %v2145
        %v3604 = vpop.f32.mrf.mxu0
        %v3605 = vadd.f32 %v3556, %v3604
        %v3606 = vpop.f32.mrf.mxu0
        %v3607 = vadd.f32 %v3558, %v3606
        %3608 = vmatmul.bf16.gmra.mxu0 %v2149
        %v3609 = vpop.f32.mrf.mxu0
        %v3610 = vadd.f32 %v3561, %v3609
        %v3611 = vpop.f32.mrf.mxu0
        %v3612 = vadd.f32 %v3563, %v3611
        %3613 = vmatmul.bf16.gmra.mxu0 %v2153
        %v3614 = vpop.f32.mrf.mxu0
        %v3615 = vadd.f32 %v3566, %v3614
        %v3616 = vpop.f32.mrf.mxu0
        %v3617 = vadd.f32 %v3568, %v3616
        %3618 = vmatmul.bf16.gmra.mxu0 %v2157
        %v3619 = vpop.f32.mrf.mxu0
        %v3620 = vadd.f32 %v3571, %v3619
        %v3621 = vpop.f32.mrf.mxu0
        %v3622 = vadd.f32 %v3573, %v3621
        %3623 = vdwg.mxu0
        %3624 = vmatpush.bf16.msra.mxu0 %v2777
        %3625 = vmatpush.bf16.msra.mxu0 %v2773
        %3626 = vmatpush.bf16.msra.mxu0 %v2769
        %3627 = vmatpush.bf16.msra.mxu0 %v2765
        %3628 = vmatpush.bf16.msra.mxu0 %v2761
        %3629 = vmatpush.bf16.msra.mxu0 %v2757
        %3630 = vmatpush.bf16.msra.mxu0 %v2753
        %3631 = vmatpush.bf16.msra.mxu0 %v2749
        %3632 = vmatmul.bf16.gmra.mxu0 %v2130
        %v3633 = vpop.f32.mrf.mxu0
        %v3634 = vadd.f32 %v3585, %v3633
        %v3635 = vpop.f32.mrf.mxu0
        %v3636 = vadd.f32 %v3587, %v3635
        %3637 = vmatmul.bf16.gmra.mxu0 %v2134
        %v3638 = vpop.f32.mrf.mxu0
        %v3639 = vadd.f32 %v3590, %v3638
        %v3640 = vpop.f32.mrf.mxu0
        %v3641 = vadd.f32 %v3592, %v3640
        %3642 = vmatmul.bf16.gmra.mxu0 %v2138
        %v3643 = vpop.f32.mrf.mxu0
        %v3644 = vadd.f32 %v3595, %v3643
        %v3645 = vpop.f32.mrf.mxu0
        %v3646 = vadd.f32 %v3597, %v3645
        %3647 = vmatmul.bf16.gmra.mxu0 %v2142
        %v3648 = vpop.f32.mrf.mxu0
        %v3649 = vadd.f32 %v3600, %v3648
        %v3650 = vpop.f32.mrf.mxu0
        %v3651 = vadd.f32 %v3602, %v3650
        %3652 = vmatmul.bf16.gmra.mxu0 %v2146
        %v3653 = vpop.f32.mrf.mxu0
        %v3654 = vadd.f32 %v3605, %v3653
        %v3655 = vpop.f32.mrf.mxu0
        %v3656 = vadd.f32 %v3607, %v3655
        %3657 = vmatmul.bf16.gmra.mxu0 %v2150
        %v3658 = vpop.f32.mrf.mxu0
        %v3659 = vadd.f32 %v3610, %v3658
        %v3660 = vpop.f32.mrf.mxu0
        %v3661 = vadd.f32 %v3612, %v3660
        %3662 = vmatmul.bf16.gmra.mxu0 %v2154
        %v3663 = vpop.f32.mrf.mxu0
        %v3664 = vadd.f32 %v3615, %v3663
        %v3665 = vpop.f32.mrf.mxu0
        %v3666 = vadd.f32 %v3617, %v3665
        %3667 = vmatmul.bf16.gmra.mxu0 %v2158
        %v3668 = vpop.f32.mrf.mxu0
        %v3669 = vadd.f32 %v3620, %v3668
        %v3670 = vpop.f32.mrf.mxu0
        %v3671 = vadd.f32 %v3622, %v3670
        %3672 = vdwg.mxu0
        %3673 = vmatpush.bf16.msra.mxu0 %v2809
        %3674 = vmatpush.bf16.msra.mxu0 %v2805
        %3675 = vmatpush.bf16.msra.mxu0 %v2801
        %3676 = vmatpush.bf16.msra.mxu0 %v2797
        %3677 = vmatpush.bf16.msra.mxu0 %v2793
        %3678 = vmatpush.bf16.msra.mxu0 %v2789
        %3679 = vmatpush.bf16.msra.mxu0 %v2785
        %3680 = vmatpush.bf16.msra.mxu0 %v2781
        %3681 = vmatmul.bf16.gmra.mxu0 %v2131
        %v3682 = vpop.f32.mrf.mxu0
        %v3683 = vadd.f32 %v3634, %v3682
        %v3684 = vpop.f32.mrf.mxu0
        %v3685 = vadd.f32 %v3636, %v3684
        %3686 = vmatmul.bf16.gmra.mxu0 %v2135
        %v3687 = vpop.f32.mrf.mxu0
        %v3688 = vadd.f32 %v3639, %v3687
        %v3689 = vpop.f32.mrf.mxu0
        %v3690 = vadd.f32 %v3641, %v3689
        %3691 = vmatmul.bf16.gmra.mxu0 %v2139
        %v3692 = vpop.f32.mrf.mxu0
        %v3693 = vadd.f32 %v3644, %v3692
        %v3694 = vpop.f32.mrf.mxu0
        %v3695 = vadd.f32 %v3646, %v3694
        %3696 = vmatmul.bf16.gmra.mxu0 %v2143
        %v3697 = vpop.f32.mrf.mxu0
        %v3698 = vadd.f32 %v3649, %v3697
        %v3699 = vpop.f32.mrf.mxu0
        %v3700 = vadd.f32 %v3651, %v3699
        %3701 = vmatmul.bf16.gmra.mxu0 %v2147
        %v3702 = vpop.f32.mrf.mxu0
        %v3703 = vadd.f32 %v3654, %v3702
        %v3704 = vpop.f32.mrf.mxu0
        %v3705 = vadd.f32 %v3656, %v3704
        %3706 = vmatmul.bf16.gmra.mxu0 %v2151
        %v3707 = vpop.f32.mrf.mxu0
        %v3708 = vadd.f32 %v3659, %v3707
        %v3709 = vpop.f32.mrf.mxu0
        %v3710 = vadd.f32 %v3661, %v3709
        %3711 = vmatmul.bf16.gmra.mxu0 %v2155
        %v3712 = vpop.f32.mrf.mxu0
        %v3713 = vadd.f32 %v3664, %v3712
        %v3714 = vpop.f32.mrf.mxu0
        %v3715 = vadd.f32 %v3666, %v3714
        %3716 = vmatmul.bf16.gmra.mxu0 %v2159
        %v3717 = vpop.f32.mrf.mxu0
        %v3718 = vadd.f32 %v3669, %v3717
        %v3719 = vpop.f32.mrf.mxu0
        %v3720 = vadd.f32 %v3671, %v3719
        %3721 = vdwg.mxu0
        %v3722 = vpack.c.bf16 %v3291, %v3095
        %v3723 = vpack.c.bf16 %v3683, %v3487
        %v3724 = vpack.c.bf16 %v3293, %v3097
        %v3725 = vpack.c.bf16 %v3685, %v3489
        %v3726 = vpack.c.bf16 %v3296, %v3100
        %v3727 = vpack.c.bf16 %v3688, %v3492
        %v3728 = vpack.c.bf16 %v3298, %v3102
        %v3729 = vpack.c.bf16 %v3690, %v3494
        %v3730 = vpack.c.bf16 %v3301, %v3105
        %v3731 = vpack.c.bf16 %v3693, %v3497
        %v3732 = vpack.c.bf16 %v3303, %v3107
        %v3733 = vpack.c.bf16 %v3695, %v3499
        %v3734 = vpack.c.bf16 %v3306, %v3110
        %v3735 = vpack.c.bf16 %v3698, %v3502
        %v3736 = vpack.c.bf16 %v3308, %v3112
        %v3737 = vpack.c.bf16 %v3700, %v3504
        %v3738 = vpack.c.bf16 %v3311, %v3115
        %v3739 = vpack.c.bf16 %v3703, %v3507
        %v3740 = vpack.c.bf16 %v3313, %v3117
        %v3741 = vpack.c.bf16 %v3705, %v3509
        %v3742 = vpack.c.bf16 %v3316, %v3120
        %v3743 = vpack.c.bf16 %v3708, %v3512
        %v3744 = vpack.c.bf16 %v3318, %v3122
        %v3745 = vpack.c.bf16 %v3710, %v3514
        %v3746 = vpack.c.bf16 %v3321, %v3125
        %v3747 = vpack.c.bf16 %v3713, %v3517
        %v3748 = vpack.c.bf16 %v3323, %v3127
        %v3749 = vpack.c.bf16 %v3715, %v3519
        %v3750 = vpack.c.bf16 %v3326, %v3130
        %v3751 = vpack.c.bf16 %v3718, %v3522
        %v3752 = vpack.c.bf16 %v3328, %v3132
        %v3753 = vpack.c.bf16 %v3720, %v3524
        %3754 = vst [vmem:[%s307] sm:$0xff] %v3722
        %3755 = vst [vmem:[%s307 + $0x8] sm:$0xff] %v3723
        %3756 = vst [vmem:[%s307 + $0x10] sm:$0xff] %v3724
        %3757 = vst [vmem:[%s307 + $0x18] sm:$0xff] %v3725
        %3758 = vst [vmem:[%s307 + $0x20] sm:$0xff] %v3726
        %3759 = vst [vmem:[%s307 + $0x28] sm:$0xff] %v3727
        %3760 = vst [vmem:[%s307 + $0x30] sm:$0xff] %v3728
        %3761 = vst [vmem:[%s307 + $0x38] sm:$0xff] %v3729
        %3762 = vst [vmem:[%s307 + $0x40] sm:$0xff] %v3730
        %3763 = vst [vmem:[%s307 + $0x48] sm:$0xff] %v3731
        %3764 = vst [vmem:[%s307 + $0x50] sm:$0xff] %v3732
        %3765 = vst [vmem:[%s307 + $0x58] sm:$0xff] %v3733
        %3766 = vst [vmem:[%s307 + $0x60] sm:$0xff] %v3734
        %3767 = vst [vmem:[%s307 + $0x68] sm:$0xff] %v3735
        %3768 = vst [vmem:[%s307 + $0x70] sm:$0xff] %v3736
        %3769 = vst [vmem:[%s307 + $0x78] sm:$0xff] %v3737
        %3770 = vst [vmem:[%s307 + $0x80] sm:$0xff] %v3738
        %3771 = vst [vmem:[%s307 + $0x88] sm:$0xff] %v3739
        %3772 = vst [vmem:[%s307 + $0x90] sm:$0xff] %v3740
        %3773 = vst [vmem:[%s307 + $0x98] sm:$0xff] %v3741
        %3774 = vst [vmem:[%s307 + $0xa0] sm:$0xff] %v3742
        %3775 = vst [vmem:[%s307 + $0xa8] sm:$0xff] %v3743
        %3776 = vst [vmem:[%s307 + $0xb0] sm:$0xff] %v3744
        %3777 = vst [vmem:[%s307 + $0xb8] sm:$0xff] %v3745
        %3778 = vst [vmem:[%s307 + $0xc0] sm:$0xff] %v3746
        %3779 = vst [vmem:[%s307 + $0xc8] sm:$0xff] %v3747
        %3780 = vst [vmem:[%s307 + $0xd0] sm:$0xff] %v3748
        %3781 = vst [vmem:[%s307 + $0xd8] sm:$0xff] %v3749
        %3782 = vst [vmem:[%s307 + $0xe0] sm:$0xff] %v3750
        %3783 = vst [vmem:[%s307 + $0xe8] sm:$0xff] %v3751
        %3784 = vst [vmem:[%s307 + $0xf0] sm:$0xff] %v3752
        %3785 = vst [vmem:[%s307 + $0xf8] sm:$0xff] %v3753
        %s3786 = sand.u32 %s142, 1
        %s3787 = scalar_lea.sflag [#allocation4], %s3786
        %s3788 = sand.u32 %s142, 1
        %s3789 = smul.addr %s3788, 256
        %s3790 = scalar_lea.vmem [#allocation11], %s3789
        // Predicated region
        $region61: #{tpu_custom_call.1} parent=39 // pred_check
          %p3791 = pneg %p152
        $region62: #{tpu_custom_call.1} parent=39 // pred_check_branch
          %3793 = sbr.rel (%p3791) target = $region64
        $region63: #{tpu_custom_call.1} parent=39 // pred_region
          %s3794 = smul.u32 16, %s24
          %3796 = vsyncadd %s3787, 0
          %s3797 = smul.addr %s3794, 4
          %s3798 = smul.addr %s3797, 4
          %s3799 = scalar_lea.hbm %s5, %s3798
          %s3800 = sshll.u32 %s3790, 4
          %s3801 = int_to_ptr.vmem [resolvable:$true] %s3800
          %s3802 = sshll.u32 %s3799, 4
          %s3803 = int_to_ptr.hbm [resolvable:$true] %s3802
          %3808 = dma.vmem_to_hbm [thread:$0]  %s3801, 4096, %s3803, %s3787, 256, 256, 16
        $region64: #{tpu_custom_call.1} parent=39 // pred_fallthru
          _
      $region40: #{tpu_custom_call.1} parent=5 // pred_fallthru
        _
      %p3809 = scmp.le.s32.totalorder 2, %s19
      // Predicated region
      $region65: #{tpu_custom_call.1} parent=5 // pred_check
        %p3810 = pneg %p3809
      $region66: #{tpu_custom_call.1} parent=5 // pred_check_branch
        %3812 = sbr.rel (%p3810) target = $region68
      $region67: #{tpu_custom_call.1} parent=5 // pred_region
        %s3813 = ssub.s32 %s19, 2
        // Predicated region
        $region69: #{tpu_custom_call.1} parent=67 // pred_check
          %p3814 = pneg %p158
        $region70: #{tpu_custom_call.1} parent=67 // pred_check_branch
          %3816 = sbr.rel (%p3814) target = $region72
        $region71: #{tpu_custom_call.1} parent=67 // pred_region
          %s3817 = sand.u32 %s143, 1
          %s3818 = scalar_lea.sflag [#allocation4], %s3817
          %s3819 = sand.u32 %s143, 1
          %s3820 = smul.addr %s3819, 256
          %s3821 = scalar_lea.vmem [#allocation11], %s3820
          %3823 = dma.done %s3818, 4096
        $region72: #{tpu_custom_call.1} parent=67 // pred_fallthru
          _
      $region68: #{tpu_custom_call.1} parent=5 // pred_fallthru
        _
    $region6: #{tpu_custom_call.1} parent=1 // loop_footer
      %s23 = sadd.s32 1, %s19
    $region7: #{tpu_custom_call.1} parent=1 // loop_footer_branch
      %18 = sbr.rel target = $region3
    $region8: #{tpu_custom_call.1} parent=1 // loop_exit
      _
    %3824 = vsyncpa [#allocation3], 1
    %s3825 = scalar_lea.sflag [#allocation3], 1
    %3826 = vsyncpa %s3825, 1
    %3827 = vsyncpa [#allocation6], 1
    %3828 = vsyncpa [#allocation9], 1
    %3829 = vsyncpa [#allocation4], 1
    %s3830 = scalar_lea.sflag [#allocation4], 1
    %3831 = vsyncpa %s3830, 1

</llo_original>
